<compile_context>
chip_gen: v7x
topology: tpu7x:2x2x1
jax: 0.10.0
libtpu: 0.0.40
codegen_flags: <defaults>
</compile_context>

<pallas_src>
import functools

import jax
import jax.numpy as jnp
from jax.experimental import pallas as pl
from jax.experimental.pallas import tpu as pltpu

_PAD = 16  # scratch row padding so the corner (ky,kx) window loads stay in-bounds


# -----------------------------------------------------------------------------
# Pallas kernel
# -----------------------------------------------------------------------------
def bottleneck_kernel(x_ref, x_top_ref, x_bot_ref,
                      w1_ref, b1_ref, w2_ref, b2_ref, w3_ref, b3_ref,
                      out_ref, y1e_ref):
    # x_ref:     (TH*W, Cin)  bf16 flattened row-tile of the input
    # x_top_ref: (W, Cin)     bf16 image row just above the tile (clamped at top)
    # x_bot_ref: (W, Cin)     bf16 image row just below the tile (clamped at bottom)
    # w1_ref:    (Cin, P)     bf16, BN1 scale folded in
    # w2_ref:    (3, 3, P, P) bf16 HWIO, BN2 scale folded in
    # w3_ref:    (P, Cout)    bf16, BN3 scale folded in
    # b*_ref:    (1, C)       f32 folded BN biases
    # out_ref:   (TH*W, Cout)
    # y1e_ref:   ((TH+2)*W + 2*_PAD, P) bf16 scratch: row-extended conv1 output
    M, _ = x_ref.shape
    W = x_top_ref.shape[0]
    TH = M // W
    P = w1_ref.shape[1]

    h = pl.program_id(1)
    nh = pl.num_programs(1)

    w1 = w1_ref[...]
    b1 = b1_ref[...]

    def conv1(x):  # (rows, Cin) bf16 -> (rows, P) bf16 ; BN1 folded, ReLU fused
        y = jnp.dot(x, w1, preferred_element_type=jnp.float32)
        return jnp.maximum(y + b1, 0.0).astype(jnp.bfloat16)

    TOP = _PAD                 # flat row offset of the top halo row in the scratch
    MAIN = _PAD + W            # flat row offset of the first interior row
    BOT = _PAD + (TH + 1) * W  # flat row offset of the bottom halo row

    # ---- conv1 (1x1) + bias + ReLU, written straight into the scratch -------
    y1e_ref[pl.ds(MAIN, M), :] = conv1(x_ref[...])

    # Halo rows: real conv1 output in the image interior; zeros at the image
    # border (they stand in for conv2's zero padding of y1).  The boundary
    # matmuls are skipped entirely.
    @pl.when(h == 0)
    def _():
        y1e_ref[pl.ds(TOP, W), :] = jnp.zeros((W, P), jnp.bfloat16)

    @pl.when(h != 0)
    def _():
        y1e_ref[pl.ds(TOP, W), :] = conv1(x_top_ref[...])

    @pl.when(h == nh - 1)
    def _():
        y1e_ref[pl.ds(BOT, W), :] = jnp.zeros((W, P), jnp.bfloat16)

    @pl.when(h != nh - 1)
    def _():
        y1e_ref[pl.ds(BOT, W), :] = conv1(x_bot_ref[...])

    # ---- conv2 (3x3, stride 1, pad 1) + bias + ReLU --------------------------
    # Nine shifted (M, P) windows of the flattened extended buffer: row taps are
    # +/-W flat offsets, column taps +/-1.  The +/-1 shifts wrap across image
    # rows exactly at the columns that must be zero-padded, so one mask per side
    # (computed once) restores correctness.  Accumulate partials in f32.
    col = jax.lax.broadcasted_iota(jnp.int32, (M, 1), 0) % W
    left_edge = col == 0
    right_edge = col == (W - 1)

    acc = None
    for ky in range(3):
        for kx in range(3):
            start = MAIN + (ky - 1) * W + (kx - 1)
            win = y1e_ref[pl.ds(start, M), :]
            if kx == 0:
                win = jnp.where(left_edge, 0, win)
            elif kx == 2:
                win = jnp.where(right_edge, 0, win)
            part = jnp.dot(win, w2_ref[ky, kx],
                           preferred_element_type=jnp.float32)
            acc = part if acc is None else acc + part
    y2 = jnp.maximum(acc + b2_ref[...], 0.0).astype(jnp.bfloat16)  # (M, P)

    # ---- conv3 (1x1) + bias + identity residual + ReLU -----------------------
    y3 = jnp.dot(y2, w3_ref[...], preferred_element_type=jnp.float32) + b3_ref[...]
    out = jnp.maximum(y3 + x_ref[...].astype(jnp.float32), 0.0)
    out_ref[...] = out.astype(out_ref.dtype)


# -----------------------------------------------------------------------------
# VMEM model + row-tile picker (generation aware)
# -----------------------------------------------------------------------------
def _tpu_vmem_capacity_bytes():
    try:
        info = pltpu.get_tpu_info()
        cap = getattr(info, "vmem_capacity_bytes", None)
        if cap:
            return int(cap)
    except Exception:
        pass
    return 64 * 1024 * 1024  # conservative default (v7x per-core size)


def _vmem_estimate(TH, W, Cin, Cout, P, out_bytes):
    """Per-grid-step VMEM bytes: double-buffered I/O + scratch + live temporaries."""
    M = TH * W
    io = 2 * M * Cin * 2                 # x block (bf16, double-buffered)
    io += 2 * 2 * W * Cin * 2            # two 1-row halo blocks
    io += 2 * M * Cout * out_bytes       # out block
    weights = 2 * ((Cin * P + 9 * P * P + P * Cout) * 2 + (2 * P + Cout) * 4)
    scratch = ((TH + 2) * W + 2 * _PAD) * P * 2
    # conv2 acc (f32) + one bf16 window + y2 (bf16) + conv3 f32 result + f32 residual
    temps = M * (8 * P + 4 * Cout + 4 * Cin)
    return io + weights + scratch + temps


def _pick_row_tile(N, H, W, Cin, Cout, P, out_bytes, budget):
    divisors = [d for d in range(1, H + 1) if H % d == 0]
    fitting = [d for d in divisors
               if _vmem_estimate(d, W, Cin, Cout, P, out_bytes) <= budget]
    if not fitting:
        fitting = [1]
    best = max(fitting)
    # Keep >= 2 grid steps (feeds both TensorCores on v7x) unless that forces a
    # pathologically small tile.
    if N * (H // best) < 2:
        multi = [d for d in fitting if N * (H // d) >= 2]
        if multi and 4 * max(multi) >= best:
            best = max(multi)
    return best


# -----------------------------------------------------------------------------
# Wrappers
# -----------------------------------------------------------------------------
def bottleneck_pallas_nhwc(x_nhwc, prep, row_tile=None, out_dtype=None):
    """x_nhwc: (N, H, W, Cin). prep: prepared (BN-folded, bf16) params.

    Output dtype defaults to the input dtype, so feeding bf16 NHWC activations
    keeps the whole chained-block path bf16 end-to-end (no f32 writeback)."""
    w1, b1, w2, b2, w3, b3 = prep
    N, H, W, Cin = x_nhwc.shape
    P = w1.shape[1]
    Cout = w3.shape[1]
    assert Cin == Cout, "identity residual requires inplanes == planes*expansion"
    # TODO(synk): general W support needs a masked/padded halo BlockSpec path.
    assert W % 8 == 0, "W must be a multiple of 8 (TPU sublane tile)"

    out_dtype = x_nhwc.dtype if out_dtype is None else jnp.dtype(out_dtype)
    out_bytes = jnp.dtype(out_dtype).itemsize

    cap = _tpu_vmem_capacity_bytes()
    vmem_limit = (cap * 5) // 8          # ~40 MiB on v7x (64), ~80 MiB on v5e/v6e (128)
    budget = (cap * 7) // 16             # ~28 / ~56 MiB modelled per-step working set

    TH = row_tile if row_tile is not None else _pick_row_tile(
        N, H, W, Cin, Cout, P, out_bytes, budget)
    assert H % TH == 0, "row_tile must divide H"
    n_h = H // TH
    M = TH * W

    # Flattened (rows, channels) view: removes every in-kernel reshape/concat.
    x2d = x_nhwc.astype(jnp.bfloat16).reshape(N, H * W, Cin)

    def const(shape):
        return pl.BlockSpec(shape, lambda n, h: (0,) * len(shape))

    grid_spec = pltpu.PrefetchScalarGridSpec(
        num_scalar_prefetch=0,
        grid=(N, n_h),
        in_specs=[
            # main flattened row tile (TH image rows)
            pl.BlockSpec((pl.Squeezed(), M, Cin), lambda n, h: (n, h, 0)),
            # 1-row halo above (clamped at the top; skipped in-kernel there)
            pl.BlockSpec((pl.Squeezed(), W, Cin),
                         lambda n, h: (n, jnp.maximum(h * TH - 1, 0), 0)),
            # 1-row halo below (clamped at the bottom; skipped in-kernel there)
            pl.BlockSpec((pl.Squeezed(), W, Cin),
                         lambda n, h: (n, jnp.minimum((h + 1) * TH, H - 1), 0)),
            const((Cin, P)),          # w1 (folded, bf16)
            const((1, P)),            # b1
            const((3, 3, P, P)),      # w2 (folded, bf16, HWIO)
            const((1, P)),            # b2
            const((P, Cout)),         # w3 (folded, bf16)
            const((1, Cout)),         # b3
        ],
        out_specs=pl.BlockSpec((pl.Squeezed(), M, Cout), lambda n, h: (n, h, 0)),
        scratch_shapes=[pltpu.VMEM(((TH + 2) * W + 2 * _PAD, P), jnp.bfloat16)],
    )

    out2d = pl.pallas_call(
        bottleneck_kernel,
        out_shape=jax.ShapeDtypeStruct((N, H * W, Cout), out_dtype),
        grid_spec=grid_spec,
        compiler_params=pltpu.CompilerParams(
            dimension_semantics=("parallel", "parallel"),
            vmem_limit_bytes=int(vmem_limit),
        ),
    )(x2d, x2d, x2d, w1, b1, w2, b2, w3, b3)
    return out2d.reshape(N, H, W, Cout)


@functools.partial(jax.jit, static_argnames=("row_tile",))
def bottleneck_pallas(x_nchw, prep, row_tile=None):
    """PyTorch-layout entry point: (N, Cin, H, W) -> (N, Cout, H, W), f32 out."""
    x_nhwc = jnp.transpose(x_nchw, (0, 2, 3, 1))
    out = bottleneck_pallas_nhwc(x_nhwc, prep, row_tile=row_tile,
                                 out_dtype=x_nchw.dtype)
    return jnp.transpose(out, (0, 3, 1, 2))


# -----------------------------------------------------------------------------
# Parameter construction / preparation (BN folding is a one-time constant fold)
# -----------------------------------------------------------------------------
def make_params(key, inplanes, planes, expansion=4, eps=1e-5):
    cout = planes * expansion
    keys = jax.random.split(key, 6)

    def bn_scale_bias(k, c):
        kg, kb, km, kv = jax.random.split(k, 4)
        gamma = jax.random.uniform(kg, (1, c), jnp.float32, 0.5, 1.5)
        beta = 0.1 * jax.random.normal(kb, (1, c), jnp.float32)
        mean = 0.1 * jax.random.normal(km, (1, c), jnp.float32)
        var = jax.random.uniform(kv, (1, c), jnp.float32, 0.5, 1.5)
        scale = gamma / jnp.sqrt(var + eps)
        bias = beta - mean * scale
        return scale, bias

    w1 = 0.1 * jax.random.normal(keys[0], (inplanes, planes), jnp.float32)       # (Cin, P)
    w2 = 0.1 * jax.random.normal(keys[1], (3, 3, planes, planes), jnp.float32)   # HWIO
    w3 = 0.1 * jax.random.normal(keys[2], (planes, cout), jnp.float32)           # (P, Cout)
    s1, b1 = bn_scale_bias(keys[3], planes)
    s2, b2 = bn_scale_bias(keys[4], planes)
    s3, b3 = bn_scale_bias(keys[5], cout)
    return (w1, s1, b1, w2, s2, b2, w3, s3, b3)


def prepare_params(raw):
    """Fold BN scales into conv weights and cast weights to bf16."""
    w1, s1, b1, w2, s2, b2, w3, s3, b3 = raw
    w1f = (w1 * s1).astype(jnp.bfloat16)   # (Cin, P)
    w2f = (w2 * s2).astype(jnp.bfloat16)   # (3, 3, P, P) HWIO, BN2 folded over O
    w3f = (w3 * s3).astype(jnp.bfloat16)   # (P, Cout)
    return (w1f, b1.astype(jnp.float32), w2f, b2.astype(jnp.float32),
            w3f, b3.astype(jnp.float32))


# -----------------------------------------------------------------------------
# Pure-JAX reference with matching bf16 cast points (for correctness check)
# -----------------------------------------------------------------------------
def bottleneck_ref(x_nchw, prep):
    w1, b1, w2, b2, w3, b3 = prep
    x = jnp.transpose(x_nchw, (0, 2, 3, 1)).astype(jnp.bfloat16)
    y = jnp.einsum('nhwc,cp->nhwp', x, w1, preferred_element_type=jnp.float32)
    y = jnp.maximum(y + b1, 0.0).astype(jnp.bfloat16)
    y = jax.lax.conv_general_dilated(
        y, w2, window_strides=(1, 1), padding='SAME',
        dimension_numbers=('NHWC', 'HWIO', 'NHWC'),
        preferred_element_type=jnp.float32)
    y = jnp.maximum(y + b2, 0.0).astype(jnp.bfloat16)
    y = jnp.einsum('nhwp,po->nhwo', y, w3, preferred_element_type=jnp.float32)
    y = jnp.maximum(y + b3 + x.astype(jnp.float32), 0.0)
    return jnp.transpose(y, (0, 3, 1, 2)).astype(x_nchw.dtype)


# -----------------------------------------------------------------------------
if __name__ == "__main__":
    N, planes, expansion, H, W = 2, 4, 4, 16, 16
    inplanes = planes * expansion   # 16 (identity residual, downsample=None)

    key = jax.random.PRNGKey(0)
    kx_, kp = jax.random.split(key)
    x = jax.random.normal(kx_, (N, inplanes, H, W), jnp.float32)   # NCHW like PyTorch
    raw = make_params(kp, inplanes, planes, expansion)
    prep = prepare_params(raw)

    ref = bottleneck_ref(x, prep)

    # auto-picked row tile (whole image per step here -> grid (N, 1))
    out = bottleneck_pallas(x, prep)
    out = jax.block_until_ready(out)
    assert out.shape == (N, inplanes, H, W)
    assert jnp.allclose(out, ref, rtol=1e-2, atol=1e-2), "mismatch vs reference"

    # exercise the spatial row-tiling + halo path explicitly (grid (N, 2))
    out_tiled = bottleneck_pallas(x, prep, row_tile=8)
    out_tiled = jax.block_until_ready(out_tiled)
    assert jnp.allclose(out_tiled, ref, rtol=1e-2, atol=1e-2), "tiled mismatch vs reference"

    # chained-block NHWC path: bf16 in -> bf16 out
    x_nhwc = jnp.transpose(x, (0, 2, 3, 1)).astype(jnp.bfloat16)
    out_nhwc = jax.block_until_ready(bottleneck_pallas_nhwc(x_nhwc, prep))
    ref_nhwc = jnp.transpose(ref, (0, 2, 3, 1))
    assert out_nhwc.dtype == jnp.bfloat16
    assert jnp.allclose(out_nhwc.astype(jnp.float32), ref_nhwc,
                        rtol=3e-2, atol=3e-2), "NHWC bf16 mismatch vs reference"

    print("KERNEL_OK")
</pallas_src>

<mosaic_0001>
module attributes {stable_mosaic.version = 11 : i64} {
  func.func @bottleneck_kernel(%arg0: i32, %arg1: i32, %arg2: memref<1x256x16xbf16, #tpu.memory_space<vmem>>, %arg3: memref<1x16x16xbf16, #tpu.memory_space<vmem>>, %arg4: memref<1x16x16xbf16, #tpu.memory_space<vmem>>, %arg5: memref<16x4xbf16, #tpu.memory_space<vmem>>, %arg6: memref<1x4xf32, #tpu.memory_space<vmem>>, %arg7: memref<3x3x4x4xbf16, #tpu.memory_space<vmem>>, %arg8: memref<1x4xf32, #tpu.memory_space<vmem>>, %arg9: memref<4x16xbf16, #tpu.memory_space<vmem>>, %arg10: memref<1x16xf32, #tpu.memory_space<vmem>>, %arg11: memref<1x256x16xf32, #tpu.memory_space<vmem>>, %arg12: memref<320x4xbf16, #tpu.memory_space<vmem>>) attributes {dimension_semantics = [#tpu.dimension_semantics<parallel>, #tpu.dimension_semantics<parallel>], iteration_bounds = array<i64: 2, 1>, scalar_prefetch = 0 : i64, scratch_operands = 1 : i64, tpu.core_type = #tpu.core_type<tc>, window_params = [{transform_indices = @transform_0, window_bounds = array<i64: 1, 256, 16>}, {transform_indices = @transform_1, window_bounds = array<i64: 1, 16, 16>}, {transform_indices = @transform_2, window_bounds = array<i64: 1, 16, 16>}, {pipeline_mode = #tpu.pipeline_mode<synchronous>, transform_indices = @transform_3, window_bounds = array<i64: 16, 4>}, {pipeline_mode = #tpu.pipeline_mode<synchronous>, transform_indices = @transform_4, window_bounds = array<i64: 1, 4>}, {pipeline_mode = #tpu.pipeline_mode<synchronous>, transform_indices = @transform_5, window_bounds = array<i64: 3, 3, 4, 4>}, {pipeline_mode = #tpu.pipeline_mode<synchronous>, transform_indices = @transform_6, window_bounds = array<i64: 1, 4>}, {pipeline_mode = #tpu.pipeline_mode<synchronous>, transform_indices = @transform_7, window_bounds = array<i64: 4, 16>}, {pipeline_mode = #tpu.pipeline_mode<synchronous>, transform_indices = @transform_8, window_bounds = array<i64: 1, 16>}, {transform_indices = @transform_9, window_bounds = array<i64: 1, 256, 16>}]} {
    %c0 = arith.constant 0 : index
    %c0_0 = arith.constant 0 : index
    %0 = vector.load %arg5[%c0, %c0_0] : memref<16x4xbf16, #tpu.memory_space<vmem>>, vector<16x4xbf16>
    %c0_1 = arith.constant 0 : index
    %c0_2 = arith.constant 0 : index
    %1 = vector.load %arg6[%c0_1, %c0_2] : memref<1x4xf32, #tpu.memory_space<vmem>>, vector<1x4xf32>
    %c0_3 = arith.constant 0 : index
    %c0_4 = arith.constant 0 : index
    %c0_5 = arith.constant 0 : index
    %2 = vector.load %arg2[%c0_3, %c0_4, %c0_5] : memref<1x256x16xbf16, #tpu.memory_space<vmem>>, vector<1x256x16xbf16>
    %3 = vector.shape_cast %2 : vector<1x256x16xbf16> to vector<256x16xbf16>
    %cst = arith.constant dense<0.000000e+00> : vector<256x4xf32>
    %4 = tpu.matmul %3, %0, %cst {dimension_numbers = #tpu.dot_dimension_numbers<[1], [0], [0], [1], [0, 0, 1, 1], [], []>} : vector<256x16xbf16>, vector<16x4xbf16>, vector<256x4xf32> -> vector<256x4xf32>
    %5 = vector.broadcast %1 : vector<1x4xf32> to vector<256x4xf32>
    %6 = arith.addf %4, %5 : vector<256x4xf32>
    %cst_6 = arith.constant 0.000000e+00 : f32
    %7 = vector.broadcast %cst_6 : f32 to vector<256x4xf32>
    %8 = arith.maximumf %6, %7 : vector<256x4xf32>
    %9 = arith.truncf %8 : vector<256x4xf32> to vector<256x4xbf16>
    %c32 = arith.constant 32 : index
    %c0_7 = arith.constant 0 : index
    %10 = vector.load %arg12[%c32, %c0_7] : memref<320x4xbf16, #tpu.memory_space<vmem>>, vector<256x4xbf16>
    tpu.vector_store %arg12[%c32, %c0_7], %9 {strides = array<i32>} : memref<320x4xbf16, #tpu.memory_space<vmem>>, vector<256x4xbf16>,
    %c0_i32 = arith.constant 0 : i32
    %11 = arith.cmpi eq, %arg1, %c0_i32 : i32
    %12 = arith.extui %11 : i1 to i32
    %c0_i32_8 = arith.constant 0 : i32
    %13 = arith.cmpi ne, %12, %c0_i32_8 : i32
    scf.if %13 {
      %cst_94 = arith.constant 0.000000e+00 : bf16
      %138 = vector.broadcast %cst_94 : bf16 to vector<16x4xbf16>
      %c16_95 = arith.constant 16 : index
      %c0_96 = arith.constant 0 : index
      %139 = vector.load %arg12[%c16_95, %c0_96] : memref<320x4xbf16, #tpu.memory_space<vmem>>, vector<16x4xbf16>
      tpu.vector_store %arg12[%c16_95, %c0_96], %138 {strides = array<i32>} : memref<320x4xbf16, #tpu.memory_space<vmem>>, vector<16x4xbf16>,
    } else {
    }
    %c0_i32_9 = arith.constant 0 : i32
    %14 = arith.cmpi ne, %arg1, %c0_i32_9 : i32
    %15 = arith.extui %14 : i1 to i32
    %c0_i32_10 = arith.constant 0 : i32
    %16 = arith.cmpi ne, %15, %c0_i32_10 : i32
    scf.if %16 {
      %c0_94 = arith.constant 0 : index
      %c0_95 = arith.constant 0 : index
      %c0_96 = arith.constant 0 : index
      %138 = vector.load %arg3[%c0_94, %c0_95, %c0_96] : memref<1x16x16xbf16, #tpu.memory_space<vmem>>, vector<1x16x16xbf16>
      %139 = vector.shape_cast %138 : vector<1x16x16xbf16> to vector<16x16xbf16>
      %cst_97 = arith.constant dense<0.000000e+00> : vector<16x4xf32>
      %140 = tpu.matmul %139, %0, %cst_97 {dimension_numbers = #tpu.dot_dimension_numbers<[1], [0], [0], [1], [0, 0, 1, 1], [], []>} : vector<16x16xbf16>, vector<16x4xbf16>, vector<16x4xf32> -> vector<16x4xf32>
      %141 = vector.broadcast %1 : vector<1x4xf32> to vector<16x4xf32>
      %142 = arith.addf %140, %141 : vector<16x4xf32>
      %cst_98 = arith.constant 0.000000e+00 : f32
      %143 = vector.broadcast %cst_98 : f32 to vector<16x4xf32>
      %144 = arith.maximumf %142, %143 : vector<16x4xf32>
      %145 = arith.truncf %144 : vector<16x4xf32> to vector<16x4xbf16>
      %c16_99 = arith.constant 16 : index
      %c0_100 = arith.constant 0 : index
      %146 = vector.load %arg12[%c16_99, %c0_100] : memref<320x4xbf16, #tpu.memory_space<vmem>>, vector<16x4xbf16>
      tpu.vector_store %arg12[%c16_99, %c0_100], %145 {strides = array<i32>} : memref<320x4xbf16, #tpu.memory_space<vmem>>, vector<16x4xbf16>,
    } else {
    }
    %c0_i32_11 = arith.constant 0 : i32
    %17 = arith.cmpi eq, %arg1, %c0_i32_11 : i32
    %18 = arith.extui %17 : i1 to i32
    %c0_i32_12 = arith.constant 0 : i32
    %19 = arith.cmpi ne, %18, %c0_i32_12 : i32
    scf.if %19 {
      %cst_94 = arith.constant 0.000000e+00 : bf16
      %138 = vector.broadcast %cst_94 : bf16 to vector<16x4xbf16>
      %c288 = arith.constant 288 : index
      %c0_95 = arith.constant 0 : index
      %139 = vector.load %arg12[%c288, %c0_95] : memref<320x4xbf16, #tpu.memory_space<vmem>>, vector<16x4xbf16>
      tpu.vector_store %arg12[%c288, %c0_95], %138 {strides = array<i32>} : memref<320x4xbf16, #tpu.memory_space<vmem>>, vector<16x4xbf16>,
    } else {
    }
    %c0_i32_13 = arith.constant 0 : i32
    %20 = arith.cmpi ne, %arg1, %c0_i32_13 : i32
    %21 = arith.extui %20 : i1 to i32
    %c0_i32_14 = arith.constant 0 : i32
    %22 = arith.cmpi ne, %21, %c0_i32_14 : i32
    scf.if %22 {
      %c0_94 = arith.constant 0 : index
      %c0_95 = arith.constant 0 : index
      %c0_96 = arith.constant 0 : index
      %138 = vector.load %arg4[%c0_94, %c0_95, %c0_96] : memref<1x16x16xbf16, #tpu.memory_space<vmem>>, vector<1x16x16xbf16>
      %139 = vector.shape_cast %138 : vector<1x16x16xbf16> to vector<16x16xbf16>
      %cst_97 = arith.constant dense<0.000000e+00> : vector<16x4xf32>
      %140 = tpu.matmul %139, %0, %cst_97 {dimension_numbers = #tpu.dot_dimension_numbers<[1], [0], [0], [1], [0, 0, 1, 1], [], []>} : vector<16x16xbf16>, vector<16x4xbf16>, vector<16x4xf32> -> vector<16x4xf32>
      %141 = vector.broadcast %1 : vector<1x4xf32> to vector<16x4xf32>
      %142 = arith.addf %140, %141 : vector<16x4xf32>
      %cst_98 = arith.constant 0.000000e+00 : f32
      %143 = vector.broadcast %cst_98 : f32 to vector<16x4xf32>
      %144 = arith.maximumf %142, %143 : vector<16x4xf32>
      %145 = arith.truncf %144 : vector<16x4xf32> to vector<16x4xbf16>
      %c288 = arith.constant 288 : index
      %c0_99 = arith.constant 0 : index
      %146 = vector.load %arg12[%c288, %c0_99] : memref<320x4xbf16, #tpu.memory_space<vmem>>, vector<16x4xbf16>
      tpu.vector_store %arg12[%c288, %c0_99], %145 {strides = array<i32>} : memref<320x4xbf16, #tpu.memory_space<vmem>>, vector<16x4xbf16>,
    } else {
    }
    %23 = tpu.iota {dimensions = array<i32: 0>} : vector<256x1xi32>
    %c16_i32 = arith.constant 16 : i32
    %c0_i32_15 = arith.constant 0 : i32
    %24 = arith.cmpi eq, %c16_i32, %c0_i32_15 : i32
    %c1_i32 = arith.constant 1 : i32
    %25 = arith.select %24, %c1_i32, %c16_i32 : i32
    %26 = vector.broadcast %25 : i32 to vector<256x1xi32>
    %27 = arith.remsi %23, %26 : vector<256x1xi32>
    %c0_i32_16 = arith.constant 0 : i32
    %28 = vector.broadcast %c0_i32_16 : i32 to vector<256x1xi32>
    %29 = arith.cmpi ne, %27, %28 : vector<256x1xi32>
    %c0_i32_17 = arith.constant 0 : i32
    %30 = vector.broadcast %c0_i32_17 : i32 to vector<256x1xi32>
    %31 = arith.cmpi slt, %27, %30 : vector<256x1xi32>
    %c0_i32_18 = arith.constant 0 : i32
    %32 = arith.cmpi slt, %25, %c0_i32_18 : i32
    %33 = vector.broadcast %32 : i1 to vector<256x1xi1>
    %34 = vector.broadcast %33 : vector<256x1xi1> to vector<256x1xi1>
    %35 = arith.xori %31, %34 : vector<256x1xi1>
    %36 = arith.andi %35, %29 : vector<256x1xi1>
    %37 = vector.broadcast %25 : i32 to vector<256x1xi32>
    %38 = arith.addi %27, %37 : vector<256x1xi32>
    %39 = arith.select %36, %38, %27 : vector<256x1xi1>, vector<256x1xi32>
    %c0_i32_19 = arith.constant 0 : i32
    %40 = vector.broadcast %c0_i32_19 : i32 to vector<256x1xi32>
    %41 = arith.cmpi eq, %39, %40 : vector<256x1xi32>
    %c15_i32 = arith.constant 15 : i32
    %42 = vector.broadcast %c15_i32 : i32 to vector<256x1xi32>
    %43 = arith.cmpi eq, %39, %42 : vector<256x1xi32>
    %c15 = arith.constant 15 : index
    %c0_20 = arith.constant 0 : index
    %44 = vector.load %arg12[%c15, %c0_20] : memref<320x4xbf16, #tpu.memory_space<vmem>>, vector<256x4xbf16>
    %c0_i32_21 = arith.constant 0 : i32
    %45 = arith.sitofp %c0_i32_21 : i32 to bf16
    %46 = vector.shape_cast %41 : vector<256x1xi1> to vector<256x1xi1>
    %47 = vector.broadcast %46 : vector<256x1xi1> to vector<256x4xi1>
    %48 = vector.broadcast %45 : bf16 to vector<256x4xbf16>
    %49 = arith.select %47, %48, %44 : vector<256x4xi1>, vector<256x4xbf16>
    %c0_22 = arith.constant 0 : index
    %c0_23 = arith.constant 0 : index
    %c0_24 = arith.constant 0 : index
    %c0_25 = arith.constant 0 : index
    %50 = vector.load %arg7[%c0_22, %c0_23, %c0_24, %c0_25] : memref<3x3x4x4xbf16, #tpu.memory_space<vmem>>, vector<1x1x4x4xbf16>
    %51 = vector.shape_cast %50 : vector<1x1x4x4xbf16> to vector<4x4xbf16>
    %cst_26 = arith.constant dense<0.000000e+00> : vector<256x4xf32>
    %52 = tpu.matmul %49, %51, %cst_26 {dimension_numbers = #tpu.dot_dimension_numbers<[1], [0], [0], [1], [0, 0, 1, 1], [], []>} : vector<256x4xbf16>, vector<4x4xbf16>, vector<256x4xf32> -> vector<256x4xf32>
    %c16 = arith.constant 16 : index
    %c0_27 = arith.constant 0 : index
    %53 = vector.load %arg12[%c16, %c0_27] : memref<320x4xbf16, #tpu.memory_space<vmem>>, vector<256x4xbf16>
    %c0_28 = arith.constant 0 : index
    %c1 = arith.constant 1 : index
    %c0_29 = arith.constant 0 : index
    %c0_30 = arith.constant 0 : index
    %54 = vector.load %arg7[%c0_28, %c1, %c0_29, %c0_30] : memref<3x3x4x4xbf16, #tpu.memory_space<vmem>>, vector<1x1x4x4xbf16>
    %55 = vector.shape_cast %54 : vector<1x1x4x4xbf16> to vector<4x4xbf16>
    %cst_31 = arith.constant dense<0.000000e+00> : vector<256x4xf32>
    %56 = tpu.matmul %53, %55, %cst_31 {dimension_numbers = #tpu.dot_dimension_numbers<[1], [0], [0], [1], [0, 0, 1, 1], [], []>} : vector<256x4xbf16>, vector<4x4xbf16>, vector<256x4xf32> -> vector<256x4xf32>
    %57 = arith.addf %52, %56 : vector<256x4xf32>
    %c17 = arith.constant 17 : index
    %c0_32 = arith.constant 0 : index
    %58 = vector.load %arg12[%c17, %c0_32] : memref<320x4xbf16, #tpu.memory_space<vmem>>, vector<256x4xbf16>
    %c0_i32_33 = arith.constant 0 : i32
    %59 = arith.sitofp %c0_i32_33 : i32 to bf16
    %60 = vector.shape_cast %43 : vector<256x1xi1> to vector<256x1xi1>
    %61 = vector.broadcast %60 : vector<256x1xi1> to vector<256x4xi1>
    %62 = vector.broadcast %59 : bf16 to vector<256x4xbf16>
    %63 = arith.select %61, %62, %58 : vector<256x4xi1>, vector<256x4xbf16>
    %c0_34 = arith.constant 0 : index
    %c2 = arith.constant 2 : index
    %c0_35 = arith.constant 0 : index
    %c0_36 = arith.constant 0 : index
    %64 = vector.load %arg7[%c0_34, %c2, %c0_35, %c0_36] : memref<3x3x4x4xbf16, #tpu.memory_space<vmem>>, vector<1x1x4x4xbf16>
    %65 = vector.shape_cast %64 : vector<1x1x4x4xbf16> to vector<4x4xbf16>
    %cst_37 = arith.constant dense<0.000000e+00> : vector<256x4xf32>
    %66 = tpu.matmul %63, %65, %cst_37 {dimension_numbers = #tpu.dot_dimension_numbers<[1], [0], [0], [1], [0, 0, 1, 1], [], []>} : vector<256x4xbf16>, vector<4x4xbf16>, vector<256x4xf32> -> vector<256x4xf32>
    %67 = arith.addf %57, %66 : vector<256x4xf32>
    %c31 = arith.constant 31 : index
    %c0_38 = arith.constant 0 : index
    %68 = vector.load %arg12[%c31, %c0_38] : memref<320x4xbf16, #tpu.memory_space<vmem>>, vector<256x4xbf16>
    %c0_i32_39 = arith.constant 0 : i32
    %69 = arith.sitofp %c0_i32_39 : i32 to bf16
    %70 = vector.shape_cast %41 : vector<256x1xi1> to vector<256x1xi1>
    %71 = vector.broadcast %70 : vector<256x1xi1> to vector<256x4xi1>
    %72 = vector.broadcast %69 : bf16 to vector<256x4xbf16>
    %73 = arith.select %71, %72, %68 : vector<256x4xi1>, vector<256x4xbf16>
    %c1_40 = arith.constant 1 : index
    %c0_41 = arith.constant 0 : index
    %c0_42 = arith.constant 0 : index
    %c0_43 = arith.constant 0 : index
    %74 = vector.load %arg7[%c1_40, %c0_41, %c0_42, %c0_43] : memref<3x3x4x4xbf16, #tpu.memory_space<vmem>>, vector<1x1x4x4xbf16>
    %75 = vector.shape_cast %74 : vector<1x1x4x4xbf16> to vector<4x4xbf16>
    %cst_44 = arith.constant dense<0.000000e+00> : vector<256x4xf32>
    %76 = tpu.matmul %73, %75, %cst_44 {dimension_numbers = #tpu.dot_dimension_numbers<[1], [0], [0], [1], [0, 0, 1, 1], [], []>} : vector<256x4xbf16>, vector<4x4xbf16>, vector<256x4xf32> -> vector<256x4xf32>
    %77 = arith.addf %67, %76 : vector<256x4xf32>
    %c32_45 = arith.constant 32 : index
    %c0_46 = arith.constant 0 : index
    %78 = vector.load %arg12[%c32_45, %c0_46] : memref<320x4xbf16, #tpu.memory_space<vmem>>, vector<256x4xbf16>
    %c1_47 = arith.constant 1 : index
    %c1_48 = arith.constant 1 : index
    %c0_49 = arith.constant 0 : index
    %c0_50 = arith.constant 0 : index
    %79 = vector.load %arg7[%c1_47, %c1_48, %c0_49, %c0_50] : memref<3x3x4x4xbf16, #tpu.memory_space<vmem>>, vector<1x1x4x4xbf16>
    %80 = vector.shape_cast %79 : vector<1x1x4x4xbf16> to vector<4x4xbf16>
    %cst_51 = arith.constant dense<0.000000e+00> : vector<256x4xf32>
    %81 = tpu.matmul %78, %80, %cst_51 {dimension_numbers = #tpu.dot_dimension_numbers<[1], [0], [0], [1], [0, 0, 1, 1], [], []>} : vector<256x4xbf16>, vector<4x4xbf16>, vector<256x4xf32> -> vector<256x4xf32>
    %82 = arith.addf %77, %81 : vector<256x4xf32>
    %c33 = arith.constant 33 : index
    %c0_52 = arith.constant 0 : index
    %83 = vector.load %arg12[%c33, %c0_52] : memref<320x4xbf16, #tpu.memory_space<vmem>>, vector<256x4xbf16>
    %c0_i32_53 = arith.constant 0 : i32
    %84 = arith.sitofp %c0_i32_53 : i32 to bf16
    %85 = vector.shape_cast %43 : vector<256x1xi1> to vector<256x1xi1>
    %86 = vector.broadcast %85 : vector<256x1xi1> to vector<256x4xi1>
    %87 = vector.broadcast %84 : bf16 to vector<256x4xbf16>
    %88 = arith.select %86, %87, %83 : vector<256x4xi1>, vector<256x4xbf16>
    %c1_54 = arith.constant 1 : index
    %c2_55 = arith.constant 2 : index
    %c0_56 = arith.constant 0 : index
    %c0_57 = arith.constant 0 : index
    %89 = vector.load %arg7[%c1_54, %c2_55, %c0_56, %c0_57] : memref<3x3x4x4xbf16, #tpu.memory_space<vmem>>, vector<1x1x4x4xbf16>
    %90 = vector.shape_cast %89 : vector<1x1x4x4xbf16> to vector<4x4xbf16>
    %cst_58 = arith.constant dense<0.000000e+00> : vector<256x4xf32>
    %91 = tpu.matmul %88, %90, %cst_58 {dimension_numbers = #tpu.dot_dimension_numbers<[1], [0], [0], [1], [0, 0, 1, 1], [], []>} : vector<256x4xbf16>, vector<4x4xbf16>, vector<256x4xf32> -> vector<256x4xf32>
    %92 = arith.addf %82, %91 : vector<256x4xf32>
    %c47 = arith.constant 47 : index
    %c0_59 = arith.constant 0 : index
    %93 = vector.load %arg12[%c47, %c0_59] : memref<320x4xbf16, #tpu.memory_space<vmem>>, vector<256x4xbf16>
    %c0_i32_60 = arith.constant 0 : i32
    %94 = arith.sitofp %c0_i32_60 : i32 to bf16
    %95 = vector.shape_cast %41 : vector<256x1xi1> to vector<256x1xi1>
    %96 = vector.broadcast %95 : vector<256x1xi1> to vector<256x4xi1>
    %97 = vector.broadcast %94 : bf16 to vector<256x4xbf16>
    %98 = arith.select %96, %97, %93 : vector<256x4xi1>, vector<256x4xbf16>
    %c2_61 = arith.constant 2 : index
    %c0_62 = arith.constant 0 : index
    %c0_63 = arith.constant 0 : index
    %c0_64 = arith.constant 0 : index
    %99 = vector.load %arg7[%c2_61, %c0_62, %c0_63, %c0_64] : memref<3x3x4x4xbf16, #tpu.memory_space<vmem>>, vector<1x1x4x4xbf16>
    %100 = vector.shape_cast %99 : vector<1x1x4x4xbf16> to vector<4x4xbf16>
    %cst_65 = arith.constant dense<0.000000e+00> : vector<256x4xf32>
    %101 = tpu.matmul %98, %100, %cst_65 {dimension_numbers = #tpu.dot_dimension_numbers<[1], [0], [0], [1], [0, 0, 1, 1], [], []>} : vector<256x4xbf16>, vector<4x4xbf16>, vector<256x4xf32> -> vector<256x4xf32>
    %102 = arith.addf %92, %101 : vector<256x4xf32>
    %c48 = arith.constant 48 : index
    %c0_66 = arith.constant 0 : index
    %103 = vector.load %arg12[%c48, %c0_66] : memref<320x4xbf16, #tpu.memory_space<vmem>>, vector<256x4xbf16>
    %c2_67 = arith.constant 2 : index
    %c1_68 = arith.constant 1 : index
    %c0_69 = arith.constant 0 : index
    %c0_70 = arith.constant 0 : index
    %104 = vector.load %arg7[%c2_67, %c1_68, %c0_69, %c0_70] : memref<3x3x4x4xbf16, #tpu.memory_space<vmem>>, vector<1x1x4x4xbf16>
    %105 = vector.shape_cast %104 : vector<1x1x4x4xbf16> to vector<4x4xbf16>
    %cst_71 = arith.constant dense<0.000000e+00> : vector<256x4xf32>
    %106 = tpu.matmul %103, %105, %cst_71 {dimension_numbers = #tpu.dot_dimension_numbers<[1], [0], [0], [1], [0, 0, 1, 1], [], []>} : vector<256x4xbf16>, vector<4x4xbf16>, vector<256x4xf32> -> vector<256x4xf32>
    %107 = arith.addf %102, %106 : vector<256x4xf32>
    %c49 = arith.constant 49 : index
    %c0_72 = arith.constant 0 : index
    %108 = vector.load %arg12[%c49, %c0_72] : memref<320x4xbf16, #tpu.memory_space<vmem>>, vector<256x4xbf16>
    %c0_i32_73 = arith.constant 0 : i32
    %109 = arith.sitofp %c0_i32_73 : i32 to bf16
    %110 = vector.shape_cast %43 : vector<256x1xi1> to vector<256x1xi1>
    %111 = vector.broadcast %110 : vector<256x1xi1> to vector<256x4xi1>
    %112 = vector.broadcast %109 : bf16 to vector<256x4xbf16>
    %113 = arith.select %111, %112, %108 : vector<256x4xi1>, vector<256x4xbf16>
    %c2_74 = arith.constant 2 : index
    %c2_75 = arith.constant 2 : index
    %c0_76 = arith.constant 0 : index
    %c0_77 = arith.constant 0 : index
    %114 = vector.load %arg7[%c2_74, %c2_75, %c0_76, %c0_77] : memref<3x3x4x4xbf16, #tpu.memory_space<vmem>>, vector<1x1x4x4xbf16>
    %115 = vector.shape_cast %114 : vector<1x1x4x4xbf16> to vector<4x4xbf16>
    %cst_78 = arith.constant dense<0.000000e+00> : vector<256x4xf32>
    %116 = tpu.matmul %113, %115, %cst_78 {dimension_numbers = #tpu.dot_dimension_numbers<[1], [0], [0], [1], [0, 0, 1, 1], [], []>} : vector<256x4xbf16>, vector<4x4xbf16>, vector<256x4xf32> -> vector<256x4xf32>
    %117 = arith.addf %107, %116 : vector<256x4xf32>
    %c0_79 = arith.constant 0 : index
    %c0_80 = arith.constant 0 : index
    %118 = vector.load %arg8[%c0_79, %c0_80] : memref<1x4xf32, #tpu.memory_space<vmem>>, vector<1x4xf32>
    %119 = vector.broadcast %118 : vector<1x4xf32> to vector<256x4xf32>
    %120 = arith.addf %117, %119 : vector<256x4xf32>
    %cst_81 = arith.constant 0.000000e+00 : f32
    %121 = vector.broadcast %cst_81 : f32 to vector<256x4xf32>
    %122 = arith.maximumf %120, %121 : vector<256x4xf32>
    %123 = arith.truncf %122 : vector<256x4xf32> to vector<256x4xbf16>
    %c0_82 = arith.constant 0 : index
    %c0_83 = arith.constant 0 : index
    %124 = vector.load %arg9[%c0_82, %c0_83] : memref<4x16xbf16, #tpu.memory_space<vmem>>, vector<4x16xbf16>
    %cst_84 = arith.constant dense<0.000000e+00> : vector<256x16xf32>
    %125 = tpu.matmul %123, %124, %cst_84 {dimension_numbers = #tpu.dot_dimension_numbers<[1], [0], [0], [1], [0, 0, 1, 1], [], []>} : vector<256x4xbf16>, vector<4x16xbf16>, vector<256x16xf32> -> vector<256x16xf32>
    %c0_85 = arith.constant 0 : index
    %c0_86 = arith.constant 0 : index
    %126 = vector.load %arg10[%c0_85, %c0_86] : memref<1x16xf32, #tpu.memory_space<vmem>>, vector<1x16xf32>
    %127 = vector.broadcast %126 : vector<1x16xf32> to vector<256x16xf32>
    %128 = arith.addf %125, %127 : vector<256x16xf32>
    %c0_87 = arith.constant 0 : index
    %c0_88 = arith.constant 0 : index
    %c0_89 = arith.constant 0 : index
    %129 = vector.load %arg2[%c0_87, %c0_88, %c0_89] : memref<1x256x16xbf16, #tpu.memory_space<vmem>>, vector<1x256x16xbf16>
    %130 = vector.shape_cast %129 : vector<1x256x16xbf16> to vector<256x16xbf16>
    %131 = arith.extf %130 : vector<256x16xbf16> to vector<256x16xf32>
    %132 = arith.addf %128, %131 : vector<256x16xf32>
    %cst_90 = arith.constant 0.000000e+00 : f32
    %133 = vector.broadcast %cst_90 : f32 to vector<256x16xf32>
    %134 = arith.maximumf %132, %133 : vector<256x16xf32>
    %c0_91 = arith.constant 0 : index
    %c0_92 = arith.constant 0 : index
    %c0_93 = arith.constant 0 : index
    %135 = vector.load %arg11[%c0_91, %c0_92, %c0_93] : memref<1x256x16xf32, #tpu.memory_space<vmem>>, vector<1x256x16xf32>
    %136 = vector.shape_cast %135 : vector<1x256x16xf32> to vector<256x16xf32>
    %137 = vector.shape_cast %134 : vector<256x16xf32> to vector<1x256x16xf32>
    tpu.vector_store %arg11[%c0_91, %c0_92, %c0_93], %137 {strides = array<i32>} : memref<1x256x16xf32, #tpu.memory_space<vmem>>, vector<1x256x16xf32>,
    return
  }
  func.func @transform_0(%arg0: i32, %arg1: i32) -> (i32, i32, i32) {
    %c0_i32 = arith.constant 0 : i32
    %c0_i32_0 = arith.constant 0 : i32
    return %arg0, %arg1, %c0_i32 : i32, i32, i32
  }
  func.func @transform_1(%arg0: i32, %arg1: i32) -> (i32, i32, i32) {
    %c16_i32 = arith.constant 16 : i32
    %0 = arith.muli %arg1, %c16_i32 : i32
    %c1_i32 = arith.constant 1 : i32
    %1 = arith.subi %0, %c1_i32 : i32
    %c0_i32 = arith.constant 0 : i32
    %2 = arith.maxsi %1, %c0_i32 : i32
    %c0_i32_0 = arith.constant 0 : i32
    %c0_i32_1 = arith.constant 0 : i32
    return %arg0, %2, %c0_i32_0 : i32, i32, i32
  }
  func.func @transform_2(%arg0: i32, %arg1: i32) -> (i32, i32, i32) {
    %c1_i32 = arith.constant 1 : i32
    %0 = arith.addi %arg1, %c1_i32 : i32
    %c16_i32 = arith.constant 16 : i32
    %1 = arith.muli %0, %c16_i32 : i32
    %c15_i32 = arith.constant 15 : i32
    %2 = arith.minsi %1, %c15_i32 : i32
    %c0_i32 = arith.constant 0 : i32
    %c0_i32_0 = arith.constant 0 : i32
    return %arg0, %2, %c0_i32 : i32, i32, i32
  }
  func.func @transform_3(%arg0: i32, %arg1: i32) -> (i32, i32) {
    %c0_i32 = arith.constant 0 : i32
    %c0_i32_0 = arith.constant 0 : i32
    %c0_i32_1 = arith.constant 0 : i32
    return %c0_i32, %c0_i32_0 : i32, i32
  }
  func.func @transform_4(%arg0: i32, %arg1: i32) -> (i32, i32) {
    %c0_i32 = arith.constant 0 : i32
    %c0_i32_0 = arith.constant 0 : i32
    %c0_i32_1 = arith.constant 0 : i32
    return %c0_i32, %c0_i32_0 : i32, i32
  }
  func.func @transform_5(%arg0: i32, %arg1: i32) -> (i32, i32, i32, i32) {
    %c0_i32 = arith.constant 0 : i32
    %c0_i32_0 = arith.constant 0 : i32
    %c0_i32_1 = arith.constant 0 : i32
    %c0_i32_2 = arith.constant 0 : i32
    %c0_i32_3 = arith.constant 0 : i32
    return %c0_i32, %c0_i32_0, %c0_i32_1, %c0_i32_2 : i32, i32, i32, i32
  }
  func.func @transform_6(%arg0: i32, %arg1: i32) -> (i32, i32) {
    %c0_i32 = arith.constant 0 : i32
    %c0_i32_0 = arith.constant 0 : i32
    %c0_i32_1 = arith.constant 0 : i32
    return %c0_i32, %c0_i32_0 : i32, i32
  }
  func.func @transform_7(%arg0: i32, %arg1: i32) -> (i32, i32) {
    %c0_i32 = arith.constant 0 : i32
    %c0_i32_0 = arith.constant 0 : i32
    %c0_i32_1 = arith.constant 0 : i32
    return %c0_i32, %c0_i32_0 : i32, i32
  }
  func.func @transform_8(%arg0: i32, %arg1: i32) -> (i32, i32) {
    %c0_i32 = arith.constant 0 : i32
    %c0_i32_0 = arith.constant 0 : i32
    %c0_i32_1 = arith.constant 0 : i32
    return %c0_i32, %c0_i32_0 : i32, i32
  }
  func.func @transform_9(%arg0: i32, %arg1: i32) -> (i32, i32, i32) {
    %c0_i32 = arith.constant 0 : i32
    %c0_i32_0 = arith.constant 0 : i32
    return %arg0, %arg1, %c0_i32 : i32, i32, i32
  }
}

</mosaic_0001>

<llo_original>
// kernel: bottleneck_pallas.1
$region0: #{bottleneck_pallas.1}
  #allocation0 [shape = 'u32[]', space=smem, size = 0x4, offset = 0x4, fixed_abs, tag = 'smem constant byte address 0x4 - core index']
  #allocation1 [shape = 'u32[144,128]{1,0:T(1,128)}', space=vmem, size = 0x12000, scoped, tag = 'internal scratch']
  #allocation2 [shape = 'bf16[320,4]{1,0:T(16,128)(2,1)}', space=vmem, size = 0x14000, scoped, tag = 'scratch operand']
  %s0 = inlined_call_operand.vmem [shape: bf16[2,256,16], index: 0, kind: input, shape index: {}, may-alias: {0,1,2}]
  %s1 = inlined_call_operand.vmem [shape: bf16[2,256,16], index: 1, kind: input, shape index: {}, may-alias: {0,1,2}]
  %s2 = inlined_call_operand.vmem [shape: bf16[2,256,16], index: 2, kind: input, shape index: {}, may-alias: {0,1,2}]
  %s3 = inlined_call_operand.vmem [shape: bf16[16,4], index: 3, kind: input, shape index: {}]
  %s4 = inlined_call_operand.vmem [shape: f32[1,4], index: 4, kind: input, shape index: {}]
  %s5 = inlined_call_operand.vmem [shape: bf16[3,3,4,4], index: 5, kind: input, shape index: {}]
  %s6 = inlined_call_operand.vmem [shape: f32[1,4], index: 6, kind: input, shape index: {}]
  %s7 = inlined_call_operand.vmem [shape: bf16[4,16], index: 7, kind: input, shape index: {}]
  %s8 = inlined_call_operand.vmem [shape: f32[1,16], index: 8, kind: input, shape index: {}]
  %s9 = inlined_call_operand.vmem [shape: f32[2,256,16], index: 9, kind: output, shape index: {}]
  %s10 = sld [smem:[#allocation0]]
  $region85: #{bottleneck_pallas.1} parent=0
    _
  %s12 = ssub.s32 1, %s10
  %s13 = scalar_select 0, %s12, %s10
  loop: start=0, step=1, limit=4
  $region2: #{bottleneck_pallas.1} parent=0 // loop_pre_header
    _
  $region3: #{bottleneck_pallas.1} parent=0 // loop_header
    %s15 = sphi 0, %s19
    %p16 = scmp.ge.s32.totalorder %s15, 4
    %s22 = sphi 0, %s34
    %s23 = sphi 0, %s30
    %s24 = sphi 0, %s22
    %s25 = sphi 0, %s23
    %s26 = sphi 0, %s24
    %s27 = sphi 0, %s25
    %s39 = sphi 0, %s41
    %s42 = sphi 0, %s39
    %s43 = sphi 0, %s42
    %s59 = sphi 0, %s43
    %s75 = sphi 0, %s77
    %s78 = sphi 0, %s75
    %s79 = sphi 0, %s78
    %s95 = sphi 0, %s79
    %s111 = sphi 0, %s113
    %s114 = sphi 0, %s111
    %s115 = sphi 0, %s114
    %s131 = sphi 0, %s115
    %s135 = sphi 0, %s135
    %s137 = sphi 0, %s135
    %s138 = sphi 0, %s137
    %s152 = sphi 0, %s138
    %s156 = sphi 0, %s156
    %s158 = sphi 0, %s156
    %s159 = sphi 0, %s158
    %s173 = sphi 0, %s159
    %s177 = sphi 0, %s177
    %s179 = sphi 0, %s177
    %s180 = sphi 0, %s179
    %s194 = sphi 0, %s180
    %s198 = sphi 0, %s198
    %s200 = sphi 0, %s198
    %s201 = sphi 0, %s200
    %s215 = sphi 0, %s201
    %s219 = sphi 0, %s219
    %s221 = sphi 0, %s219
    %s222 = sphi 0, %s221
    %s236 = sphi 0, %s222
    %s240 = sphi 0, %s240
    %s242 = sphi 0, %s240
    %s243 = sphi 0, %s242
    %s257 = sphi 0, %s243
    %s265 = sphi 0, %s267
    %s268 = sphi 0, %s265
    %s269 = sphi 0, %s268
    %s285 = sphi 0, %s269
  $region4: #{bottleneck_pallas.1} parent=0 // loop_header_branch
    %18 = sbr.rel (%p16) target = $region8
  $region5: #{bottleneck_pallas.1} parent=0 // loop_body
    %s20 = ssub.s32 %s15, 1
    %s21 = ssub.s32 %s15, 2
    %s28 = sadd.s32 1, %s23
    %p29 = scmp.ge.s32.totalorder %s28, 1
    %s30 = scalar_select %p29, 0, %s28
    %s31 = sadd.s32 1, %s22
    %s32 = scalar_select %p29, %s31, %s22
    %p33 = scmp.ge.s32.totalorder %s32, 2
    %s34 = scalar_select %p33, 0, %s32
    %s35 = ssub.s32 %s22, %s34
    %s36 = ssub.s32 %s23, %s30
    %s37 = sor.u32 %s35, %s36
    %p38 = scmp.eq.s32.totalorder %s37, 0
    %s40 = sadd.s32 %s39, 1
    %s41 = scalar_select %p38, %s39, %s40
    %p44 = pneg %p38
    %p45 = scmp.eq.s32.totalorder %s15, 1
    %p46 = por %p44, %p45
    %p47 = scmp.ne.s32.totalorder %s39, %s42
    %p48 = scmp.eq.s32.totalorder %s15, 0
    %p49 = por %p47, %p48
    %p50 = scmp.ne.s32.totalorder %s39, %s42
    %p51 = scmp.eq.s32.totalorder %s20, 1
    %p52 = por %p50, %p51
    %p53 = scmp.ne.s32.totalorder %s42, %s43
    %p54 = scmp.eq.s32.totalorder %s20, 0
    %p55 = por %p53, %p54
    %p56 = scmp.ne.s32.totalorder %s42, %s43
    %p57 = scmp.eq.s32.totalorder %s21, 1
    %p58 = por %p56, %p57
    %p60 = scmp.ne.s32.totalorder %s43, %s59
    %p61 = scmp.eq.s32.totalorder %s21, 0
    %p62 = por %p60, %p61
    %s63 = smul.u32 %s23, 16
    %s64 = ssub.s32 %s63, 1
    %p65 = scmp.gt.s32.totalorder %s64, 0
    %s66 = scalar_select %p65, %s64, 0
    %s67 = smul.u32 %s30, 16
    %s68 = ssub.s32 %s67, 1
    %p69 = scmp.gt.s32.totalorder %s68, 0
    %s70 = scalar_select %p69, %s68, 0
    %s71 = ssub.s32 %s22, %s34
    %s72 = ssub.s32 %s66, %s70
    %s73 = sor.u32 %s71, %s72
    %p74 = scmp.eq.s32.totalorder %s73, 0
    %s76 = sadd.s32 %s75, 1
    %s77 = scalar_select %p74, %s75, %s76
    %p80 = pneg %p74
    %p81 = scmp.eq.s32.totalorder %s15, 1
    %p82 = por %p80, %p81
    %p83 = scmp.ne.s32.totalorder %s75, %s78
    %p84 = scmp.eq.s32.totalorder %s15, 0
    %p85 = por %p83, %p84
    %p86 = scmp.ne.s32.totalorder %s75, %s78
    %p87 = scmp.eq.s32.totalorder %s20, 1
    %p88 = por %p86, %p87
    %p89 = scmp.ne.s32.totalorder %s78, %s79
    %p90 = scmp.eq.s32.totalorder %s20, 0
    %p91 = por %p89, %p90
    %p92 = scmp.ne.s32.totalorder %s78, %s79
    %p93 = scmp.eq.s32.totalorder %s21, 1
    %p94 = por %p92, %p93
    %p96 = scmp.ne.s32.totalorder %s79, %s95
    %p97 = scmp.eq.s32.totalorder %s21, 0
    %p98 = por %p96, %p97
    %s99 = sadd.s32 %s23, 1
    %s100 = smul.u32 %s99, 16
    %p101 = scmp.lt.s32.totalorder %s100, 15
    %s102 = scalar_select %p101, %s100, 15
    %s103 = sadd.s32 %s30, 1
    %s104 = smul.u32 %s103, 16
    %p105 = scmp.lt.s32.totalorder %s104, 15
    %s106 = scalar_select %p105, %s104, 15
    %s107 = ssub.s32 %s22, %s34
    %s108 = ssub.s32 %s102, %s106
    %s109 = sor.u32 %s107, %s108
    %p110 = scmp.eq.s32.totalorder %s109, 0
    %s112 = sadd.s32 %s111, 1
    %s113 = scalar_select %p110, %s111, %s112
    %p116 = pneg %p110
    %p117 = scmp.eq.s32.totalorder %s15, 1
    %p118 = por %p116, %p117
    %p119 = scmp.ne.s32.totalorder %s111, %s114
    %p120 = scmp.eq.s32.totalorder %s15, 0
    %p121 = por %p119, %p120
    %p122 = scmp.ne.s32.totalorder %s111, %s114
    %p123 = scmp.eq.s32.totalorder %s20, 1
    %p124 = por %p122, %p123
    %p125 = scmp.ne.s32.totalorder %s114, %s115
    %p126 = scmp.eq.s32.totalorder %s20, 0
    %p127 = por %p125, %p126
    %p128 = scmp.ne.s32.totalorder %s114, %s115
    %p129 = scmp.eq.s32.totalorder %s21, 1
    %p130 = por %p128, %p129
    %p132 = scmp.ne.s32.totalorder %s115, %s131
    %p133 = scmp.eq.s32.totalorder %s21, 0
    %p134 = por %p132, %p133
    %s136 = sadd.s32 %s135, 1
    %p139 = scmp.eq.s32.totalorder %s15, 1
    %p140 = scmp.ne.s32.totalorder %s135, %s137
    %p141 = scmp.eq.s32.totalorder %s15, 0
    %p142 = por %p140, %p141
    %p143 = scmp.ne.s32.totalorder %s135, %s137
    %p144 = scmp.eq.s32.totalorder %s20, 1
    %p145 = por %p143, %p144
    %p146 = scmp.ne.s32.totalorder %s137, %s138
    %p147 = scmp.eq.s32.totalorder %s20, 0
    %p148 = por %p146, %p147
    %p149 = scmp.ne.s32.totalorder %s137, %s138
    %p150 = scmp.eq.s32.totalorder %s21, 1
    %p151 = por %p149, %p150
    %p153 = scmp.ne.s32.totalorder %s138, %s152
    %p154 = scmp.eq.s32.totalorder %s21, 0
    %p155 = por %p153, %p154
    %s157 = sadd.s32 %s156, 1
    %p160 = scmp.eq.s32.totalorder %s15, 1
    %p161 = scmp.ne.s32.totalorder %s156, %s158
    %p162 = scmp.eq.s32.totalorder %s15, 0
    %p163 = por %p161, %p162
    %p164 = scmp.ne.s32.totalorder %s156, %s158
    %p165 = scmp.eq.s32.totalorder %s20, 1
    %p166 = por %p164, %p165
    %p167 = scmp.ne.s32.totalorder %s158, %s159
    %p168 = scmp.eq.s32.totalorder %s20, 0
    %p169 = por %p167, %p168
    %p170 = scmp.ne.s32.totalorder %s158, %s159
    %p171 = scmp.eq.s32.totalorder %s21, 1
    %p172 = por %p170, %p171
    %p174 = scmp.ne.s32.totalorder %s159, %s173
    %p175 = scmp.eq.s32.totalorder %s21, 0
    %p176 = por %p174, %p175
    %s178 = sadd.s32 %s177, 1
    %p181 = scmp.eq.s32.totalorder %s15, 1
    %p182 = scmp.ne.s32.totalorder %s177, %s179
    %p183 = scmp.eq.s32.totalorder %s15, 0
    %p184 = por %p182, %p183
    %p185 = scmp.ne.s32.totalorder %s177, %s179
    %p186 = scmp.eq.s32.totalorder %s20, 1
    %p187 = por %p185, %p186
    %p188 = scmp.ne.s32.totalorder %s179, %s180
    %p189 = scmp.eq.s32.totalorder %s20, 0
    %p190 = por %p188, %p189
    %p191 = scmp.ne.s32.totalorder %s179, %s180
    %p192 = scmp.eq.s32.totalorder %s21, 1
    %p193 = por %p191, %p192
    %p195 = scmp.ne.s32.totalorder %s180, %s194
    %p196 = scmp.eq.s32.totalorder %s21, 0
    %p197 = por %p195, %p196
    %s199 = sadd.s32 %s198, 1
    %p202 = scmp.eq.s32.totalorder %s15, 1
    %p203 = scmp.ne.s32.totalorder %s198, %s200
    %p204 = scmp.eq.s32.totalorder %s15, 0
    %p205 = por %p203, %p204
    %p206 = scmp.ne.s32.totalorder %s198, %s200
    %p207 = scmp.eq.s32.totalorder %s20, 1
    %p208 = por %p206, %p207
    %p209 = scmp.ne.s32.totalorder %s200, %s201
    %p210 = scmp.eq.s32.totalorder %s20, 0
    %p211 = por %p209, %p210
    %p212 = scmp.ne.s32.totalorder %s200, %s201
    %p213 = scmp.eq.s32.totalorder %s21, 1
    %p214 = por %p212, %p213
    %p216 = scmp.ne.s32.totalorder %s201, %s215
    %p217 = scmp.eq.s32.totalorder %s21, 0
    %p218 = por %p216, %p217
    %s220 = sadd.s32 %s219, 1
    %p223 = scmp.eq.s32.totalorder %s15, 1
    %p224 = scmp.ne.s32.totalorder %s219, %s221
    %p225 = scmp.eq.s32.totalorder %s15, 0
    %p226 = por %p224, %p225
    %p227 = scmp.ne.s32.totalorder %s219, %s221
    %p228 = scmp.eq.s32.totalorder %s20, 1
    %p229 = por %p227, %p228
    %p230 = scmp.ne.s32.totalorder %s221, %s222
    %p231 = scmp.eq.s32.totalorder %s20, 0
    %p232 = por %p230, %p231
    %p233 = scmp.ne.s32.totalorder %s221, %s222
    %p234 = scmp.eq.s32.totalorder %s21, 1
    %p235 = por %p233, %p234
    %p237 = scmp.ne.s32.totalorder %s222, %s236
    %p238 = scmp.eq.s32.totalorder %s21, 0
    %p239 = por %p237, %p238
    %s241 = sadd.s32 %s240, 1
    %p244 = scmp.eq.s32.totalorder %s15, 1
    %p245 = scmp.ne.s32.totalorder %s240, %s242
    %p246 = scmp.eq.s32.totalorder %s15, 0
    %p247 = por %p245, %p246
    %p248 = scmp.ne.s32.totalorder %s240, %s242
    %p249 = scmp.eq.s32.totalorder %s20, 1
    %p250 = por %p248, %p249
    %p251 = scmp.ne.s32.totalorder %s242, %s243
    %p252 = scmp.eq.s32.totalorder %s20, 0
    %p253 = por %p251, %p252
    %p254 = scmp.ne.s32.totalorder %s242, %s243
    %p255 = scmp.eq.s32.totalorder %s21, 1
    %p256 = por %p254, %p255
    %p258 = scmp.ne.s32.totalorder %s243, %s257
    %p259 = scmp.eq.s32.totalorder %s21, 0
    %p260 = por %p258, %p259
    %s261 = ssub.s32 %s22, %s34
    %s262 = ssub.s32 %s23, %s30
    %s263 = sor.u32 %s261, %s262
    %p264 = scmp.eq.s32.totalorder %s263, 0
    %s266 = sadd.s32 %s265, 1
    %s267 = scalar_select %p264, %s265, %s266
    %p270 = pneg %p264
    %p271 = scmp.eq.s32.totalorder %s15, 1
    %p272 = por %p270, %p271
    %p273 = scmp.ne.s32.totalorder %s265, %s268
    %p274 = scmp.eq.s32.totalorder %s15, 0
    %p275 = por %p273, %p274
    %p276 = scmp.ne.s32.totalorder %s265, %s268
    %p277 = scmp.eq.s32.totalorder %s20, 1
    %p278 = por %p276, %p277
    %p279 = scmp.ne.s32.totalorder %s268, %s269
    %p280 = scmp.eq.s32.totalorder %s20, 0
    %p281 = por %p279, %p280
    %p282 = scmp.ne.s32.totalorder %s268, %s269
    %p283 = scmp.eq.s32.totalorder %s21, 1
    %p284 = por %p282, %p283
    %p286 = scmp.ne.s32.totalorder %s269, %s285
    %p287 = scmp.eq.s32.totalorder %s21, 0
    %p288 = por %p286, %p287
    %p289 = scmp.le.s32.totalorder 1, %s15
    %p290 = scmp.lt.s32.totalorder %s15, 3
    %p291 = pnand %p289, %p290
    %p292 = pneg %p291
    // Predicated region
    $region9: #{bottleneck_pallas.1} parent=5 // pred_check
      _
    $region10: #{bottleneck_pallas.1} parent=5 // pred_check_branch
      %294 = sbr.rel (%p291) target = $region12
    $region11: #{bottleneck_pallas.1} parent=5 // pred_region
      %s295 = ssub.s32 %s15, 1
      // Predicated region
      $region13: #{bottleneck_pallas.1} parent=11 // pred_check
        %p296 = pneg %p148
      $region14: #{bottleneck_pallas.1} parent=11 // pred_check_branch
        %298 = sbr.rel (%p296) target = $region16
      $region15: #{bottleneck_pallas.1} parent=11 // pred_region
        _
      $region16: #{bottleneck_pallas.1} parent=11 // pred_fallthru
        _
      // Predicated region
      $region17: #{bottleneck_pallas.1} parent=11 // pred_check
        %p299 = pneg %p169
      $region18: #{bottleneck_pallas.1} parent=11 // pred_check_branch
        %301 = sbr.rel (%p299) target = $region20
      $region19: #{bottleneck_pallas.1} parent=11 // pred_region
        _
      $region20: #{bottleneck_pallas.1} parent=11 // pred_fallthru
        _
      // Predicated region
      $region21: #{bottleneck_pallas.1} parent=11 // pred_check
        %p302 = pneg %p190
      $region22: #{bottleneck_pallas.1} parent=11 // pred_check_branch
        %304 = sbr.rel (%p302) target = $region24
      $region23: #{bottleneck_pallas.1} parent=11 // pred_region
        _
      $region24: #{bottleneck_pallas.1} parent=11 // pred_fallthru
        _
      // Predicated region
      $region25: #{bottleneck_pallas.1} parent=11 // pred_check
        %p305 = pneg %p211
      $region26: #{bottleneck_pallas.1} parent=11 // pred_check_branch
        %307 = sbr.rel (%p305) target = $region28
      $region27: #{bottleneck_pallas.1} parent=11 // pred_region
        _
      $region28: #{bottleneck_pallas.1} parent=11 // pred_fallthru
        _
      // Predicated region
      $region29: #{bottleneck_pallas.1} parent=11 // pred_check
        %p308 = pneg %p232
      $region30: #{bottleneck_pallas.1} parent=11 // pred_check_branch
        %310 = sbr.rel (%p308) target = $region32
      $region31: #{bottleneck_pallas.1} parent=11 // pred_region
        _
      $region32: #{bottleneck_pallas.1} parent=11 // pred_fallthru
        _
      // Predicated region
      $region33: #{bottleneck_pallas.1} parent=11 // pred_check
        %p311 = pneg %p253
      $region34: #{bottleneck_pallas.1} parent=11 // pred_check_branch
        %313 = sbr.rel (%p311) target = $region36
      $region35: #{bottleneck_pallas.1} parent=11 // pred_region
        _
      $region36: #{bottleneck_pallas.1} parent=11 // pred_fallthru
        _
    $region12: #{bottleneck_pallas.1} parent=5 // pred_fallthru
      _
    %p314 = scmp.lt.s32.totalorder %s15, 2
    // Predicated region
    $region37: #{bottleneck_pallas.1} parent=5 // pred_check
      %p315 = pneg %p314
    $region38: #{bottleneck_pallas.1} parent=5 // pred_check_branch
      %317 = sbr.rel (%p315) target = $region40
    $region39: #{bottleneck_pallas.1} parent=5 // pred_region
      // Predicated region
      $region41: #{bottleneck_pallas.1} parent=39 // pred_check
        %p318 = pneg %p49
      $region42: #{bottleneck_pallas.1} parent=39 // pred_check_branch
        %320 = sbr.rel (%p318) target = $region44
      $region43: #{bottleneck_pallas.1} parent=39 // pred_region
        %s321 = smul.u32 32, %s23
        %p322 = scmp.lt.s32.totalorder %s22, 1
        %s323 = scalar_select %p322, %s22, 1
        %p324 = scmp.lt.s32.totalorder %s321, 31
        %s325 = scalar_select %p324, %s321, 31
        %s326 = smul.addr %s323, 32
        %s327 = sadd.s32 %s325, %s326
        %s328 = smul.addr %s327, 4
        %s329 = scalar_lea.vmem %s0, %s328
        %s330 = smul.u32 32, %s23
      $region44: #{bottleneck_pallas.1} parent=39 // pred_fallthru
        _
      // Predicated region
      $region45: #{bottleneck_pallas.1} parent=39 // pred_check
        %p331 = pneg %p85
      $region46: #{bottleneck_pallas.1} parent=39 // pred_check_branch
        %333 = sbr.rel (%p331) target = $region48
      $region47: #{bottleneck_pallas.1} parent=39 // pred_region
        %s334 = smul.u32 %s23, 16
        %s335 = ssub.s32 %s334, 1
        %p336 = scmp.gt.s32.totalorder %s335, 0
        %s337 = scalar_select %p336, %s335, 0
        %s338 = smul.u32 2, %s337
        %p339 = scmp.lt.s32.totalorder %s22, 1
        %s340 = scalar_select %p339, %s22, 1
        %p341 = scmp.lt.s32.totalorder %s338, 31
        %s342 = scalar_select %p341, %s338, 31
        %s343 = smul.addr %s340, 32
        %s344 = sadd.s32 %s342, %s343
        %s345 = smul.addr %s344, 4
        %s346 = scalar_lea.vmem %s1, %s345
        %s347 = smul.u32 %s23, 16
        %s348 = ssub.s32 %s347, 1
        %p349 = scmp.gt.s32.totalorder %s348, 0
        %s350 = scalar_select %p349, %s348, 0
        %s351 = smul.u32 2, %s350
      $region48: #{bottleneck_pallas.1} parent=39 // pred_fallthru
        _
      // Predicated region
      $region49: #{bottleneck_pallas.1} parent=39 // pred_check
        %p352 = pneg %p121
      $region50: #{bottleneck_pallas.1} parent=39 // pred_check_branch
        %354 = sbr.rel (%p352) target = $region52
      $region51: #{bottleneck_pallas.1} parent=39 // pred_region
        %s355 = sadd.s32 %s23, 1
        %s356 = smul.u32 %s355, 16
        %p357 = scmp.lt.s32.totalorder %s356, 15
        %s358 = scalar_select %p357, %s356, 15
        %s359 = smul.u32 2, %s358
        %p360 = scmp.lt.s32.totalorder %s22, 1
        %s361 = scalar_select %p360, %s22, 1
        %p362 = scmp.lt.s32.totalorder %s359, 31
        %s363 = scalar_select %p362, %s359, 31
        %s364 = smul.addr %s361, 32
        %s365 = sadd.s32 %s363, %s364
        %s366 = smul.addr %s365, 4
        %s367 = scalar_lea.vmem %s2, %s366
        %s368 = sadd.s32 %s23, 1
        %s369 = smul.u32 %s368, 16
        %p370 = scmp.lt.s32.totalorder %s369, 15
        %s371 = scalar_select %p370, %s369, 15
        %s372 = smul.u32 2, %s371
      $region52: #{bottleneck_pallas.1} parent=39 // pred_fallthru
        _
    $region40: #{bottleneck_pallas.1} parent=5 // pred_fallthru
      _
    %p373 = scmp.le.s32.totalorder 1, %s15
    %p374 = scmp.lt.s32.totalorder %s15, 3
    %p375 = pnand %p373, %p374
    %p376 = pneg %p375
    // Predicated region
    $region53: #{bottleneck_pallas.1} parent=5 // pred_check
      _
    $region54: #{bottleneck_pallas.1} parent=5 // pred_check_branch
      %378 = sbr.rel (%p375) target = $region56
    $region55: #{bottleneck_pallas.1} parent=5 // pred_region
      %s379 = ssub.s32 %s15, 1
      %s380 = smul.u32 32, %s25
      %p381 = scmp.lt.s32.totalorder %s24, 1
      %s382 = scalar_select %p381, %s24, 1
      %p383 = scmp.lt.s32.totalorder %s380, 31
      %s384 = scalar_select %p383, %s380, 31
      %s385 = smul.addr %s382, 32
      %s386 = sadd.s32 %s384, %s385
      %s387 = smul.addr %s386, 4
      %s388 = scalar_lea.vmem %s0, %s387
      %p389 = pneg %p55
      %p390 = pneg %p52
      %s391 = smul.u32 %s25, 16
      %s392 = ssub.s32 %s391, 1
      %p393 = scmp.gt.s32.totalorder %s392, 0
      %s394 = scalar_select %p393, %s392, 0
      %s395 = smul.u32 2, %s394
      %p396 = scmp.lt.s32.totalorder %s24, 1
      %s397 = scalar_select %p396, %s24, 1
      %p398 = scmp.lt.s32.totalorder %s395, 31
      %s399 = scalar_select %p398, %s395, 31
      %s400 = smul.addr %s397, 32
      %s401 = sadd.s32 %s399, %s400
      %s402 = smul.addr %s401, 4
      %s403 = scalar_lea.vmem %s1, %s402
      %p404 = pneg %p91
      %p405 = pneg %p88
      %s406 = sadd.s32 %s25, 1
      %s407 = smul.u32 %s406, 16
      %p408 = scmp.lt.s32.totalorder %s407, 15
      %s409 = scalar_select %p408, %s407, 15
      %s410 = smul.u32 2, %s409
      %p411 = scmp.lt.s32.totalorder %s24, 1
      %s412 = scalar_select %p411, %s24, 1
      %p413 = scmp.lt.s32.totalorder %s410, 31
      %s414 = scalar_select %p413, %s410, 31
      %s415 = smul.addr %s412, 32
      %s416 = sadd.s32 %s414, %s415
      %s417 = smul.addr %s416, 4
      %s418 = scalar_lea.vmem %s2, %s417
      %p419 = pneg %p127
      %p420 = pneg %p124
      %p421 = pneg %p148
      %p422 = pneg %p145
      %p423 = pneg %p169
      %p424 = pneg %p166
      %p425 = pneg %p190
      %p426 = pneg %p187
      %p427 = pneg %p211
      %p428 = pneg %p208
      %p429 = pneg %p232
      %p430 = pneg %p229
      %p431 = pneg %p253
      %p432 = pneg %p250
      %p433 = pneg %p281
      %p434 = pneg %p278
      %s435 = smul.u32 32, %s25
      %p436 = scmp.lt.s32.totalorder %s24, 1
      %s437 = scalar_select %p436, %s24, 1
      %p438 = scmp.lt.s32.totalorder %s435, 31
      %s439 = scalar_select %p438, %s435, 31
      %s440 = smul.addr %s437, 32
      %s441 = sadd.s32 %s439, %s440
      %s442 = smul.addr %s441, 8
      %s443 = scalar_lea.vmem %s9, %s442
      %s444 = smul.u32 32, %s25
      %p445 = scmp.lt.s32.totalorder %s24, 1
      %s446 = scalar_select %p445, %s24, 1
      %p447 = scmp.lt.s32.totalorder %s444, 31
      %s448 = scalar_select %p447, %s444, 31
      %s449 = smul.addr %s446, 32
      %s450 = sadd.s32 %s448, %s449
      %s451 = smul.addr %s450, 4
      %s452 = scalar_lea.vmem %s0, %s451
      %s453 = smul.u32 32, %s25
      %s454 = smul.u32 %s25, 16
      %s455 = ssub.s32 %s454, 1
      %p456 = scmp.gt.s32.totalorder %s455, 0
      %s457 = scalar_select %p456, %s455, 0
      %s458 = smul.u32 2, %s457
      %p459 = scmp.lt.s32.totalorder %s24, 1
      %s460 = scalar_select %p459, %s24, 1
      %p461 = scmp.lt.s32.totalorder %s458, 31
      %s462 = scalar_select %p461, %s458, 31
      %s463 = smul.addr %s460, 32
      %s464 = sadd.s32 %s462, %s463
      %s465 = smul.addr %s464, 4
      %s466 = scalar_lea.vmem %s1, %s465
      %s467 = smul.u32 %s25, 16
      %s468 = ssub.s32 %s467, 1
      %p469 = scmp.gt.s32.totalorder %s468, 0
      %s470 = scalar_select %p469, %s468, 0
      %s471 = smul.u32 2, %s470
      %s472 = sadd.s32 %s25, 1
      %s473 = smul.u32 %s472, 16
      %p474 = scmp.lt.s32.totalorder %s473, 15
      %s475 = scalar_select %p474, %s473, 15
      %s476 = smul.u32 2, %s475
      %p477 = scmp.lt.s32.totalorder %s24, 1
      %s478 = scalar_select %p477, %s24, 1
      %p479 = scmp.lt.s32.totalorder %s476, 31
      %s480 = scalar_select %p479, %s476, 31
      %s481 = smul.addr %s478, 32
      %s482 = sadd.s32 %s480, %s481
      %s483 = smul.addr %s482, 4
      %s484 = scalar_lea.vmem %s2, %s483
      %s485 = sadd.s32 %s25, 1
      %s486 = smul.u32 %s485, 16
      %p487 = scmp.lt.s32.totalorder %s486, 15
      %s488 = scalar_select %p487, %s486, 15
      %s489 = smul.u32 2, %s488
      %s490 = smul.u32 32, %s25
      %p491 = scmp.lt.s32.totalorder %s24, 1
      %s492 = scalar_select %p491, %s24, 1
      %p493 = scmp.lt.s32.totalorder %s490, 31
      %s494 = scalar_select %p493, %s490, 31
      %s495 = smul.addr %s492, 32
      %s496 = sadd.s32 %s494, %s495
      %s497 = smul.addr %s496, 8
      %s498 = scalar_lea.vmem %s9, %s497
      %s499 = smul.u32 32, %s25
      %v503 = vld [vmem:[%s3] sm:$0xf]
      %v504 = vld [vmem:[%s3 + $0x4] sm:$0xf]
      %v505 = vld [vmem:[%s4] sm:$0x1]
      %v506 = vld [vmem:[%s452] sm:$0xf]
      %v507 = vld [vmem:[%s452 + $0x4] sm:$0xf]
      %v508 = vld [vmem:[%s452 + $0x8] sm:$0xf]
      %v509 = vld [vmem:[%s452 + $0xc] sm:$0xf]
      %v510 = vld [vmem:[%s452 + $0x10] sm:$0xf]
      %v511 = vld [vmem:[%s452 + $0x14] sm:$0xf]
      %v512 = vld [vmem:[%s452 + $0x18] sm:$0xf]
      %v513 = vld [vmem:[%s452 + $0x1c] sm:$0xf]
      %v514 = vld [vmem:[%s452 + $0x20] sm:$0xf]
      %v515 = vld [vmem:[%s452 + $0x24] sm:$0xf]
      %v516 = vld [vmem:[%s452 + $0x28] sm:$0xf]
      %v517 = vld [vmem:[%s452 + $0x2c] sm:$0xf]
      %v518 = vld [vmem:[%s452 + $0x30] sm:$0xf]
      %v519 = vld [vmem:[%s452 + $0x34] sm:$0xf]
      %v520 = vld [vmem:[%s452 + $0x38] sm:$0xf]
      %v521 = vld [vmem:[%s452 + $0x3c] sm:$0xf]
      %v522 = vld [vmem:[%s452 + $0x40] sm:$0xf]
      %v523 = vld [vmem:[%s452 + $0x44] sm:$0xf]
      %v524 = vld [vmem:[%s452 + $0x48] sm:$0xf]
      %v525 = vld [vmem:[%s452 + $0x4c] sm:$0xf]
      %v526 = vld [vmem:[%s452 + $0x50] sm:$0xf]
      %v527 = vld [vmem:[%s452 + $0x54] sm:$0xf]
      %v528 = vld [vmem:[%s452 + $0x58] sm:$0xf]
      %v529 = vld [vmem:[%s452 + $0x5c] sm:$0xf]
      %v530 = vld [vmem:[%s452 + $0x60] sm:$0xf]
      %v531 = vld [vmem:[%s452 + $0x64] sm:$0xf]
      %v532 = vld [vmem:[%s452 + $0x68] sm:$0xf]
      %v533 = vld [vmem:[%s452 + $0x6c] sm:$0xf]
      %v534 = vld [vmem:[%s452 + $0x70] sm:$0xf]
      %v535 = vld [vmem:[%s452 + $0x74] sm:$0xf]
      %v536 = vld [vmem:[%s452 + $0x78] sm:$0xf]
      %v537 = vld [vmem:[%s452 + $0x7c] sm:$0xf]
      %v539 = vlaneseq
      %v540 = vshrl.u32 %v539, 7
      %v541 = vsub.s32 0, %v540
      %v542 = vrot.slane %v505, %v541
      %v576 = vunpack.c.l.b16 %v506
      %v577 = vunpack.c.l.b16 %v507
      %v578 = vunpack.c.l.b16 %v508
      %v579 = vunpack.c.l.b16 %v509
      %v580 = vunpack.c.l.b16 %v510
      %v581 = vunpack.c.l.b16 %v511
      %v582 = vunpack.c.l.b16 %v512
      %v583 = vunpack.c.l.b16 %v513
      %v584 = vunpack.c.l.b16 %v514
      %v585 = vunpack.c.l.b16 %v515
      %v586 = vunpack.c.l.b16 %v516
      %v587 = vunpack.c.l.b16 %v517
      %v588 = vunpack.c.l.b16 %v518
      %v589 = vunpack.c.l.b16 %v519
      %v590 = vunpack.c.l.b16 %v520
      %v591 = vunpack.c.l.b16 %v521
      %v592 = vunpack.c.l.b16 %v522
      %v593 = vunpack.c.l.b16 %v523
      %v594 = vunpack.c.l.b16 %v524
      %v595 = vunpack.c.l.b16 %v525
      %v596 = vunpack.c.l.b16 %v526
      %v597 = vunpack.c.l.b16 %v527
      %v598 = vunpack.c.l.b16 %v528
      %v599 = vunpack.c.l.b16 %v529
      %v600 = vunpack.c.l.b16 %v530
      %v601 = vunpack.c.l.b16 %v531
      %v602 = vunpack.c.l.b16 %v532
      %v603 = vunpack.c.l.b16 %v533
      %v604 = vunpack.c.l.b16 %v534
      %v605 = vunpack.c.l.b16 %v535
      %v606 = vunpack.c.l.b16 %v536
      %v607 = vunpack.c.l.b16 %v537
      %v608 = vpack.c.b16 %v577, %v576
      %v609 = vpack.c.b16 %v579, %v578
      %v610 = vpack.c.b16 %v581, %v580
      %v611 = vpack.c.b16 %v583, %v582
      %v612 = vpack.c.b16 %v585, %v584
      %v613 = vpack.c.b16 %v587, %v586
      %v614 = vpack.c.b16 %v589, %v588
      %v615 = vpack.c.b16 %v591, %v590
      %v616 = vpack.c.b16 %v593, %v592
      %v617 = vpack.c.b16 %v595, %v594
      %v618 = vpack.c.b16 %v597, %v596
      %v619 = vpack.c.b16 %v599, %v598
      %v620 = vpack.c.b16 %v601, %v600
      %v621 = vpack.c.b16 %v603, %v602
      %v622 = vpack.c.b16 %v605, %v604
      %v623 = vpack.c.b16 %v607, %v606
      %v626 = vunpack.c.l.b16 %v503
      %v627 = vunpack.c.l.b16 %v504
      %v628 = vpack.c.b16 %v627, %v626
      %vm630 = vcmask 130048
      %v632 = vsel %vm630, %v608, 0
      %v635 = vsel %vm630, %v609, 0
      %v638 = vsel %vm630, %v610, 0
      %v641 = vsel %vm630, %v611, 0
      %v644 = vsel %vm630, %v612, 0
      %v647 = vsel %vm630, %v613, 0
      %v650 = vsel %vm630, %v614, 0
      %v653 = vsel %vm630, %v615, 0
      %v656 = vsel %vm630, %v616, 0
      %v659 = vsel %vm630, %v617, 0
      %v662 = vsel %vm630, %v618, 0
      %v665 = vsel %vm630, %v619, 0
      %v668 = vsel %vm630, %v620, 0
      %v671 = vsel %vm630, %v621, 0
      %v674 = vsel %vm630, %v622, 0
      %v677 = vsel %vm630, %v623, 0
      %679 = vmatprep.subr.bf16.mxu0 0
      %680 = vmatpush1.bf16.msra.mxu0 %v628
      %681 = vmatprep.subr.bf16.mxu0 0
      %682 = vmatpush1.bf16.msra.mxu0 0
      %683 = vmatprep.subr.bf16.mxu0 0
      %684 = vmatpush1.bf16.msra.mxu0 0
      %685 = vmatprep.subr.bf16.mxu0 0
      %686 = vmatpush1.bf16.msra.mxu0 0
      %687 = vmatprep.subr.bf16.mxu0 0
      %688 = vmatpush1.bf16.msra.mxu0 0
      %689 = vmatprep.subr.bf16.mxu0 0
      %690 = vmatpush1.bf16.msra.mxu0 0
      %691 = vmatprep.subr.bf16.mxu0 0
      %692 = vmatpush1.bf16.msra.mxu0 0
      %693 = vmatprep.subr.bf16.mxu0 0
      %694 = vmatpush1.bf16.msra.mxu0 0
      %695 = vmatprep.subr.bf16.mxu0 0
      %696 = vmatpush1.bf16.msra.mxu0 0
      %697 = vmatprep.subr.bf16.mxu0 0
      %698 = vmatpush1.bf16.msra.mxu0 0
      %699 = vmatprep.subr.bf16.mxu0 0
      %700 = vmatpush1.bf16.msra.mxu0 0
      %701 = vmatprep.subr.bf16.mxu0 0
      %702 = vmatpush1.bf16.msra.mxu0 0
      %703 = vmatprep.subr.bf16.mxu0 0
      %704 = vmatpush1.bf16.msra.mxu0 0
      %705 = vmatprep.subr.bf16.mxu0 0
      %706 = vmatpush1.bf16.msra.mxu0 0
      %707 = vmatprep.subr.bf16.mxu0 0
      %708 = vmatpush1.bf16.msra.mxu0 0
      %709 = vmatprep.subr.bf16.mxu0 0
      %710 = vmatpush1.bf16.msra.mxu0 0
      %711 = vmatprep.mubr.bf16.mxu0 0
      %712 = vmatmul.mubr.bf16.gmra.mrb[0].mxu0 %v632
      %v713 = vpop.f32.mrb[0].mxu0
      %v714 = vadd.f32 %v542, %v713
      %v715 = vpop.f32.mrb[0].mxu0
      %v716 = vpop.f32.mrb[0].mxu0
      %v717 = vadd.f32 %v542, %v716
      %v718 = vpop.f32.mrb[0].mxu0
      %719 = vmatprep.mubr.bf16.mxu0 0
      %720 = vmatmul.mubr.bf16.gmra.mrb[0].mxu0 %v635
      %v721 = vpop.f32.mrb[0].mxu0
      %v722 = vadd.f32 %v542, %v721
      %v723 = vpop.f32.mrb[0].mxu0
      %v724 = vpop.f32.mrb[0].mxu0
      %v725 = vadd.f32 %v542, %v724
      %v726 = vpop.f32.mrb[0].mxu0
      %727 = vmatprep.mubr.bf16.mxu0 0
      %728 = vmatmul.mubr.bf16.gmra.mrb[0].mxu0 %v638
      %v729 = vpop.f32.mrb[0].mxu0
      %v730 = vadd.f32 %v542, %v729
      %v731 = vpop.f32.mrb[0].mxu0
      %v732 = vpop.f32.mrb[0].mxu0
      %v733 = vadd.f32 %v542, %v732
      %v734 = vpop.f32.mrb[0].mxu0
      %735 = vmatprep.mubr.bf16.mxu0 0
      %736 = vmatmul.mubr.bf16.gmra.mrb[0].mxu0 %v641
      %v737 = vpop.f32.mrb[0].mxu0
      %v738 = vadd.f32 %v542, %v737
      %v739 = vpop.f32.mrb[0].mxu0
      %v740 = vpop.f32.mrb[0].mxu0
      %v741 = vadd.f32 %v542, %v740
      %v742 = vpop.f32.mrb[0].mxu0
      %743 = vmatprep.mubr.bf16.mxu0 0
      %744 = vmatmul.mubr.bf16.gmra.mrb[0].mxu0 %v644
      %v745 = vpop.f32.mrb[0].mxu0
      %v746 = vadd.f32 %v542, %v745
      %v747 = vpop.f32.mrb[0].mxu0
      %v748 = vpop.f32.mrb[0].mxu0
      %v749 = vadd.f32 %v542, %v748
      %v750 = vpop.f32.mrb[0].mxu0
      %751 = vmatprep.mubr.bf16.mxu0 0
      %752 = vmatmul.mubr.bf16.gmra.mrb[0].mxu0 %v647
      %v753 = vpop.f32.mrb[0].mxu0
      %v754 = vadd.f32 %v542, %v753
      %v755 = vpop.f32.mrb[0].mxu0
      %v756 = vpop.f32.mrb[0].mxu0
      %v757 = vadd.f32 %v542, %v756
      %v758 = vpop.f32.mrb[0].mxu0
      %759 = vmatprep.mubr.bf16.mxu0 0
      %760 = vmatmul.mubr.bf16.gmra.mrb[0].mxu0 %v650
      %v761 = vpop.f32.mrb[0].mxu0
      %v762 = vadd.f32 %v542, %v761
      %v763 = vpop.f32.mrb[0].mxu0
      %v764 = vpop.f32.mrb[0].mxu0
      %v765 = vadd.f32 %v542, %v764
      %v766 = vpop.f32.mrb[0].mxu0
      %767 = vmatprep.mubr.bf16.mxu0 0
      %768 = vmatmul.mubr.bf16.gmra.mrb[0].mxu0 %v653
      %v769 = vpop.f32.mrb[0].mxu0
      %v770 = vadd.f32 %v542, %v769
      %v771 = vpop.f32.mrb[0].mxu0
      %v772 = vpop.f32.mrb[0].mxu0
      %v773 = vadd.f32 %v542, %v772
      %v774 = vpop.f32.mrb[0].mxu0
      %775 = vmatprep.mubr.bf16.mxu0 0
      %776 = vmatmul.mubr.bf16.gmra.mrb[0].mxu0 %v656
      %v777 = vpop.f32.mrb[0].mxu0
      %v778 = vadd.f32 %v542, %v777
      %v779 = vpop.f32.mrb[0].mxu0
      %v780 = vpop.f32.mrb[0].mxu0
      %v781 = vadd.f32 %v542, %v780
      %v782 = vpop.f32.mrb[0].mxu0
      %783 = vmatprep.mubr.bf16.mxu0 0
      %784 = vmatmul.mubr.bf16.gmra.mrb[0].mxu0 %v659
      %v785 = vpop.f32.mrb[0].mxu0
      %v786 = vadd.f32 %v542, %v785
      %v787 = vpop.f32.mrb[0].mxu0
      %v788 = vpop.f32.mrb[0].mxu0
      %v789 = vadd.f32 %v542, %v788
      %v790 = vpop.f32.mrb[0].mxu0
      %791 = vmatprep.mubr.bf16.mxu0 0
      %792 = vmatmul.mubr.bf16.gmra.mrb[0].mxu0 %v662
      %v793 = vpop.f32.mrb[0].mxu0
      %v794 = vadd.f32 %v542, %v793
      %v795 = vpop.f32.mrb[0].mxu0
      %v796 = vpop.f32.mrb[0].mxu0
      %v797 = vadd.f32 %v542, %v796
      %v798 = vpop.f32.mrb[0].mxu0
      %799 = vmatprep.mubr.bf16.mxu0 0
      %800 = vmatmul.mubr.bf16.gmra.mrb[0].mxu0 %v665
      %v801 = vpop.f32.mrb[0].mxu0
      %v802 = vadd.f32 %v542, %v801
      %v803 = vpop.f32.mrb[0].mxu0
      %v804 = vpop.f32.mrb[0].mxu0
      %v805 = vadd.f32 %v542, %v804
      %v806 = vpop.f32.mrb[0].mxu0
      %807 = vmatprep.mubr.bf16.mxu0 0
      %808 = vmatmul.mubr.bf16.gmra.mrb[0].mxu0 %v668
      %v809 = vpop.f32.mrb[0].mxu0
      %v810 = vadd.f32 %v542, %v809
      %v811 = vpop.f32.mrb[0].mxu0
      %v812 = vpop.f32.mrb[0].mxu0
      %v813 = vadd.f32 %v542, %v812
      %v814 = vpop.f32.mrb[0].mxu0
      %815 = vmatprep.mubr.bf16.mxu0 0
      %816 = vmatmul.mubr.bf16.gmra.mrb[0].mxu0 %v671
      %v817 = vpop.f32.mrb[0].mxu0
      %v818 = vadd.f32 %v542, %v817
      %v819 = vpop.f32.mrb[0].mxu0
      %v820 = vpop.f32.mrb[0].mxu0
      %v821 = vadd.f32 %v542, %v820
      %v822 = vpop.f32.mrb[0].mxu0
      %823 = vmatprep.mubr.bf16.mxu0 0
      %824 = vmatmul.mubr.bf16.gmra.mrb[0].mxu0 %v674
      %v825 = vpop.f32.mrb[0].mxu0
      %v826 = vadd.f32 %v542, %v825
      %v827 = vpop.f32.mrb[0].mxu0
      %v828 = vpop.f32.mrb[0].mxu0
      %v829 = vadd.f32 %v542, %v828
      %v830 = vpop.f32.mrb[0].mxu0
      %831 = vmatprep.mubr.bf16.mxu0 0
      %832 = vmatmul.mubr.bf16.gmra.mrb[0].mxu0 %v677
      %v833 = vpop.f32.mrb[0].mxu0
      %v834 = vadd.f32 %v542, %v833
      %v835 = vpop.f32.mrb[0].mxu0
      %v836 = vpop.f32.mrb[0].mxu0
      %v837 = vadd.f32 %v542, %v836
      %v838 = vpop.f32.mrb[0].mxu0
      %839 = vdwg.mxu0
      %v840 = vmax.f32 %v714, 0.0
      %v841 = vmax.f32 %v717, 0.0
      %v842 = vmax.f32 %v722, 0.0
      %v843 = vmax.f32 %v725, 0.0
      %v844 = vmax.f32 %v730, 0.0
      %v845 = vmax.f32 %v733, 0.0
      %v846 = vmax.f32 %v738, 0.0
      %v847 = vmax.f32 %v741, 0.0
      %v848 = vmax.f32 %v746, 0.0
      %v849 = vmax.f32 %v749, 0.0
      %v850 = vmax.f32 %v754, 0.0
      %v851 = vmax.f32 %v757, 0.0
      %v852 = vmax.f32 %v762, 0.0
      %v853 = vmax.f32 %v765, 0.0
      %v854 = vmax.f32 %v770, 0.0
      %v855 = vmax.f32 %v773, 0.0
      %v856 = vmax.f32 %v778, 0.0
      %v857 = vmax.f32 %v781, 0.0
      %v858 = vmax.f32 %v786, 0.0
      %v859 = vmax.f32 %v789, 0.0
      %v860 = vmax.f32 %v794, 0.0
      %v861 = vmax.f32 %v797, 0.0
      %v862 = vmax.f32 %v802, 0.0
      %v863 = vmax.f32 %v805, 0.0
      %v864 = vmax.f32 %v810, 0.0
      %v865 = vmax.f32 %v813, 0.0
      %v866 = vmax.f32 %v818, 0.0
      %v867 = vmax.f32 %v821, 0.0
      %v868 = vmax.f32 %v826, 0.0
      %v869 = vmax.f32 %v829, 0.0
      %v870 = vmax.f32 %v834, 0.0
      %v871 = vmax.f32 %v837, 0.0
      %v872 = vpack.c.bf16 %v841, %v840
      %v873 = vpack.c.bf16 %v843, %v842
      %v874 = vpack.c.bf16 %v845, %v844
      %v875 = vpack.c.bf16 %v847, %v846
      %v876 = vpack.c.bf16 %v849, %v848
      %v877 = vpack.c.bf16 %v851, %v850
      %v878 = vpack.c.bf16 %v853, %v852
      %v879 = vpack.c.bf16 %v855, %v854
      %v880 = vpack.c.bf16 %v857, %v856
      %v881 = vpack.c.bf16 %v859, %v858
      %v882 = vpack.c.bf16 %v861, %v860
      %v883 = vpack.c.bf16 %v863, %v862
      %v884 = vpack.c.bf16 %v865, %v864
      %v885 = vpack.c.bf16 %v867, %v866
      %v886 = vpack.c.bf16 %v869, %v868
      %v887 = vpack.c.bf16 %v871, %v870
      %vm888 = vcmask 31744
      %889 = vst.msk [vmem:[#allocation2 + $0x10] sm:$0xff] %vm888, %v872
      %890 = vst.msk [vmem:[#allocation2 + $0x18] sm:$0xff] %vm888, %v873
      %891 = vst.msk [vmem:[#allocation2 + $0x20] sm:$0xff] %vm888, %v874
      %892 = vst.msk [vmem:[#allocation2 + $0x28] sm:$0xff] %vm888, %v875
      %893 = vst.msk [vmem:[#allocation2 + $0x30] sm:$0xff] %vm888, %v876
      %894 = vst.msk [vmem:[#allocation2 + $0x38] sm:$0xff] %vm888, %v877
      %895 = vst.msk [vmem:[#allocation2 + $0x40] sm:$0xff] %vm888, %v878
      %896 = vst.msk [vmem:[#allocation2 + $0x48] sm:$0xff] %vm888, %v879
      %897 = vst.msk [vmem:[#allocation2 + $0x50] sm:$0xff] %vm888, %v880
      %898 = vst.msk [vmem:[#allocation2 + $0x58] sm:$0xff] %vm888, %v881
      %899 = vst.msk [vmem:[#allocation2 + $0x60] sm:$0xff] %vm888, %v882
      %900 = vst.msk [vmem:[#allocation2 + $0x68] sm:$0xff] %vm888, %v883
      %901 = vst.msk [vmem:[#allocation2 + $0x70] sm:$0xff] %vm888, %v884
      %902 = vst.msk [vmem:[#allocation2 + $0x78] sm:$0xff] %vm888, %v885
      %903 = vst.msk [vmem:[#allocation2 + $0x80] sm:$0xff] %vm888, %v886
      %904 = vst.msk [vmem:[#allocation2 + $0x88] sm:$0xff] %vm888, %v887
      %p905 = scmp.eq.s32.totalorder %s25, 0
      // Predicated region
      $region57: #{bottleneck_pallas.1} parent=55 // pred_check
        %p906 = pneg %p905
      $region58: #{bottleneck_pallas.1} parent=55 // pred_check_branch
        %908 = sbr.rel (%p906) target = $region60
      $region59: #{bottleneck_pallas.1} parent=55 // pred_region
        %909 = vst.msk [vmem:[#allocation2 + $0x8] sm:$0xff] %vm888, 0
      $region60: #{bottleneck_pallas.1} parent=55 // pred_fallthru
        _
      %p910 = scmp.ne.s32.totalorder %s25, 0
      // Predicated region
      $region61: #{bottleneck_pallas.1} parent=55 // pred_check
        %p911 = pneg %p910
      $region62: #{bottleneck_pallas.1} parent=55 // pred_check_branch
        %913 = sbr.rel (%p911) target = $region64
      $region63: #{bottleneck_pallas.1} parent=55 // pred_region
        %v914 = vld [vmem:[%s466] sm:$0xf]
        %v915 = vld [vmem:[%s466 + $0x4] sm:$0xf]
        %v918 = vunpack.c.l.b16 %v914
        %v919 = vunpack.c.l.b16 %v915
        %v920 = vpack.c.b16 %v919, %v918
        %v922 = vsel %vm630, %v920, 0
        %924 = vmatprep.subr.bf16.mxu0 0
        %925 = vmatpush1.bf16.msra.mxu0 %v628
        %926 = vmatprep.subr.bf16.mxu0 0
        %927 = vmatpush1.bf16.msra.mxu0 0
        %928 = vmatprep.subr.bf16.mxu0 0
        %929 = vmatpush1.bf16.msra.mxu0 0
        %930 = vmatprep.subr.bf16.mxu0 0
        %931 = vmatpush1.bf16.msra.mxu0 0
        %932 = vmatprep.subr.bf16.mxu0 0
        %933 = vmatpush1.bf16.msra.mxu0 0
        %934 = vmatprep.subr.bf16.mxu0 0
        %935 = vmatpush1.bf16.msra.mxu0 0
        %936 = vmatprep.subr.bf16.mxu0 0
        %937 = vmatpush1.bf16.msra.mxu0 0
        %938 = vmatprep.subr.bf16.mxu0 0
        %939 = vmatpush1.bf16.msra.mxu0 0
        %940 = vmatprep.subr.bf16.mxu0 0
        %941 = vmatpush1.bf16.msra.mxu0 0
        %942 = vmatprep.subr.bf16.mxu0 0
        %943 = vmatpush1.bf16.msra.mxu0 0
        %944 = vmatprep.subr.bf16.mxu0 0
        %945 = vmatpush1.bf16.msra.mxu0 0
        %946 = vmatprep.subr.bf16.mxu0 0
        %947 = vmatpush1.bf16.msra.mxu0 0
        %948 = vmatprep.subr.bf16.mxu0 0
        %949 = vmatpush1.bf16.msra.mxu0 0
        %950 = vmatprep.subr.bf16.mxu0 0
        %951 = vmatpush1.bf16.msra.mxu0 0
        %952 = vmatprep.subr.bf16.mxu0 0
        %953 = vmatpush1.bf16.msra.mxu0 0
        %954 = vmatprep.subr.bf16.mxu0 0
        %955 = vmatpush1.bf16.msra.mxu0 0
        %956 = vmatprep.mubr.bf16.mxu0 0
        %957 = vmatmul.mubr.bf16.gmra.mrb[0].mxu0 %v922
        %v958 = vpop.f32.mrb[0].mxu0
        %v959 = vadd.f32 %v542, %v958
        %v960 = vpop.f32.mrb[0].mxu0
        %v961 = vpop.f32.mrb[0].mxu0
        %v962 = vadd.f32 %v542, %v961
        %v963 = vpop.f32.mrb[0].mxu0
        %964 = vdwg.mxu0
        %v965 = vmax.f32 %v959, 0.0
        %v966 = vmax.f32 %v962, 0.0
        %v967 = vpack.c.bf16 %v966, %v965
        %968 = vst.msk [vmem:[#allocation2 + $0x8] sm:$0xff] %vm888, %v967
      $region64: #{bottleneck_pallas.1} parent=55 // pred_fallthru
        _
      // Predicated region
      $region65: #{bottleneck_pallas.1} parent=55 // pred_check
        %p969 = pneg %p905
      $region66: #{bottleneck_pallas.1} parent=55 // pred_check_branch
        %971 = sbr.rel (%p969) target = $region68
      $region67: #{bottleneck_pallas.1} parent=55 // pred_region
        %972 = vst.msk [vmem:[#allocation2 + $0x90] sm:$0xff] %vm888, 0
      $region68: #{bottleneck_pallas.1} parent=55 // pred_fallthru
        _
      // Predicated region
      $region69: #{bottleneck_pallas.1} parent=55 // pred_check
        %p973 = pneg %p910
      $region70: #{bottleneck_pallas.1} parent=55 // pred_check_branch
        %975 = sbr.rel (%p973) target = $region72
      $region71: #{bottleneck_pallas.1} parent=55 // pred_region
        %v976 = vld [vmem:[%s484] sm:$0xf]
        %v977 = vld [vmem:[%s484 + $0x4] sm:$0xf]
        %v980 = vunpack.c.l.b16 %v976
        %v981 = vunpack.c.l.b16 %v977
        %v982 = vpack.c.b16 %v981, %v980
        %v984 = vsel %vm630, %v982, 0
        %986 = vmatprep.subr.bf16.mxu0 0
        %987 = vmatpush1.bf16.msra.mxu0 %v628
        %988 = vmatprep.subr.bf16.mxu0 0
        %989 = vmatpush1.bf16.msra.mxu0 0
        %990 = vmatprep.subr.bf16.mxu0 0
        %991 = vmatpush1.bf16.msra.mxu0 0
        %992 = vmatprep.subr.bf16.mxu0 0
        %993 = vmatpush1.bf16.msra.mxu0 0
        %994 = vmatprep.subr.bf16.mxu0 0
        %995 = vmatpush1.bf16.msra.mxu0 0
        %996 = vmatprep.subr.bf16.mxu0 0
        %997 = vmatpush1.bf16.msra.mxu0 0
        %998 = vmatprep.subr.bf16.mxu0 0
        %999 = vmatpush1.bf16.msra.mxu0 0
        %1000 = vmatprep.subr.bf16.mxu0 0
        %1001 = vmatpush1.bf16.msra.mxu0 0
        %1002 = vmatprep.subr.bf16.mxu0 0
        %1003 = vmatpush1.bf16.msra.mxu0 0
        %1004 = vmatprep.subr.bf16.mxu0 0
        %1005 = vmatpush1.bf16.msra.mxu0 0
        %1006 = vmatprep.subr.bf16.mxu0 0
        %1007 = vmatpush1.bf16.msra.mxu0 0
        %1008 = vmatprep.subr.bf16.mxu0 0
        %1009 = vmatpush1.bf16.msra.mxu0 0
        %1010 = vmatprep.subr.bf16.mxu0 0
        %1011 = vmatpush1.bf16.msra.mxu0 0
        %1012 = vmatprep.subr.bf16.mxu0 0
        %1013 = vmatpush1.bf16.msra.mxu0 0
        %1014 = vmatprep.subr.bf16.mxu0 0
        %1015 = vmatpush1.bf16.msra.mxu0 0
        %1016 = vmatprep.subr.bf16.mxu0 0
        %1017 = vmatpush1.bf16.msra.mxu0 0
        %1018 = vmatprep.mubr.bf16.mxu0 0
        %1019 = vmatmul.mubr.bf16.gmra.mrb[0].mxu0 %v984
        %v1020 = vpop.f32.mrb[0].mxu0
        %v1021 = vadd.f32 %v542, %v1020
        %v1022 = vpop.f32.mrb[0].mxu0
        %v1023 = vpop.f32.mrb[0].mxu0
        %v1024 = vadd.f32 %v542, %v1023
        %v1025 = vpop.f32.mrb[0].mxu0
        %1026 = vdwg.mxu0
        %v1027 = vmax.f32 %v1021, 0.0
        %v1028 = vmax.f32 %v1024, 0.0
        %v1029 = vpack.c.bf16 %v1028, %v1027
        %1030 = vst.msk [vmem:[#allocation2 + $0x90] sm:$0xff] %vm888, %v1029
      $region72: #{bottleneck_pallas.1} parent=55 // pred_fallthru
        _
      %v1031 = vlaneseq
      %v1032 = vshrl.u32 %v1031, 7
      %v1033 = vadd.s32 %v1032, 8
      %v1034 = vadd.s32 %v1032, 16
      %v1035 = vadd.s32 %v1032, 24
      %v1036 = vadd.s32 %v1032, 32
      %v1037 = vadd.s32 %v1032, 40
      %v1038 = vadd.s32 %v1032, 48
      %v1039 = vadd.s32 %v1032, 56
      %v1040 = vadd.s32 %v1032, 64
      %v1041 = vadd.s32 %v1032, 72
      %v1042 = vadd.s32 %v1032, 80
      %v1043 = vadd.s32 %v1032, 88
      %v1044 = vadd.s32 %v1032, 96
      %v1045 = vadd.s32 %v1032, 104
      %v1046 = vadd.s32 %v1032, 112
      %v1047 = vadd.s32 %v1032, 120
      %v1048 = vadd.s32 %v1032, 128
      %v1049 = vadd.s32 %v1032, 136
      %v1050 = vadd.s32 %v1032, 144
      %v1051 = vadd.s32 %v1032, 152
      %v1052 = vadd.s32 %v1032, 160
      %v1053 = vadd.s32 %v1032, 168
      %v1054 = vadd.s32 %v1032, 176
      %v1055 = vadd.s32 %v1032, 184
      %v1056 = vadd.s32 %v1032, 192
      %v1057 = vadd.s32 %v1032, 200
      %v1058 = vadd.s32 %v1032, 208
      %v1059 = vadd.s32 %v1032, 216
      %v1060 = vadd.s32 %v1032, 224
      %v1061 = vadd.s32 %v1032, 232
      %v1062 = vadd.s32 %v1032, 240
      %v1063 = vadd.s32 %v1032, 248
      %vm1064 = vcmp.lt.s32.totalorder %v1032, 0
      %v1065 = vsub.s32 0, %v1032
      %v1066 = vsel %vm1064, %v1065, %v1032
      %v1067 = vshrl.u32 %v1066, 4
      %v1068 = vand.u32 %v1066, 15
      %v1069 = vsub.s32 0, %v1068
      %v1070 = vsel %vm1064, %v1069, %v1068
      %vm1071 = vcmp.lt.s32.totalorder %v1033, 0
      %v1072 = vsub.s32 0, %v1033
      %v1073 = vsel %vm1071, %v1072, %v1033
      %v1074 = vshrl.u32 %v1073, 4
      %v1075 = vand.u32 %v1073, 15
      %v1076 = vsub.s32 0, %v1075
      %v1077 = vsel %vm1071, %v1076, %v1075
      %vm1078 = vcmp.lt.s32.totalorder %v1034, 0
      %v1079 = vsub.s32 0, %v1034
      %v1080 = vsel %vm1078, %v1079, %v1034
      %v1081 = vshrl.u32 %v1080, 4
      %v1082 = vand.u32 %v1080, 15
      %v1083 = vsub.s32 0, %v1082
      %v1084 = vsel %vm1078, %v1083, %v1082
      %vm1085 = vcmp.lt.s32.totalorder %v1035, 0
      %v1086 = vsub.s32 0, %v1035
      %v1087 = vsel %vm1085, %v1086, %v1035
      %v1088 = vshrl.u32 %v1087, 4
      %v1089 = vand.u32 %v1087, 15
      %v1090 = vsub.s32 0, %v1089
      %v1091 = vsel %vm1085, %v1090, %v1089
      %vm1092 = vcmp.lt.s32.totalorder %v1036, 0
      %v1093 = vsub.s32 0, %v1036
      %v1094 = vsel %vm1092, %v1093, %v1036
      %v1095 = vshrl.u32 %v1094, 4
      %v1096 = vand.u32 %v1094, 15
      %v1097 = vsub.s32 0, %v1096
      %v1098 = vsel %vm1092, %v1097, %v1096
      %vm1099 = vcmp.lt.s32.totalorder %v1037, 0
      %v1100 = vsub.s32 0, %v1037
      %v1101 = vsel %vm1099, %v1100, %v1037
      %v1102 = vshrl.u32 %v1101, 4
      %v1103 = vand.u32 %v1101, 15
      %v1104 = vsub.s32 0, %v1103
      %v1105 = vsel %vm1099, %v1104, %v1103
      %vm1106 = vcmp.lt.s32.totalorder %v1038, 0
      %v1107 = vsub.s32 0, %v1038
      %v1108 = vsel %vm1106, %v1107, %v1038
      %v1109 = vshrl.u32 %v1108, 4
      %v1110 = vand.u32 %v1108, 15
      %v1111 = vsub.s32 0, %v1110
      %v1112 = vsel %vm1106, %v1111, %v1110
      %vm1113 = vcmp.lt.s32.totalorder %v1039, 0
      %v1114 = vsub.s32 0, %v1039
      %v1115 = vsel %vm1113, %v1114, %v1039
      %v1116 = vshrl.u32 %v1115, 4
      %v1117 = vand.u32 %v1115, 15
      %v1118 = vsub.s32 0, %v1117
      %v1119 = vsel %vm1113, %v1118, %v1117
      %vm1120 = vcmp.lt.s32.totalorder %v1040, 0
      %v1121 = vsub.s32 0, %v1040
      %v1122 = vsel %vm1120, %v1121, %v1040
      %v1123 = vshrl.u32 %v1122, 4
      %v1124 = vand.u32 %v1122, 15
      %v1125 = vsub.s32 0, %v1124
      %v1126 = vsel %vm1120, %v1125, %v1124
      %vm1127 = vcmp.lt.s32.totalorder %v1041, 0
      %v1128 = vsub.s32 0, %v1041
      %v1129 = vsel %vm1127, %v1128, %v1041
      %v1130 = vshrl.u32 %v1129, 4
      %v1131 = vand.u32 %v1129, 15
      %v1132 = vsub.s32 0, %v1131
      %v1133 = vsel %vm1127, %v1132, %v1131
      %vm1134 = vcmp.lt.s32.totalorder %v1042, 0
      %v1135 = vsub.s32 0, %v1042
      %v1136 = vsel %vm1134, %v1135, %v1042
      %v1137 = vshrl.u32 %v1136, 4
      %v1138 = vand.u32 %v1136, 15
      %v1139 = vsub.s32 0, %v1138
      %v1140 = vsel %vm1134, %v1139, %v1138
      %vm1141 = vcmp.lt.s32.totalorder %v1043, 0
      %v1142 = vsub.s32 0, %v1043
      %v1143 = vsel %vm1141, %v1142, %v1043
      %v1144 = vshrl.u32 %v1143, 4
      %v1145 = vand.u32 %v1143, 15
      %v1146 = vsub.s32 0, %v1145
      %v1147 = vsel %vm1141, %v1146, %v1145
      %vm1148 = vcmp.lt.s32.totalorder %v1044, 0
      %v1149 = vsub.s32 0, %v1044
      %v1150 = vsel %vm1148, %v1149, %v1044
      %v1151 = vshrl.u32 %v1150, 4
      %v1152 = vand.u32 %v1150, 15
      %v1153 = vsub.s32 0, %v1152
      %v1154 = vsel %vm1148, %v1153, %v1152
      %vm1155 = vcmp.lt.s32.totalorder %v1045, 0
      %v1156 = vsub.s32 0, %v1045
      %v1157 = vsel %vm1155, %v1156, %v1045
      %v1158 = vshrl.u32 %v1157, 4
      %v1159 = vand.u32 %v1157, 15
      %v1160 = vsub.s32 0, %v1159
      %v1161 = vsel %vm1155, %v1160, %v1159
      %vm1162 = vcmp.lt.s32.totalorder %v1046, 0
      %v1163 = vsub.s32 0, %v1046
      %v1164 = vsel %vm1162, %v1163, %v1046
      %v1165 = vshrl.u32 %v1164, 4
      %v1166 = vand.u32 %v1164, 15
      %v1167 = vsub.s32 0, %v1166
      %v1168 = vsel %vm1162, %v1167, %v1166
      %vm1169 = vcmp.lt.s32.totalorder %v1047, 0
      %v1170 = vsub.s32 0, %v1047
      %v1171 = vsel %vm1169, %v1170, %v1047
      %v1172 = vshrl.u32 %v1171, 4
      %v1173 = vand.u32 %v1171, 15
      %v1174 = vsub.s32 0, %v1173
      %v1175 = vsel %vm1169, %v1174, %v1173
      %vm1176 = vcmp.lt.s32.totalorder %v1048, 0
      %v1177 = vsub.s32 0, %v1048
      %v1178 = vsel %vm1176, %v1177, %v1048
      %v1179 = vshrl.u32 %v1178, 4
      %v1180 = vand.u32 %v1178, 15
      %v1181 = vsub.s32 0, %v1180
      %v1182 = vsel %vm1176, %v1181, %v1180
      %vm1183 = vcmp.lt.s32.totalorder %v1049, 0
      %v1184 = vsub.s32 0, %v1049
      %v1185 = vsel %vm1183, %v1184, %v1049
      %v1186 = vshrl.u32 %v1185, 4
      %v1187 = vand.u32 %v1185, 15
      %v1188 = vsub.s32 0, %v1187
      %v1189 = vsel %vm1183, %v1188, %v1187
      %vm1190 = vcmp.lt.s32.totalorder %v1050, 0
      %v1191 = vsub.s32 0, %v1050
      %v1192 = vsel %vm1190, %v1191, %v1050
      %v1193 = vshrl.u32 %v1192, 4
      %v1194 = vand.u32 %v1192, 15
      %v1195 = vsub.s32 0, %v1194
      %v1196 = vsel %vm1190, %v1195, %v1194
      %vm1197 = vcmp.lt.s32.totalorder %v1051, 0
      %v1198 = vsub.s32 0, %v1051
      %v1199 = vsel %vm1197, %v1198, %v1051
      %v1200 = vshrl.u32 %v1199, 4
      %v1201 = vand.u32 %v1199, 15
      %v1202 = vsub.s32 0, %v1201
      %v1203 = vsel %vm1197, %v1202, %v1201
      %vm1204 = vcmp.lt.s32.totalorder %v1052, 0
      %v1205 = vsub.s32 0, %v1052
      %v1206 = vsel %vm1204, %v1205, %v1052
      %v1207 = vshrl.u32 %v1206, 4
      %v1208 = vand.u32 %v1206, 15
      %v1209 = vsub.s32 0, %v1208
      %v1210 = vsel %vm1204, %v1209, %v1208
      %vm1211 = vcmp.lt.s32.totalorder %v1053, 0
      %v1212 = vsub.s32 0, %v1053
      %v1213 = vsel %vm1211, %v1212, %v1053
      %v1214 = vshrl.u32 %v1213, 4
      %v1215 = vand.u32 %v1213, 15
      %v1216 = vsub.s32 0, %v1215
      %v1217 = vsel %vm1211, %v1216, %v1215
      %vm1218 = vcmp.lt.s32.totalorder %v1054, 0
      %v1219 = vsub.s32 0, %v1054
      %v1220 = vsel %vm1218, %v1219, %v1054
      %v1221 = vshrl.u32 %v1220, 4
      %v1222 = vand.u32 %v1220, 15
      %v1223 = vsub.s32 0, %v1222
      %v1224 = vsel %vm1218, %v1223, %v1222
      %vm1225 = vcmp.lt.s32.totalorder %v1055, 0
      %v1226 = vsub.s32 0, %v1055
      %v1227 = vsel %vm1225, %v1226, %v1055
      %v1228 = vshrl.u32 %v1227, 4
      %v1229 = vand.u32 %v1227, 15
      %v1230 = vsub.s32 0, %v1229
      %v1231 = vsel %vm1225, %v1230, %v1229
      %vm1232 = vcmp.lt.s32.totalorder %v1056, 0
      %v1233 = vsub.s32 0, %v1056
      %v1234 = vsel %vm1232, %v1233, %v1056
      %v1235 = vshrl.u32 %v1234, 4
      %v1236 = vand.u32 %v1234, 15
      %v1237 = vsub.s32 0, %v1236
      %v1238 = vsel %vm1232, %v1237, %v1236
      %vm1239 = vcmp.lt.s32.totalorder %v1057, 0
      %v1240 = vsub.s32 0, %v1057
      %v1241 = vsel %vm1239, %v1240, %v1057
      %v1242 = vshrl.u32 %v1241, 4
      %v1243 = vand.u32 %v1241, 15
      %v1244 = vsub.s32 0, %v1243
      %v1245 = vsel %vm1239, %v1244, %v1243
      %vm1246 = vcmp.lt.s32.totalorder %v1058, 0
      %v1247 = vsub.s32 0, %v1058
      %v1248 = vsel %vm1246, %v1247, %v1058
      %v1249 = vshrl.u32 %v1248, 4
      %v1250 = vand.u32 %v1248, 15
      %v1251 = vsub.s32 0, %v1250
      %v1252 = vsel %vm1246, %v1251, %v1250
      %vm1253 = vcmp.lt.s32.totalorder %v1059, 0
      %v1254 = vsub.s32 0, %v1059
      %v1255 = vsel %vm1253, %v1254, %v1059
      %v1256 = vshrl.u32 %v1255, 4
      %v1257 = vand.u32 %v1255, 15
      %v1258 = vsub.s32 0, %v1257
      %v1259 = vsel %vm1253, %v1258, %v1257
      %vm1260 = vcmp.lt.s32.totalorder %v1060, 0
      %v1261 = vsub.s32 0, %v1060
      %v1262 = vsel %vm1260, %v1261, %v1060
      %v1263 = vshrl.u32 %v1262, 4
      %v1264 = vand.u32 %v1262, 15
      %v1265 = vsub.s32 0, %v1264
      %v1266 = vsel %vm1260, %v1265, %v1264
      %vm1267 = vcmp.lt.s32.totalorder %v1061, 0
      %v1268 = vsub.s32 0, %v1061
      %v1269 = vsel %vm1267, %v1268, %v1061
      %v1270 = vshrl.u32 %v1269, 4
      %v1271 = vand.u32 %v1269, 15
      %v1272 = vsub.s32 0, %v1271
      %v1273 = vsel %vm1267, %v1272, %v1271
      %vm1274 = vcmp.lt.s32.totalorder %v1062, 0
      %v1275 = vsub.s32 0, %v1062
      %v1276 = vsel %vm1274, %v1275, %v1062
      %v1277 = vshrl.u32 %v1276, 4
      %v1278 = vand.u32 %v1276, 15
      %v1279 = vsub.s32 0, %v1278
      %v1280 = vsel %vm1274, %v1279, %v1278
      %vm1281 = vcmp.lt.s32.totalorder %v1063, 0
      %v1282 = vsub.s32 0, %v1063
      %v1283 = vsel %vm1281, %v1282, %v1063
      %v1284 = vshrl.u32 %v1283, 4
      %v1285 = vand.u32 %v1283, 15
      %v1286 = vsub.s32 0, %v1285
      %v1287 = vsel %vm1281, %v1286, %v1285
      %vm1288 = vcmp.ne.s32.totalorder %v1070, 0
      %vm1289 = vcmp.ne.s32.totalorder %v1077, 0
      %vm1290 = vcmp.ne.s32.totalorder %v1084, 0
      %vm1291 = vcmp.ne.s32.totalorder %v1091, 0
      %vm1292 = vcmp.ne.s32.totalorder %v1098, 0
      %vm1293 = vcmp.ne.s32.totalorder %v1105, 0
      %vm1294 = vcmp.ne.s32.totalorder %v1112, 0
      %vm1295 = vcmp.ne.s32.totalorder %v1119, 0
      %vm1296 = vcmp.ne.s32.totalorder %v1126, 0
      %vm1297 = vcmp.ne.s32.totalorder %v1133, 0
      %vm1298 = vcmp.ne.s32.totalorder %v1140, 0
      %vm1299 = vcmp.ne.s32.totalorder %v1147, 0
      %vm1300 = vcmp.ne.s32.totalorder %v1154, 0
      %vm1301 = vcmp.ne.s32.totalorder %v1161, 0
      %vm1302 = vcmp.ne.s32.totalorder %v1168, 0
      %vm1303 = vcmp.ne.s32.totalorder %v1175, 0
      %vm1304 = vcmp.ne.s32.totalorder %v1182, 0
      %vm1305 = vcmp.ne.s32.totalorder %v1189, 0
      %vm1306 = vcmp.ne.s32.totalorder %v1196, 0
      %vm1307 = vcmp.ne.s32.totalorder %v1203, 0
      %vm1308 = vcmp.ne.s32.totalorder %v1210, 0
      %vm1309 = vcmp.ne.s32.totalorder %v1217, 0
      %vm1310 = vcmp.ne.s32.totalorder %v1224, 0
      %vm1311 = vcmp.ne.s32.totalorder %v1231, 0
      %vm1312 = vcmp.ne.s32.totalorder %v1238, 0
      %vm1313 = vcmp.ne.s32.totalorder %v1245, 0
      %vm1314 = vcmp.ne.s32.totalorder %v1252, 0
      %vm1315 = vcmp.ne.s32.totalorder %v1259, 0
      %vm1316 = vcmp.ne.s32.totalorder %v1266, 0
      %vm1317 = vcmp.ne.s32.totalorder %v1273, 0
      %vm1318 = vcmp.ne.s32.totalorder %v1280, 0
      %vm1319 = vcmp.ne.s32.totalorder %v1287, 0
      %vm1320 = vcmp.lt.s32.totalorder %v1070, 0
      %vm1321 = vcmp.lt.s32.totalorder %v1077, 0
      %vm1322 = vcmp.lt.s32.totalorder %v1084, 0
      %vm1323 = vcmp.lt.s32.totalorder %v1091, 0
      %vm1324 = vcmp.lt.s32.totalorder %v1098, 0
      %vm1325 = vcmp.lt.s32.totalorder %v1105, 0
      %vm1326 = vcmp.lt.s32.totalorder %v1112, 0
      %vm1327 = vcmp.lt.s32.totalorder %v1119, 0
      %vm1328 = vcmp.lt.s32.totalorder %v1126, 0
      %vm1329 = vcmp.lt.s32.totalorder %v1133, 0
      %vm1330 = vcmp.lt.s32.totalorder %v1140, 0
      %vm1331 = vcmp.lt.s32.totalorder %v1147, 0
      %vm1332 = vcmp.lt.s32.totalorder %v1154, 0
      %vm1333 = vcmp.lt.s32.totalorder %v1161, 0
      %vm1334 = vcmp.lt.s32.totalorder %v1168, 0
      %vm1335 = vcmp.lt.s32.totalorder %v1175, 0
      %vm1336 = vcmp.lt.s32.totalorder %v1182, 0
      %vm1337 = vcmp.lt.s32.totalorder %v1189, 0
      %vm1338 = vcmp.lt.s32.totalorder %v1196, 0
      %vm1339 = vcmp.lt.s32.totalorder %v1203, 0
      %vm1340 = vcmp.lt.s32.totalorder %v1210, 0
      %vm1341 = vcmp.lt.s32.totalorder %v1217, 0
      %vm1342 = vcmp.lt.s32.totalorder %v1224, 0
      %vm1343 = vcmp.lt.s32.totalorder %v1231, 0
      %vm1344 = vcmp.lt.s32.totalorder %v1238, 0
      %vm1345 = vcmp.lt.s32.totalorder %v1245, 0
      %vm1346 = vcmp.lt.s32.totalorder %v1252, 0
      %vm1347 = vcmp.lt.s32.totalorder %v1259, 0
      %vm1348 = vcmp.lt.s32.totalorder %v1266, 0
      %vm1349 = vcmp.lt.s32.totalorder %v1273, 0
      %vm1350 = vcmp.lt.s32.totalorder %v1280, 0
      %vm1351 = vcmp.lt.s32.totalorder %v1287, 0
      %vm1352 = vmand %vm1320, %vm1288
      %vm1353 = vmand %vm1321, %vm1289
      %vm1354 = vmand %vm1322, %vm1290
      %vm1355 = vmand %vm1323, %vm1291
      %vm1356 = vmand %vm1324, %vm1292
      %vm1357 = vmand %vm1325, %vm1293
      %vm1358 = vmand %vm1326, %vm1294
      %vm1359 = vmand %vm1327, %vm1295
      %vm1360 = vmand %vm1328, %vm1296
      %vm1361 = vmand %vm1329, %vm1297
      %vm1362 = vmand %vm1330, %vm1298
      %vm1363 = vmand %vm1331, %vm1299
      %vm1364 = vmand %vm1332, %vm1300
      %vm1365 = vmand %vm1333, %vm1301
      %vm1366 = vmand %vm1334, %vm1302
      %vm1367 = vmand %vm1335, %vm1303
      %vm1368 = vmand %vm1336, %vm1304
      %vm1369 = vmand %vm1337, %vm1305
      %vm1370 = vmand %vm1338, %vm1306
      %vm1371 = vmand %vm1339, %vm1307
      %vm1372 = vmand %vm1340, %vm1308
      %vm1373 = vmand %vm1341, %vm1309
      %vm1374 = vmand %vm1342, %vm1310
      %vm1375 = vmand %vm1343, %vm1311
      %vm1376 = vmand %vm1344, %vm1312
      %vm1377 = vmand %vm1345, %vm1313
      %vm1378 = vmand %vm1346, %vm1314
      %vm1379 = vmand %vm1347, %vm1315
      %vm1380 = vmand %vm1348, %vm1316
      %vm1381 = vmand %vm1349, %vm1317
      %vm1382 = vmand %vm1350, %vm1318
      %vm1383 = vmand %vm1351, %vm1319
      %v1384 = vadd.s32 %v1070, 16
      %v1385 = vadd.s32 %v1077, 16
      %v1386 = vadd.s32 %v1084, 16
      %v1387 = vadd.s32 %v1091, 16
      %v1388 = vadd.s32 %v1098, 16
      %v1389 = vadd.s32 %v1105, 16
      %v1390 = vadd.s32 %v1112, 16
      %v1391 = vadd.s32 %v1119, 16
      %v1392 = vadd.s32 %v1126, 16
      %v1393 = vadd.s32 %v1133, 16
      %v1394 = vadd.s32 %v1140, 16
      %v1395 = vadd.s32 %v1147, 16
      %v1396 = vadd.s32 %v1154, 16
      %v1397 = vadd.s32 %v1161, 16
      %v1398 = vadd.s32 %v1168, 16
      %v1399 = vadd.s32 %v1175, 16
      %v1400 = vadd.s32 %v1182, 16
      %v1401 = vadd.s32 %v1189, 16
      %v1402 = vadd.s32 %v1196, 16
      %v1403 = vadd.s32 %v1203, 16
      %v1404 = vadd.s32 %v1210, 16
      %v1405 = vadd.s32 %v1217, 16
      %v1406 = vadd.s32 %v1224, 16
      %v1407 = vadd.s32 %v1231, 16
      %v1408 = vadd.s32 %v1238, 16
      %v1409 = vadd.s32 %v1245, 16
      %v1410 = vadd.s32 %v1252, 16
      %v1411 = vadd.s32 %v1259, 16
      %v1412 = vadd.s32 %v1266, 16
      %v1413 = vadd.s32 %v1273, 16
      %v1414 = vadd.s32 %v1280, 16
      %v1415 = vadd.s32 %v1287, 16
      %v1416 = vsel %vm1352, %v1384, %v1070
      %v1417 = vsel %vm1353, %v1385, %v1077
      %v1418 = vsel %vm1354, %v1386, %v1084
      %v1419 = vsel %vm1355, %v1387, %v1091
      %v1420 = vsel %vm1356, %v1388, %v1098
      %v1421 = vsel %vm1357, %v1389, %v1105
      %v1422 = vsel %vm1358, %v1390, %v1112
      %v1423 = vsel %vm1359, %v1391, %v1119
      %v1424 = vsel %vm1360, %v1392, %v1126
      %v1425 = vsel %vm1361, %v1393, %v1133
      %v1426 = vsel %vm1362, %v1394, %v1140
      %v1427 = vsel %vm1363, %v1395, %v1147
      %v1428 = vsel %vm1364, %v1396, %v1154
      %v1429 = vsel %vm1365, %v1397, %v1161
      %v1430 = vsel %vm1366, %v1398, %v1168
      %v1431 = vsel %vm1367, %v1399, %v1175
      %v1432 = vsel %vm1368, %v1400, %v1182
      %v1433 = vsel %vm1369, %v1401, %v1189
      %v1434 = vsel %vm1370, %v1402, %v1196
      %v1435 = vsel %vm1371, %v1403, %v1203
      %v1436 = vsel %vm1372, %v1404, %v1210
      %v1437 = vsel %vm1373, %v1405, %v1217
      %v1438 = vsel %vm1374, %v1406, %v1224
      %v1439 = vsel %vm1375, %v1407, %v1231
      %v1440 = vsel %vm1376, %v1408, %v1238
      %v1441 = vsel %vm1377, %v1409, %v1245
      %v1442 = vsel %vm1378, %v1410, %v1252
      %v1443 = vsel %vm1379, %v1411, %v1259
      %v1444 = vsel %vm1380, %v1412, %v1266
      %v1445 = vsel %vm1381, %v1413, %v1273
      %v1446 = vsel %vm1382, %v1414, %v1280
      %v1447 = vsel %vm1383, %v1415, %v1287
      %vm1448 = vcmp.eq.s32.totalorder %v1416, 0
      %vm1449 = vcmp.eq.s32.totalorder %v1417, 0
      %vm1450 = vcmp.eq.s32.totalorder %v1418, 0
      %vm1451 = vcmp.eq.s32.totalorder %v1419, 0
      %vm1452 = vcmp.eq.s32.totalorder %v1420, 0
      %vm1453 = vcmp.eq.s32.totalorder %v1421, 0
      %vm1454 = vcmp.eq.s32.totalorder %v1422, 0
      %vm1455 = vcmp.eq.s32.totalorder %v1423, 0
      %vm1456 = vcmp.eq.s32.totalorder %v1424, 0
      %vm1457 = vcmp.eq.s32.totalorder %v1425, 0
      %vm1458 = vcmp.eq.s32.totalorder %v1426, 0
      %vm1459 = vcmp.eq.s32.totalorder %v1427, 0
      %vm1460 = vcmp.eq.s32.totalorder %v1428, 0
      %vm1461 = vcmp.eq.s32.totalorder %v1429, 0
      %vm1462 = vcmp.eq.s32.totalorder %v1430, 0
      %vm1463 = vcmp.eq.s32.totalorder %v1431, 0
      %vm1464 = vcmp.eq.s32.totalorder %v1432, 0
      %vm1465 = vcmp.eq.s32.totalorder %v1433, 0
      %vm1466 = vcmp.eq.s32.totalorder %v1434, 0
      %vm1467 = vcmp.eq.s32.totalorder %v1435, 0
      %vm1468 = vcmp.eq.s32.totalorder %v1436, 0
      %vm1469 = vcmp.eq.s32.totalorder %v1437, 0
      %vm1470 = vcmp.eq.s32.totalorder %v1438, 0
      %vm1471 = vcmp.eq.s32.totalorder %v1439, 0
      %vm1472 = vcmp.eq.s32.totalorder %v1440, 0
      %vm1473 = vcmp.eq.s32.totalorder %v1441, 0
      %vm1474 = vcmp.eq.s32.totalorder %v1442, 0
      %vm1475 = vcmp.eq.s32.totalorder %v1443, 0
      %vm1476 = vcmp.eq.s32.totalorder %v1444, 0
      %vm1477 = vcmp.eq.s32.totalorder %v1445, 0
      %vm1478 = vcmp.eq.s32.totalorder %v1446, 0
      %vm1479 = vcmp.eq.s32.totalorder %v1447, 0
      %vm1480 = vcmp.eq.s32.totalorder %v1416, 15
      %vm1481 = vcmp.eq.s32.totalorder %v1417, 15
      %vm1482 = vcmp.eq.s32.totalorder %v1418, 15
      %vm1483 = vcmp.eq.s32.totalorder %v1419, 15
      %vm1484 = vcmp.eq.s32.totalorder %v1420, 15
      %vm1485 = vcmp.eq.s32.totalorder %v1421, 15
      %vm1486 = vcmp.eq.s32.totalorder %v1422, 15
      %vm1487 = vcmp.eq.s32.totalorder %v1423, 15
      %vm1488 = vcmp.eq.s32.totalorder %v1424, 15
      %vm1489 = vcmp.eq.s32.totalorder %v1425, 15
      %vm1490 = vcmp.eq.s32.totalorder %v1426, 15
      %vm1491 = vcmp.eq.s32.totalorder %v1427, 15
      %vm1492 = vcmp.eq.s32.totalorder %v1428, 15
      %vm1493 = vcmp.eq.s32.totalorder %v1429, 15
      %vm1494 = vcmp.eq.s32.totalorder %v1430, 15
      %vm1495 = vcmp.eq.s32.totalorder %v1431, 15
      %vm1496 = vcmp.eq.s32.totalorder %v1432, 15
      %vm1497 = vcmp.eq.s32.totalorder %v1433, 15
      %vm1498 = vcmp.eq.s32.totalorder %v1434, 15
      %vm1499 = vcmp.eq.s32.totalorder %v1435, 15
      %vm1500 = vcmp.eq.s32.totalorder %v1436, 15
      %vm1501 = vcmp.eq.s32.totalorder %v1437, 15
      %vm1502 = vcmp.eq.s32.totalorder %v1438, 15
      %vm1503 = vcmp.eq.s32.totalorder %v1439, 15
      %vm1504 = vcmp.eq.s32.totalorder %v1440, 15
      %vm1505 = vcmp.eq.s32.totalorder %v1441, 15
      %vm1506 = vcmp.eq.s32.totalorder %v1442, 15
      %vm1507 = vcmp.eq.s32.totalorder %v1443, 15
      %vm1508 = vcmp.eq.s32.totalorder %v1444, 15
      %vm1509 = vcmp.eq.s32.totalorder %v1445, 15
      %vm1510 = vcmp.eq.s32.totalorder %v1446, 15
      %vm1511 = vcmp.eq.s32.totalorder %v1447, 15
      %v1512 = vld [vmem:[#allocation2] sm:$0x80]
      %v1513 = vld [vmem:[#allocation2 + $0x8] sm:$0xff]
      %v1514 = vld [vmem:[#allocation2 + $0x10] sm:$0xff]
      %v1515 = vld [vmem:[#allocation2 + $0x18] sm:$0xff]
      %v1516 = vld [vmem:[#allocation2 + $0x20] sm:$0xff]
      %v1517 = vld [vmem:[#allocation2 + $0x28] sm:$0xff]
      %v1518 = vld [vmem:[#allocation2 + $0x30] sm:$0xff]
      %v1519 = vld [vmem:[#allocation2 + $0x38] sm:$0xff]
      %v1520 = vld [vmem:[#allocation2 + $0x40] sm:$0xff]
      %v1521 = vld [vmem:[#allocation2 + $0x48] sm:$0xff]
      %v1522 = vld [vmem:[#allocation2 + $0x50] sm:$0xff]
      %v1523 = vld [vmem:[#allocation2 + $0x58] sm:$0xff]
      %v1524 = vld [vmem:[#allocation2 + $0x60] sm:$0xff]
      %v1525 = vld [vmem:[#allocation2 + $0x68] sm:$0xff]
      %v1526 = vld [vmem:[#allocation2 + $0x70] sm:$0xff]
      %v1527 = vld [vmem:[#allocation2 + $0x78] sm:$0xff]
      %v1528 = vld [vmem:[#allocation2 + $0x80] sm:$0xff]
      %v1529 = vsel %vm1448, 1, 0
      %v1530 = vsel %vm1449, 1, 0
      %v1531 = vsel %vm1450, 1, 0
      %v1532 = vsel %vm1451, 1, 0
      %v1533 = vsel %vm1452, 1, 0
      %v1534 = vsel %vm1453, 1, 0
      %v1535 = vsel %vm1454, 1, 0
      %v1536 = vsel %vm1455, 1, 0
      %v1537 = vsel %vm1456, 1, 0
      %v1538 = vsel %vm1457, 1, 0
      %v1539 = vsel %vm1458, 1, 0
      %v1540 = vsel %vm1459, 1, 0
      %v1541 = vsel %vm1460, 1, 0
      %v1542 = vsel %vm1461, 1, 0
      %v1543 = vsel %vm1462, 1, 0
      %v1544 = vsel %vm1463, 1, 0
      %v1545 = vsel %vm1464, 1, 0
      %v1546 = vsel %vm1465, 1, 0
      %v1547 = vsel %vm1466, 1, 0
      %v1548 = vsel %vm1467, 1, 0
      %v1549 = vsel %vm1468, 1, 0
      %v1550 = vsel %vm1469, 1, 0
      %v1551 = vsel %vm1470, 1, 0
      %v1552 = vsel %vm1471, 1, 0
      %v1553 = vsel %vm1472, 1, 0
      %v1554 = vsel %vm1473, 1, 0
      %v1555 = vsel %vm1474, 1, 0
      %v1556 = vsel %vm1475, 1, 0
      %v1557 = vsel %vm1476, 1, 0
      %v1558 = vsel %vm1477, 1, 0
      %v1559 = vsel %vm1478, 1, 0
      %v1560 = vsel %vm1479, 1, 0
      %vm1561 = vcmp.eq.s32.totalorder %v1529, 1
      %vm1562 = vcmp.eq.s32.totalorder %v1530, 1
      %vm1563 = vcmp.eq.s32.totalorder %v1531, 1
      %vm1564 = vcmp.eq.s32.totalorder %v1532, 1
      %vm1565 = vcmp.eq.s32.totalorder %v1533, 1
      %vm1566 = vcmp.eq.s32.totalorder %v1534, 1
      %vm1567 = vcmp.eq.s32.totalorder %v1535, 1
      %vm1568 = vcmp.eq.s32.totalorder %v1536, 1
      %vm1569 = vcmp.eq.s32.totalorder %v1537, 1
      %vm1570 = vcmp.eq.s32.totalorder %v1538, 1
      %vm1571 = vcmp.eq.s32.totalorder %v1539, 1
      %vm1572 = vcmp.eq.s32.totalorder %v1540, 1
      %vm1573 = vcmp.eq.s32.totalorder %v1541, 1
      %vm1574 = vcmp.eq.s32.totalorder %v1542, 1
      %vm1575 = vcmp.eq.s32.totalorder %v1543, 1
      %vm1576 = vcmp.eq.s32.totalorder %v1544, 1
      %vm1577 = vcmp.eq.s32.totalorder %v1545, 1
      %vm1578 = vcmp.eq.s32.totalorder %v1546, 1
      %vm1579 = vcmp.eq.s32.totalorder %v1547, 1
      %vm1580 = vcmp.eq.s32.totalorder %v1548, 1
      %vm1581 = vcmp.eq.s32.totalorder %v1549, 1
      %vm1582 = vcmp.eq.s32.totalorder %v1550, 1
      %vm1583 = vcmp.eq.s32.totalorder %v1551, 1
      %vm1584 = vcmp.eq.s32.totalorder %v1552, 1
      %vm1585 = vcmp.eq.s32.totalorder %v1553, 1
      %vm1586 = vcmp.eq.s32.totalorder %v1554, 1
      %vm1587 = vcmp.eq.s32.totalorder %v1555, 1
      %vm1588 = vcmp.eq.s32.totalorder %v1556, 1
      %vm1589 = vcmp.eq.s32.totalorder %v1557, 1
      %vm1590 = vcmp.eq.s32.totalorder %v1558, 1
      %vm1591 = vcmp.eq.s32.totalorder %v1559, 1
      %vm1592 = vcmp.eq.s32.totalorder %v1560, 1
      %vm1593 = vmpackc.low %vm1561, %vm1561
      %vm1594 = vmpackc.low %vm1562, %vm1562
      %vm1595 = vmpackc.low %vm1563, %vm1563
      %vm1596 = vmpackc.low %vm1564, %vm1564
      %vm1597 = vmpackc.low %vm1565, %vm1565
      %vm1598 = vmpackc.low %vm1566, %vm1566
      %vm1599 = vmpackc.low %vm1567, %vm1567
      %vm1600 = vmpackc.low %vm1568, %vm1568
      %vm1601 = vmpackc.low %vm1569, %vm1569
      %vm1602 = vmpackc.low %vm1570, %vm1570
      %vm1603 = vmpackc.low %vm1571, %vm1571
      %vm1604 = vmpackc.low %vm1572, %vm1572
      %vm1605 = vmpackc.low %vm1573, %vm1573
      %vm1606 = vmpackc.low %vm1574, %vm1574
      %vm1607 = vmpackc.low %vm1575, %vm1575
      %vm1608 = vmpackc.low %vm1576, %vm1576
      %vm1609 = vmpackc.low %vm1577, %vm1577
      %vm1610 = vmpackc.low %vm1578, %vm1578
      %vm1611 = vmpackc.low %vm1579, %vm1579
      %vm1612 = vmpackc.low %vm1580, %vm1580
      %vm1613 = vmpackc.low %vm1581, %vm1581
      %vm1614 = vmpackc.low %vm1582, %vm1582
      %vm1615 = vmpackc.low %vm1583, %vm1583
      %vm1616 = vmpackc.low %vm1584, %vm1584
      %vm1617 = vmpackc.low %vm1585, %vm1585
      %vm1618 = vmpackc.low %vm1586, %vm1586
      %vm1619 = vmpackc.low %vm1587, %vm1587
      %vm1620 = vmpackc.low %vm1588, %vm1588
      %vm1621 = vmpackc.low %vm1589, %vm1589
      %vm1622 = vmpackc.low %vm1590, %vm1590
      %vm1623 = vmpackc.low %vm1591, %vm1591
      %vm1624 = vmpackc.low %vm1592, %vm1592
      %v1625 = vsel %vm1593, 65537, 0
      %v1626 = vsel %vm1594, 65537, 0
      %v1627 = vsel %vm1595, 65537, 0
      %v1628 = vsel %vm1596, 65537, 0
      %v1629 = vsel %vm1597, 65537, 0
      %v1630 = vsel %vm1598, 65537, 0
      %v1631 = vsel %vm1599, 65537, 0
      %v1632 = vsel %vm1600, 65537, 0
      %v1633 = vsel %vm1601, 65537, 0
      %v1634 = vsel %vm1602, 65537, 0
      %v1635 = vsel %vm1603, 65537, 0
      %v1636 = vsel %vm1604, 65537, 0
      %v1637 = vsel %vm1605, 65537, 0
      %v1638 = vsel %vm1606, 65537, 0
      %v1639 = vsel %vm1607, 65537, 0
      %v1640 = vsel %vm1608, 65537, 0
      %v1641 = vsel %vm1609, 65537, 0
      %v1642 = vsel %vm1610, 65537, 0
      %v1643 = vsel %vm1611, 65537, 0
      %v1644 = vsel %vm1612, 65537, 0
      %v1645 = vsel %vm1613, 65537, 0
      %v1646 = vsel %vm1614, 65537, 0
      %v1647 = vsel %vm1615, 65537, 0
      %v1648 = vsel %vm1616, 65537, 0
      %v1649 = vsel %vm1617, 65537, 0
      %v1650 = vsel %vm1618, 65537, 0
      %v1651 = vsel %vm1619, 65537, 0
      %v1652 = vsel %vm1620, 65537, 0
      %v1653 = vsel %vm1621, 65537, 0
      %v1654 = vsel %vm1622, 65537, 0
      %v1655 = vsel %vm1623, 65537, 0
      %v1656 = vsel %vm1624, 65537, 0
      %v1657 = vunpack.c.l.b16 %v1625
      %v1658 = vunpack.c.l.b16 %v1626
      %v1659 = vunpack.c.l.b16 %v1627
      %v1660 = vunpack.c.l.b16 %v1628
      %v1661 = vunpack.c.l.b16 %v1629
      %v1662 = vunpack.c.l.b16 %v1630
      %v1663 = vunpack.c.l.b16 %v1631
      %v1664 = vunpack.c.l.b16 %v1632
      %v1665 = vunpack.c.l.b16 %v1633
      %v1666 = vunpack.c.l.b16 %v1634
      %v1667 = vunpack.c.l.b16 %v1635
      %v1668 = vunpack.c.l.b16 %v1636
      %v1669 = vunpack.c.l.b16 %v1637
      %v1670 = vunpack.c.l.b16 %v1638
      %v1671 = vunpack.c.l.b16 %v1639
      %v1672 = vunpack.c.l.b16 %v1640
      %v1673 = vunpack.c.l.b16 %v1641
      %v1674 = vunpack.c.l.b16 %v1642
      %v1675 = vunpack.c.l.b16 %v1643
      %v1676 = vunpack.c.l.b16 %v1644
      %v1677 = vunpack.c.l.b16 %v1645
      %v1678 = vunpack.c.l.b16 %v1646
      %v1679 = vunpack.c.l.b16 %v1647
      %v1680 = vunpack.c.l.b16 %v1648
      %v1681 = vunpack.c.l.b16 %v1649
      %v1682 = vunpack.c.l.b16 %v1650
      %v1683 = vunpack.c.l.b16 %v1651
      %v1684 = vunpack.c.l.b16 %v1652
      %v1685 = vunpack.c.l.b16 %v1653
      %v1686 = vunpack.c.l.b16 %v1654
      %v1687 = vunpack.c.l.b16 %v1655
      %v1688 = vunpack.c.l.b16 %v1656
      %v1689 = vpack.c.b16 %v1658, %v1657
      %v1690 = vpack.c.b16 %v1660, %v1659
      %v1691 = vpack.c.b16 %v1662, %v1661
      %v1692 = vpack.c.b16 %v1664, %v1663
      %v1693 = vpack.c.b16 %v1666, %v1665
      %v1694 = vpack.c.b16 %v1668, %v1667
      %v1695 = vpack.c.b16 %v1670, %v1669
      %v1696 = vpack.c.b16 %v1672, %v1671
      %v1697 = vpack.c.b16 %v1674, %v1673
      %v1698 = vpack.c.b16 %v1676, %v1675
      %v1699 = vpack.c.b16 %v1678, %v1677
      %v1700 = vpack.c.b16 %v1680, %v1679
      %v1701 = vpack.c.b16 %v1682, %v1681
      %v1702 = vpack.c.b16 %v1684, %v1683
      %v1703 = vpack.c.b16 %v1686, %v1685
      %v1704 = vpack.c.b16 %v1688, %v1687
      %vm1705 = vsmask.f32 7424
      %v1707 = vshll.u32 %v1689, 16
      %v1709 = vrot.slane %v1707, 1
      %v1710 = vshrl.u32 %v1689, 16
      %v1712 = vor.u32 %v1710, %v1709
      %v1714 = vshll.u32 %v1690, 16
      %v1716 = vrot.slane %v1714, 1
      %v1717 = vsel %vm1705, %v1712, %v1716
      %v1718 = vshrl.u32 %v1690, 16
      %v1720 = vor.u32 %v1718, %v1716
      %v1722 = vshll.u32 %v1691, 16
      %v1724 = vrot.slane %v1722, 1
      %v1725 = vsel %vm1705, %v1720, %v1724
      %v1726 = vshrl.u32 %v1691, 16
      %v1728 = vor.u32 %v1726, %v1724
      %v1730 = vshll.u32 %v1692, 16
      %v1732 = vrot.slane %v1730, 1
      %v1733 = vsel %vm1705, %v1728, %v1732
      %v1734 = vshrl.u32 %v1692, 16
      %v1736 = vor.u32 %v1734, %v1732
      %v1738 = vshll.u32 %v1693, 16
      %v1740 = vrot.slane %v1738, 1
      %v1741 = vsel %vm1705, %v1736, %v1740
      %v1742 = vshrl.u32 %v1693, 16
      %v1744 = vor.u32 %v1742, %v1740
      %v1746 = vshll.u32 %v1694, 16
      %v1748 = vrot.slane %v1746, 1
      %v1749 = vsel %vm1705, %v1744, %v1748
      %v1750 = vshrl.u32 %v1694, 16
      %v1752 = vor.u32 %v1750, %v1748
      %v1754 = vshll.u32 %v1695, 16
      %v1756 = vrot.slane %v1754, 1
      %v1757 = vsel %vm1705, %v1752, %v1756
      %v1758 = vshrl.u32 %v1695, 16
      %v1760 = vor.u32 %v1758, %v1756
      %v1762 = vshll.u32 %v1696, 16
      %v1764 = vrot.slane %v1762, 1
      %v1765 = vsel %vm1705, %v1760, %v1764
      %v1766 = vshrl.u32 %v1696, 16
      %v1768 = vor.u32 %v1766, %v1764
      %v1770 = vshll.u32 %v1697, 16
      %v1772 = vrot.slane %v1770, 1
      %v1773 = vsel %vm1705, %v1768, %v1772
      %v1774 = vshrl.u32 %v1697, 16
      %v1776 = vor.u32 %v1774, %v1772
      %v1778 = vshll.u32 %v1698, 16
      %v1780 = vrot.slane %v1778, 1
      %v1781 = vsel %vm1705, %v1776, %v1780
      %v1782 = vshrl.u32 %v1698, 16
      %v1784 = vor.u32 %v1782, %v1780
      %v1786 = vshll.u32 %v1699, 16
      %v1788 = vrot.slane %v1786, 1
      %v1789 = vsel %vm1705, %v1784, %v1788
      %v1790 = vshrl.u32 %v1699, 16
      %v1792 = vor.u32 %v1790, %v1788
      %v1794 = vshll.u32 %v1700, 16
      %v1796 = vrot.slane %v1794, 1
      %v1797 = vsel %vm1705, %v1792, %v1796
      %v1798 = vshrl.u32 %v1700, 16
      %v1800 = vor.u32 %v1798, %v1796
      %v1802 = vshll.u32 %v1701, 16
      %v1804 = vrot.slane %v1802, 1
      %v1805 = vsel %vm1705, %v1800, %v1804
      %v1806 = vshrl.u32 %v1701, 16
      %v1808 = vor.u32 %v1806, %v1804
      %v1810 = vshll.u32 %v1702, 16
      %v1812 = vrot.slane %v1810, 1
      %v1813 = vsel %vm1705, %v1808, %v1812
      %v1814 = vshrl.u32 %v1702, 16
      %v1816 = vor.u32 %v1814, %v1812
      %v1818 = vshll.u32 %v1703, 16
      %v1820 = vrot.slane %v1818, 1
      %v1821 = vsel %vm1705, %v1816, %v1820
      %v1822 = vshrl.u32 %v1703, 16
      %v1824 = vor.u32 %v1822, %v1820
      %v1826 = vshll.u32 %v1704, 16
      %v1828 = vrot.slane %v1826, 1
      %v1829 = vsel %vm1705, %v1824, %v1828
      %v1830 = vshrl.u32 %v1704, 16
      %v1832 = vor.u32 %v1830, %v1828
      %vm1833 = vcmp.ne.s16.totalorder %v1709, 0
      %vm1834 = vcmp.ne.s16.totalorder %v1717, 0
      %vm1835 = vcmp.ne.s16.totalorder %v1725, 0
      %vm1836 = vcmp.ne.s16.totalorder %v1733, 0
      %vm1837 = vcmp.ne.s16.totalorder %v1741, 0
      %vm1838 = vcmp.ne.s16.totalorder %v1749, 0
      %vm1839 = vcmp.ne.s16.totalorder %v1757, 0
      %vm1840 = vcmp.ne.s16.totalorder %v1765, 0
      %vm1841 = vcmp.ne.s16.totalorder %v1773, 0
      %vm1842 = vcmp.ne.s16.totalorder %v1781, 0
      %vm1843 = vcmp.ne.s16.totalorder %v1789, 0
      %vm1844 = vcmp.ne.s16.totalorder %v1797, 0
      %vm1845 = vcmp.ne.s16.totalorder %v1805, 0
      %vm1846 = vcmp.ne.s16.totalorder %v1813, 0
      %vm1847 = vcmp.ne.s16.totalorder %v1821, 0
      %vm1848 = vcmp.ne.s16.totalorder %v1829, 0
      %vm1849 = vcmp.ne.s16.totalorder %v1832, 0
      %v1850 = vsel %vm1833, 0, %v1512
      %v1851 = vsel %vm1834, 0, %v1513
      %v1852 = vsel %vm1835, 0, %v1514
      %v1853 = vsel %vm1836, 0, %v1515
      %v1854 = vsel %vm1837, 0, %v1516
      %v1855 = vsel %vm1838, 0, %v1517
      %v1856 = vsel %vm1839, 0, %v1518
      %v1857 = vsel %vm1840, 0, %v1519
      %v1858 = vsel %vm1841, 0, %v1520
      %v1859 = vsel %vm1842, 0, %v1521
      %v1860 = vsel %vm1843, 0, %v1522
      %v1861 = vsel %vm1844, 0, %v1523
      %v1862 = vsel %vm1845, 0, %v1524
      %v1863 = vsel %vm1846, 0, %v1525
      %v1864 = vsel %vm1847, 0, %v1526
      %v1865 = vsel %vm1848, 0, %v1527
      %v1866 = vsel %vm1849, 0, %v1528
      %v1867 = vld [vmem:[%s5] sm:$0x3]
      %s1868 = scalar_lea.vmem %s5, 2
      %v1869 = vld [vmem:[%s1868] sm:$0x3]
      %v1871 = vsel %vm888, %v1513, 0
      %v1874 = vsel %vm888, %v1514, 0
      %v1877 = vsel %vm888, %v1515, 0
      %v1880 = vsel %vm888, %v1516, 0
      %v1883 = vsel %vm888, %v1517, 0
      %v1886 = vsel %vm888, %v1518, 0
      %v1889 = vsel %vm888, %v1519, 0
      %v1892 = vsel %vm888, %v1520, 0
      %v1895 = vsel %vm888, %v1521, 0
      %v1898 = vsel %vm888, %v1522, 0
      %v1901 = vsel %vm888, %v1523, 0
      %v1904 = vsel %vm888, %v1524, 0
      %v1907 = vsel %vm888, %v1525, 0
      %v1910 = vsel %vm888, %v1526, 0
      %v1913 = vsel %vm888, %v1527, 0
      %v1916 = vsel %vm888, %v1528, 0
      %vm1918 = vcmask 1041408
      %v1920 = vsel %vm1918, %v1869, 0
      %1922 = vmatprep.subr.bf16.mxu0 0
      %1923 = vmatpush1.bf16.msra.mxu0 %v1920
      %1924 = vmatprep.subr.bf16.mxu0 0
      %1925 = vmatpush1.bf16.msra.mxu0 0
      %1926 = vmatprep.subr.bf16.mxu0 0
      %1927 = vmatpush1.bf16.msra.mxu0 0
      %1928 = vmatprep.subr.bf16.mxu0 0
      %1929 = vmatpush1.bf16.msra.mxu0 0
      %1930 = vmatprep.subr.bf16.mxu0 0
      %1931 = vmatpush1.bf16.msra.mxu0 0
      %1932 = vmatprep.subr.bf16.mxu0 0
      %1933 = vmatpush1.bf16.msra.mxu0 0
      %1934 = vmatprep.subr.bf16.mxu0 0
      %1935 = vmatpush1.bf16.msra.mxu0 0
      %1936 = vmatprep.subr.bf16.mxu0 0
      %1937 = vmatpush1.bf16.msra.mxu0 0
      %1938 = vmatprep.subr.bf16.mxu0 0
      %1939 = vmatpush1.bf16.msra.mxu0 0
      %1940 = vmatprep.subr.bf16.mxu0 0
      %1941 = vmatpush1.bf16.msra.mxu0 0
      %1942 = vmatprep.subr.bf16.mxu0 0
      %1943 = vmatpush1.bf16.msra.mxu0 0
      %1944 = vmatprep.subr.bf16.mxu0 0
      %1945 = vmatpush1.bf16.msra.mxu0 0
      %1946 = vmatprep.subr.bf16.mxu0 0
      %1947 = vmatpush1.bf16.msra.mxu0 0
      %1948 = vmatprep.subr.bf16.mxu0 0
      %1949 = vmatpush1.bf16.msra.mxu0 0
      %1950 = vmatprep.subr.bf16.mxu0 0
      %1951 = vmatpush1.bf16.msra.mxu0 0
      %1952 = vmatprep.subr.bf16.mxu0 0
      %1953 = vmatpush1.bf16.msra.mxu0 0
      %1954 = vmatprep.mubr.bf16.mxu0 0
      %1955 = vmatmul.mubr.bf16.gmra.mrb[0].mxu0 %v1871
      %v1956 = vpop.f32.mrb[0].mxu0
      %v1957 = vadd.f32 0.0, %v1956
      %v1958 = vpop.f32.mrb[0].mxu0
      %v1959 = vpop.f32.mrb[0].mxu0
      %v1960 = vadd.f32 0.0, %v1959
      %v1961 = vpop.f32.mrb[0].mxu0
      %1962 = vmatprep.mubr.bf16.mxu0 0
      %1963 = vmatmul.mubr.bf16.gmra.mrb[0].mxu0 %v1874
      %v1964 = vpop.f32.mrb[0].mxu0
      %v1965 = vadd.f32 0.0, %v1964
      %v1966 = vpop.f32.mrb[0].mxu0
      %v1967 = vpop.f32.mrb[0].mxu0
      %v1968 = vadd.f32 0.0, %v1967
      %v1969 = vpop.f32.mrb[0].mxu0
      %1970 = vmatprep.mubr.bf16.mxu0 0
      %1971 = vmatmul.mubr.bf16.gmra.mrb[0].mxu0 %v1877
      %v1972 = vpop.f32.mrb[0].mxu0
      %v1973 = vadd.f32 0.0, %v1972
      %v1974 = vpop.f32.mrb[0].mxu0
      %v1975 = vpop.f32.mrb[0].mxu0
      %v1976 = vadd.f32 0.0, %v1975
      %v1977 = vpop.f32.mrb[0].mxu0
      %1978 = vmatprep.mubr.bf16.mxu0 0
      %1979 = vmatmul.mubr.bf16.gmra.mrb[0].mxu0 %v1880
      %v1980 = vpop.f32.mrb[0].mxu0
      %v1981 = vadd.f32 0.0, %v1980
      %v1982 = vpop.f32.mrb[0].mxu0
      %v1983 = vpop.f32.mrb[0].mxu0
      %v1984 = vadd.f32 0.0, %v1983
      %v1985 = vpop.f32.mrb[0].mxu0
      %1986 = vmatprep.mubr.bf16.mxu0 0
      %1987 = vmatmul.mubr.bf16.gmra.mrb[0].mxu0 %v1883
      %v1988 = vpop.f32.mrb[0].mxu0
      %v1989 = vadd.f32 0.0, %v1988
      %v1990 = vpop.f32.mrb[0].mxu0
      %v1991 = vpop.f32.mrb[0].mxu0
      %v1992 = vadd.f32 0.0, %v1991
      %v1993 = vpop.f32.mrb[0].mxu0
      %1994 = vmatprep.mubr.bf16.mxu0 0
      %1995 = vmatmul.mubr.bf16.gmra.mrb[0].mxu0 %v1886
      %v1996 = vpop.f32.mrb[0].mxu0
      %v1997 = vadd.f32 0.0, %v1996
      %v1998 = vpop.f32.mrb[0].mxu0
      %v1999 = vpop.f32.mrb[0].mxu0
      %v2000 = vadd.f32 0.0, %v1999
      %v2001 = vpop.f32.mrb[0].mxu0
      %2002 = vmatprep.mubr.bf16.mxu0 0
      %2003 = vmatmul.mubr.bf16.gmra.mrb[0].mxu0 %v1889
      %v2004 = vpop.f32.mrb[0].mxu0
      %v2005 = vadd.f32 0.0, %v2004
      %v2006 = vpop.f32.mrb[0].mxu0
      %v2007 = vpop.f32.mrb[0].mxu0
      %v2008 = vadd.f32 0.0, %v2007
      %v2009 = vpop.f32.mrb[0].mxu0
      %2010 = vmatprep.mubr.bf16.mxu0 0
      %2011 = vmatmul.mubr.bf16.gmra.mrb[0].mxu0 %v1892
      %v2012 = vpop.f32.mrb[0].mxu0
      %v2013 = vadd.f32 0.0, %v2012
      %v2014 = vpop.f32.mrb[0].mxu0
      %v2015 = vpop.f32.mrb[0].mxu0
      %v2016 = vadd.f32 0.0, %v2015
      %v2017 = vpop.f32.mrb[0].mxu0
      %2018 = vmatprep.mubr.bf16.mxu0 0
      %2019 = vmatmul.mubr.bf16.gmra.mrb[0].mxu0 %v1895
      %v2020 = vpop.f32.mrb[0].mxu0
      %v2021 = vadd.f32 0.0, %v2020
      %v2022 = vpop.f32.mrb[0].mxu0
      %v2023 = vpop.f32.mrb[0].mxu0
      %v2024 = vadd.f32 0.0, %v2023
      %v2025 = vpop.f32.mrb[0].mxu0
      %2026 = vmatprep.mubr.bf16.mxu0 0
      %2027 = vmatmul.mubr.bf16.gmra.mrb[0].mxu0 %v1898
      %v2028 = vpop.f32.mrb[0].mxu0
      %v2029 = vadd.f32 0.0, %v2028
      %v2030 = vpop.f32.mrb[0].mxu0
      %v2031 = vpop.f32.mrb[0].mxu0
      %v2032 = vadd.f32 0.0, %v2031
      %v2033 = vpop.f32.mrb[0].mxu0
      %2034 = vmatprep.mubr.bf16.mxu0 0
      %2035 = vmatmul.mubr.bf16.gmra.mrb[0].mxu0 %v1901
      %v2036 = vpop.f32.mrb[0].mxu0
      %v2037 = vadd.f32 0.0, %v2036
      %v2038 = vpop.f32.mrb[0].mxu0
      %v2039 = vpop.f32.mrb[0].mxu0
      %v2040 = vadd.f32 0.0, %v2039
      %v2041 = vpop.f32.mrb[0].mxu0
      %2042 = vmatprep.mubr.bf16.mxu0 0
      %2043 = vmatmul.mubr.bf16.gmra.mrb[0].mxu0 %v1904
      %v2044 = vpop.f32.mrb[0].mxu0
      %v2045 = vadd.f32 0.0, %v2044
      %v2046 = vpop.f32.mrb[0].mxu0
      %v2047 = vpop.f32.mrb[0].mxu0
      %v2048 = vadd.f32 0.0, %v2047
      %v2049 = vpop.f32.mrb[0].mxu0
      %2050 = vmatprep.mubr.bf16.mxu0 0
      %2051 = vmatmul.mubr.bf16.gmra.mrb[0].mxu0 %v1907
      %v2052 = vpop.f32.mrb[0].mxu0
      %v2053 = vadd.f32 0.0, %v2052
      %v2054 = vpop.f32.mrb[0].mxu0
      %v2055 = vpop.f32.mrb[0].mxu0
      %v2056 = vadd.f32 0.0, %v2055
      %v2057 = vpop.f32.mrb[0].mxu0
      %2058 = vmatprep.mubr.bf16.mxu0 0
      %2059 = vmatmul.mubr.bf16.gmra.mrb[0].mxu0 %v1910
      %v2060 = vpop.f32.mrb[0].mxu0
      %v2061 = vadd.f32 0.0, %v2060
      %v2062 = vpop.f32.mrb[0].mxu0
      %v2063 = vpop.f32.mrb[0].mxu0
      %v2064 = vadd.f32 0.0, %v2063
      %v2065 = vpop.f32.mrb[0].mxu0
      %2066 = vmatprep.mubr.bf16.mxu0 0
      %2067 = vmatmul.mubr.bf16.gmra.mrb[0].mxu0 %v1913
      %v2068 = vpop.f32.mrb[0].mxu0
      %v2069 = vadd.f32 0.0, %v2068
      %v2070 = vpop.f32.mrb[0].mxu0
      %v2071 = vpop.f32.mrb[0].mxu0
      %v2072 = vadd.f32 0.0, %v2071
      %v2073 = vpop.f32.mrb[0].mxu0
      %2074 = vmatprep.mubr.bf16.mxu0 0
      %2075 = vmatmul.mubr.bf16.gmra.mrb[0].mxu0 %v1916
      %v2076 = vpop.f32.mrb[0].mxu0
      %v2077 = vadd.f32 0.0, %v2076
      %v2078 = vpop.f32.mrb[0].mxu0
      %v2079 = vpop.f32.mrb[0].mxu0
      %v2080 = vadd.f32 0.0, %v2079
      %v2081 = vpop.f32.mrb[0].mxu0
      %2082 = vdwg.mxu0
      %vm2083 = vsmask.f32 256
      %v2085 = vshrl.u32 %v1850, 16
      %v2087 = vrot.slane %v2085, 7
      %v2089 = vshrl.u32 %v1851, 16
      %v2091 = vrot.slane %v2089, 7
      %v2092 = vshll.u32 %v1851, 16
      %v2094 = vor.u32 %v2091, %v2092
      %v2095 = vsel %vm2083, %v2087, %v2094
      %v2097 = vshrl.u32 %v1852, 16
      %v2099 = vrot.slane %v2097, 7
      %v2100 = vshll.u32 %v1852, 16
      %v2102 = vor.u32 %v2099, %v2100
      %v2103 = vsel %vm2083, %v2091, %v2102
      %v2105 = vshrl.u32 %v1853, 16
      %v2107 = vrot.slane %v2105, 7
      %v2108 = vshll.u32 %v1853, 16
      %v2110 = vor.u32 %v2107, %v2108
      %v2111 = vsel %vm2083, %v2099, %v2110
      %v2113 = vshrl.u32 %v1854, 16
      %v2115 = vrot.slane %v2113, 7
      %v2116 = vshll.u32 %v1854, 16
      %v2118 = vor.u32 %v2115, %v2116
      %v2119 = vsel %vm2083, %v2107, %v2118
      %v2121 = vshrl.u32 %v1855, 16
      %v2123 = vrot.slane %v2121, 7
      %v2124 = vshll.u32 %v1855, 16
      %v2126 = vor.u32 %v2123, %v2124
      %v2127 = vsel %vm2083, %v2115, %v2126
      %v2129 = vshrl.u32 %v1856, 16
      %v2131 = vrot.slane %v2129, 7
      %v2132 = vshll.u32 %v1856, 16
      %v2134 = vor.u32 %v2131, %v2132
      %v2135 = vsel %vm2083, %v2123, %v2134
      %v2137 = vshrl.u32 %v1857, 16
      %v2139 = vrot.slane %v2137, 7
      %v2140 = vshll.u32 %v1857, 16
      %v2142 = vor.u32 %v2139, %v2140
      %v2143 = vsel %vm2083, %v2131, %v2142
      %v2145 = vshrl.u32 %v1858, 16
      %v2147 = vrot.slane %v2145, 7
      %v2148 = vshll.u32 %v1858, 16
      %v2150 = vor.u32 %v2147, %v2148
      %v2151 = vsel %vm2083, %v2139, %v2150
      %v2153 = vshrl.u32 %v1859, 16
      %v2155 = vrot.slane %v2153, 7
      %v2156 = vshll.u32 %v1859, 16
      %v2158 = vor.u32 %v2155, %v2156
      %v2159 = vsel %vm2083, %v2147, %v2158
      %v2161 = vshrl.u32 %v1860, 16
      %v2163 = vrot.slane %v2161, 7
      %v2164 = vshll.u32 %v1860, 16
      %v2166 = vor.u32 %v2163, %v2164
      %v2167 = vsel %vm2083, %v2155, %v2166
      %v2169 = vshrl.u32 %v1861, 16
      %v2171 = vrot.slane %v2169, 7
      %v2172 = vshll.u32 %v1861, 16
      %v2174 = vor.u32 %v2171, %v2172
      %v2175 = vsel %vm2083, %v2163, %v2174
      %v2177 = vshrl.u32 %v1862, 16
      %v2179 = vrot.slane %v2177, 7
      %v2180 = vshll.u32 %v1862, 16
      %v2182 = vor.u32 %v2179, %v2180
      %v2183 = vsel %vm2083, %v2171, %v2182
      %v2185 = vshrl.u32 %v1863, 16
      %v2187 = vrot.slane %v2185, 7
      %v2188 = vshll.u32 %v1863, 16
      %v2190 = vor.u32 %v2187, %v2188
      %v2191 = vsel %vm2083, %v2179, %v2190
      %v2193 = vshrl.u32 %v1864, 16
      %v2195 = vrot.slane %v2193, 7
      %v2196 = vshll.u32 %v1864, 16
      %v2198 = vor.u32 %v2195, %v2196
      %v2199 = vsel %vm2083, %v2187, %v2198
      %v2201 = vshrl.u32 %v1865, 16
      %v2203 = vrot.slane %v2201, 7
      %v2204 = vshll.u32 %v1865, 16
      %v2206 = vor.u32 %v2203, %v2204
      %v2207 = vsel %vm2083, %v2195, %v2206
      %v2209 = vshrl.u32 %v1866, 16
      %v2211 = vrot.slane %v2209, 7
      %v2212 = vshll.u32 %v1866, 16
      %v2214 = vor.u32 %v2211, %v2212
      %v2215 = vsel %vm2083, %v2203, %v2214
      %v2217 = vsel %vm888, %v2095, 0
      %v2220 = vsel %vm888, %v2103, 0
      %v2223 = vsel %vm888, %v2111, 0
      %v2226 = vsel %vm888, %v2119, 0
      %v2229 = vsel %vm888, %v2127, 0
      %v2232 = vsel %vm888, %v2135, 0
      %v2235 = vsel %vm888, %v2143, 0
      %v2238 = vsel %vm888, %v2151, 0
      %v2241 = vsel %vm888, %v2159, 0
      %v2244 = vsel %vm888, %v2167, 0
      %v2247 = vsel %vm888, %v2175, 0
      %v2250 = vsel %vm888, %v2183, 0
      %v2253 = vsel %vm888, %v2191, 0
      %v2256 = vsel %vm888, %v2199, 0
      %v2259 = vsel %vm888, %v2207, 0
      %v2262 = vsel %vm888, %v2215, 0
      %v2265 = vsel %vm1918, %v1867, 0
      %2267 = vmatprep.subr.bf16.mxu0 0
      %2268 = vmatpush1.bf16.msra.mxu0 %v2265
      %2269 = vmatprep.subr.bf16.mxu0 0
      %2270 = vmatpush1.bf16.msra.mxu0 0
      %2271 = vmatprep.subr.bf16.mxu0 0
      %2272 = vmatpush1.bf16.msra.mxu0 0
      %2273 = vmatprep.subr.bf16.mxu0 0
      %2274 = vmatpush1.bf16.msra.mxu0 0
      %2275 = vmatprep.subr.bf16.mxu0 0
      %2276 = vmatpush1.bf16.msra.mxu0 0
      %2277 = vmatprep.subr.bf16.mxu0 0
      %2278 = vmatpush1.bf16.msra.mxu0 0
      %2279 = vmatprep.subr.bf16.mxu0 0
      %2280 = vmatpush1.bf16.msra.mxu0 0
      %2281 = vmatprep.subr.bf16.mxu0 0
      %2282 = vmatpush1.bf16.msra.mxu0 0
      %2283 = vmatprep.subr.bf16.mxu0 0
      %2284 = vmatpush1.bf16.msra.mxu0 0
      %2285 = vmatprep.subr.bf16.mxu0 0
      %2286 = vmatpush1.bf16.msra.mxu0 0
      %2287 = vmatprep.subr.bf16.mxu0 0
      %2288 = vmatpush1.bf16.msra.mxu0 0
      %2289 = vmatprep.subr.bf16.mxu0 0
      %2290 = vmatpush1.bf16.msra.mxu0 0
      %2291 = vmatprep.subr.bf16.mxu0 0
      %2292 = vmatpush1.bf16.msra.mxu0 0
      %2293 = vmatprep.subr.bf16.mxu0 0
      %2294 = vmatpush1.bf16.msra.mxu0 0
      %2295 = vmatprep.subr.bf16.mxu0 0
      %2296 = vmatpush1.bf16.msra.mxu0 0
      %2297 = vmatprep.subr.bf16.mxu0 0
      %2298 = vmatpush1.bf16.msra.mxu0 0
      %2299 = vmatprep.mubr.bf16.mxu0 0
      %2300 = vmatmul.mubr.bf16.gmra.mrb[0].mxu0 %v2217
      %v2301 = vpop.f32.mrb[0].mxu0
      %v2302 = vadd.f32 %v1957, %v2301
      %v2303 = vpop.f32.mrb[0].mxu0
      %v2304 = vpop.f32.mrb[0].mxu0
      %v2305 = vadd.f32 %v1960, %v2304
      %v2306 = vpop.f32.mrb[0].mxu0
      %2307 = vmatprep.mubr.bf16.mxu0 0
      %2308 = vmatmul.mubr.bf16.gmra.mrb[0].mxu0 %v2220
      %v2309 = vpop.f32.mrb[0].mxu0
      %v2310 = vadd.f32 %v1965, %v2309
      %v2311 = vpop.f32.mrb[0].mxu0
      %v2312 = vpop.f32.mrb[0].mxu0
      %v2313 = vadd.f32 %v1968, %v2312
      %v2314 = vpop.f32.mrb[0].mxu0
      %2315 = vmatprep.mubr.bf16.mxu0 0
      %2316 = vmatmul.mubr.bf16.gmra.mrb[0].mxu0 %v2223
      %v2317 = vpop.f32.mrb[0].mxu0
      %v2318 = vadd.f32 %v1973, %v2317
      %v2319 = vpop.f32.mrb[0].mxu0
      %v2320 = vpop.f32.mrb[0].mxu0
      %v2321 = vadd.f32 %v1976, %v2320
      %v2322 = vpop.f32.mrb[0].mxu0
      %2323 = vmatprep.mubr.bf16.mxu0 0
      %2324 = vmatmul.mubr.bf16.gmra.mrb[0].mxu0 %v2226
      %v2325 = vpop.f32.mrb[0].mxu0
      %v2326 = vadd.f32 %v1981, %v2325
      %v2327 = vpop.f32.mrb[0].mxu0
      %v2328 = vpop.f32.mrb[0].mxu0
      %v2329 = vadd.f32 %v1984, %v2328
      %v2330 = vpop.f32.mrb[0].mxu0
      %2331 = vmatprep.mubr.bf16.mxu0 0
      %2332 = vmatmul.mubr.bf16.gmra.mrb[0].mxu0 %v2229
      %v2333 = vpop.f32.mrb[0].mxu0
      %v2334 = vadd.f32 %v1989, %v2333
      %v2335 = vpop.f32.mrb[0].mxu0
      %v2336 = vpop.f32.mrb[0].mxu0
      %v2337 = vadd.f32 %v1992, %v2336
      %v2338 = vpop.f32.mrb[0].mxu0
      %2339 = vmatprep.mubr.bf16.mxu0 0
      %2340 = vmatmul.mubr.bf16.gmra.mrb[0].mxu0 %v2232
      %v2341 = vpop.f32.mrb[0].mxu0
      %v2342 = vadd.f32 %v1997, %v2341
      %v2343 = vpop.f32.mrb[0].mxu0
      %v2344 = vpop.f32.mrb[0].mxu0
      %v2345 = vadd.f32 %v2000, %v2344
      %v2346 = vpop.f32.mrb[0].mxu0
      %2347 = vmatprep.mubr.bf16.mxu0 0
      %2348 = vmatmul.mubr.bf16.gmra.mrb[0].mxu0 %v2235
      %v2349 = vpop.f32.mrb[0].mxu0
      %v2350 = vadd.f32 %v2005, %v2349
      %v2351 = vpop.f32.mrb[0].mxu0
      %v2352 = vpop.f32.mrb[0].mxu0
      %v2353 = vadd.f32 %v2008, %v2352
      %v2354 = vpop.f32.mrb[0].mxu0
      %2355 = vmatprep.mubr.bf16.mxu0 0
      %2356 = vmatmul.mubr.bf16.gmra.mrb[0].mxu0 %v2238
      %v2357 = vpop.f32.mrb[0].mxu0
      %v2358 = vadd.f32 %v2013, %v2357
      %v2359 = vpop.f32.mrb[0].mxu0
      %v2360 = vpop.f32.mrb[0].mxu0
      %v2361 = vadd.f32 %v2016, %v2360
      %v2362 = vpop.f32.mrb[0].mxu0
      %2363 = vmatprep.mubr.bf16.mxu0 0
      %2364 = vmatmul.mubr.bf16.gmra.mrb[0].mxu0 %v2241
      %v2365 = vpop.f32.mrb[0].mxu0
      %v2366 = vadd.f32 %v2021, %v2365
      %v2367 = vpop.f32.mrb[0].mxu0
      %v2368 = vpop.f32.mrb[0].mxu0
      %v2369 = vadd.f32 %v2024, %v2368
      %v2370 = vpop.f32.mrb[0].mxu0
      %2371 = vmatprep.mubr.bf16.mxu0 0
      %2372 = vmatmul.mubr.bf16.gmra.mrb[0].mxu0 %v2244
      %v2373 = vpop.f32.mrb[0].mxu0
      %v2374 = vadd.f32 %v2029, %v2373
      %v2375 = vpop.f32.mrb[0].mxu0
      %v2376 = vpop.f32.mrb[0].mxu0
      %v2377 = vadd.f32 %v2032, %v2376
      %v2378 = vpop.f32.mrb[0].mxu0
      %2379 = vmatprep.mubr.bf16.mxu0 0
      %2380 = vmatmul.mubr.bf16.gmra.mrb[0].mxu0 %v2247
      %v2381 = vpop.f32.mrb[0].mxu0
      %v2382 = vadd.f32 %v2037, %v2381
      %v2383 = vpop.f32.mrb[0].mxu0
      %v2384 = vpop.f32.mrb[0].mxu0
      %v2385 = vadd.f32 %v2040, %v2384
      %v2386 = vpop.f32.mrb[0].mxu0
      %2387 = vmatprep.mubr.bf16.mxu0 0
      %2388 = vmatmul.mubr.bf16.gmra.mrb[0].mxu0 %v2250
      %v2389 = vpop.f32.mrb[0].mxu0
      %v2390 = vadd.f32 %v2045, %v2389
      %v2391 = vpop.f32.mrb[0].mxu0
      %v2392 = vpop.f32.mrb[0].mxu0
      %v2393 = vadd.f32 %v2048, %v2392
      %v2394 = vpop.f32.mrb[0].mxu0
      %2395 = vmatprep.mubr.bf16.mxu0 0
      %2396 = vmatmul.mubr.bf16.gmra.mrb[0].mxu0 %v2253
      %v2397 = vpop.f32.mrb[0].mxu0
      %v2398 = vadd.f32 %v2053, %v2397
      %v2399 = vpop.f32.mrb[0].mxu0
      %v2400 = vpop.f32.mrb[0].mxu0
      %v2401 = vadd.f32 %v2056, %v2400
      %v2402 = vpop.f32.mrb[0].mxu0
      %2403 = vmatprep.mubr.bf16.mxu0 0
      %2404 = vmatmul.mubr.bf16.gmra.mrb[0].mxu0 %v2256
      %v2405 = vpop.f32.mrb[0].mxu0
      %v2406 = vadd.f32 %v2061, %v2405
      %v2407 = vpop.f32.mrb[0].mxu0
      %v2408 = vpop.f32.mrb[0].mxu0
      %v2409 = vadd.f32 %v2064, %v2408
      %v2410 = vpop.f32.mrb[0].mxu0
      %2411 = vmatprep.mubr.bf16.mxu0 0
      %2412 = vmatmul.mubr.bf16.gmra.mrb[0].mxu0 %v2259
      %v2413 = vpop.f32.mrb[0].mxu0
      %v2414 = vadd.f32 %v2069, %v2413
      %v2415 = vpop.f32.mrb[0].mxu0
      %v2416 = vpop.f32.mrb[0].mxu0
      %v2417 = vadd.f32 %v2072, %v2416
      %v2418 = vpop.f32.mrb[0].mxu0
      %2419 = vmatprep.mubr.bf16.mxu0 0
      %2420 = vmatmul.mubr.bf16.gmra.mrb[0].mxu0 %v2262
      %v2421 = vpop.f32.mrb[0].mxu0
      %v2422 = vadd.f32 %v2077, %v2421
      %v2423 = vpop.f32.mrb[0].mxu0
      %v2424 = vpop.f32.mrb[0].mxu0
      %v2425 = vadd.f32 %v2080, %v2424
      %v2426 = vpop.f32.mrb[0].mxu0
      %2427 = vdwg.mxu0
      %v2428 = vld [vmem:[#allocation2 + $0x8] sm:$0xff]
      %v2429 = vld [vmem:[#allocation2 + $0x10] sm:$0xff]
      %v2430 = vld [vmem:[#allocation2 + $0x18] sm:$0xff]
      %v2431 = vld [vmem:[#allocation2 + $0x20] sm:$0xff]
      %v2432 = vld [vmem:[#allocation2 + $0x28] sm:$0xff]
      %v2433 = vld [vmem:[#allocation2 + $0x30] sm:$0xff]
      %v2434 = vld [vmem:[#allocation2 + $0x38] sm:$0xff]
      %v2435 = vld [vmem:[#allocation2 + $0x40] sm:$0xff]
      %v2436 = vld [vmem:[#allocation2 + $0x48] sm:$0xff]
      %v2437 = vld [vmem:[#allocation2 + $0x50] sm:$0xff]
      %v2438 = vld [vmem:[#allocation2 + $0x58] sm:$0xff]
      %v2439 = vld [vmem:[#allocation2 + $0x60] sm:$0xff]
      %v2440 = vld [vmem:[#allocation2 + $0x68] sm:$0xff]
      %v2441 = vld [vmem:[#allocation2 + $0x70] sm:$0xff]
      %v2442 = vld [vmem:[#allocation2 + $0x78] sm:$0xff]
      %v2443 = vld [vmem:[#allocation2 + $0x80] sm:$0xff]
      %v2444 = vld [vmem:[#allocation2 + $0x88] sm:$0x1]
      %v2445 = vsel %vm1480, 1, 0
      %v2446 = vsel %vm1481, 1, 0
      %v2447 = vsel %vm1482, 1, 0
      %v2448 = vsel %vm1483, 1, 0
      %v2449 = vsel %vm1484, 1, 0
      %v2450 = vsel %vm1485, 1, 0
      %v2451 = vsel %vm1486, 1, 0
      %v2452 = vsel %vm1487, 1, 0
      %v2453 = vsel %vm1488, 1, 0
      %v2454 = vsel %vm1489, 1, 0
      %v2455 = vsel %vm1490, 1, 0
      %v2456 = vsel %vm1491, 1, 0
      %v2457 = vsel %vm1492, 1, 0
      %v2458 = vsel %vm1493, 1, 0
      %v2459 = vsel %vm1494, 1, 0
      %v2460 = vsel %vm1495, 1, 0
      %v2461 = vsel %vm1496, 1, 0
      %v2462 = vsel %vm1497, 1, 0
      %v2463 = vsel %vm1498, 1, 0
      %v2464 = vsel %vm1499, 1, 0
      %v2465 = vsel %vm1500, 1, 0
      %v2466 = vsel %vm1501, 1, 0
      %v2467 = vsel %vm1502, 1, 0
      %v2468 = vsel %vm1503, 1, 0
      %v2469 = vsel %vm1504, 1, 0
      %v2470 = vsel %vm1505, 1, 0
      %v2471 = vsel %vm1506, 1, 0
      %v2472 = vsel %vm1507, 1, 0
      %v2473 = vsel %vm1508, 1, 0
      %v2474 = vsel %vm1509, 1, 0
      %v2475 = vsel %vm1510, 1, 0
      %v2476 = vsel %vm1511, 1, 0
      %vm2477 = vcmp.eq.s32.totalorder %v2445, 1
      %vm2478 = vcmp.eq.s32.totalorder %v2446, 1
      %vm2479 = vcmp.eq.s32.totalorder %v2447, 1
      %vm2480 = vcmp.eq.s32.totalorder %v2448, 1
      %vm2481 = vcmp.eq.s32.totalorder %v2449, 1
      %vm2482 = vcmp.eq.s32.totalorder %v2450, 1
      %vm2483 = vcmp.eq.s32.totalorder %v2451, 1
      %vm2484 = vcmp.eq.s32.totalorder %v2452, 1
      %vm2485 = vcmp.eq.s32.totalorder %v2453, 1
      %vm2486 = vcmp.eq.s32.totalorder %v2454, 1
      %vm2487 = vcmp.eq.s32.totalorder %v2455, 1
      %vm2488 = vcmp.eq.s32.totalorder %v2456, 1
      %vm2489 = vcmp.eq.s32.totalorder %v2457, 1
      %vm2490 = vcmp.eq.s32.totalorder %v2458, 1
      %vm2491 = vcmp.eq.s32.totalorder %v2459, 1
      %vm2492 = vcmp.eq.s32.totalorder %v2460, 1
      %vm2493 = vcmp.eq.s32.totalorder %v2461, 1
      %vm2494 = vcmp.eq.s32.totalorder %v2462, 1
      %vm2495 = vcmp.eq.s32.totalorder %v2463, 1
      %vm2496 = vcmp.eq.s32.totalorder %v2464, 1
      %vm2497 = vcmp.eq.s32.totalorder %v2465, 1
      %vm2498 = vcmp.eq.s32.totalorder %v2466, 1
      %vm2499 = vcmp.eq.s32.totalorder %v2467, 1
      %vm2500 = vcmp.eq.s32.totalorder %v2468, 1
      %vm2501 = vcmp.eq.s32.totalorder %v2469, 1
      %vm2502 = vcmp.eq.s32.totalorder %v2470, 1
      %vm2503 = vcmp.eq.s32.totalorder %v2471, 1
      %vm2504 = vcmp.eq.s32.totalorder %v2472, 1
      %vm2505 = vcmp.eq.s32.totalorder %v2473, 1
      %vm2506 = vcmp.eq.s32.totalorder %v2474, 1
      %vm2507 = vcmp.eq.s32.totalorder %v2475, 1
      %vm2508 = vcmp.eq.s32.totalorder %v2476, 1
      %vm2509 = vmpackc.low %vm2477, %vm2477
      %vm2510 = vmpackc.low %vm2478, %vm2478
      %vm2511 = vmpackc.low %vm2479, %vm2479
      %vm2512 = vmpackc.low %vm2480, %vm2480
      %vm2513 = vmpackc.low %vm2481, %vm2481
      %vm2514 = vmpackc.low %vm2482, %vm2482
      %vm2515 = vmpackc.low %vm2483, %vm2483
      %vm2516 = vmpackc.low %vm2484, %vm2484
      %vm2517 = vmpackc.low %vm2485, %vm2485
      %vm2518 = vmpackc.low %vm2486, %vm2486
      %vm2519 = vmpackc.low %vm2487, %vm2487
      %vm2520 = vmpackc.low %vm2488, %vm2488
      %vm2521 = vmpackc.low %vm2489, %vm2489
      %vm2522 = vmpackc.low %vm2490, %vm2490
      %vm2523 = vmpackc.low %vm2491, %vm2491
      %vm2524 = vmpackc.low %vm2492, %vm2492
      %vm2525 = vmpackc.low %vm2493, %vm2493
      %vm2526 = vmpackc.low %vm2494, %vm2494
      %vm2527 = vmpackc.low %vm2495, %vm2495
      %vm2528 = vmpackc.low %vm2496, %vm2496
      %vm2529 = vmpackc.low %vm2497, %vm2497
      %vm2530 = vmpackc.low %vm2498, %vm2498
      %vm2531 = vmpackc.low %vm2499, %vm2499
      %vm2532 = vmpackc.low %vm2500, %vm2500
      %vm2533 = vmpackc.low %vm2501, %vm2501
      %vm2534 = vmpackc.low %vm2502, %vm2502
      %vm2535 = vmpackc.low %vm2503, %vm2503
      %vm2536 = vmpackc.low %vm2504, %vm2504
      %vm2537 = vmpackc.low %vm2505, %vm2505
      %vm2538 = vmpackc.low %vm2506, %vm2506
      %vm2539 = vmpackc.low %vm2507, %vm2507
      %vm2540 = vmpackc.low %vm2508, %vm2508
      %v2541 = vsel %vm2509, 65537, 0
      %v2542 = vsel %vm2510, 65537, 0
      %v2543 = vsel %vm2511, 65537, 0
      %v2544 = vsel %vm2512, 65537, 0
      %v2545 = vsel %vm2513, 65537, 0
      %v2546 = vsel %vm2514, 65537, 0
      %v2547 = vsel %vm2515, 65537, 0
      %v2548 = vsel %vm2516, 65537, 0
      %v2549 = vsel %vm2517, 65537, 0
      %v2550 = vsel %vm2518, 65537, 0
      %v2551 = vsel %vm2519, 65537, 0
      %v2552 = vsel %vm2520, 65537, 0
      %v2553 = vsel %vm2521, 65537, 0
      %v2554 = vsel %vm2522, 65537, 0
      %v2555 = vsel %vm2523, 65537, 0
      %v2556 = vsel %vm2524, 65537, 0
      %v2557 = vsel %vm2525, 65537, 0
      %v2558 = vsel %vm2526, 65537, 0
      %v2559 = vsel %vm2527, 65537, 0
      %v2560 = vsel %vm2528, 65537, 0
      %v2561 = vsel %vm2529, 65537, 0
      %v2562 = vsel %vm2530, 65537, 0
      %v2563 = vsel %vm2531, 65537, 0
      %v2564 = vsel %vm2532, 65537, 0
      %v2565 = vsel %vm2533, 65537, 0
      %v2566 = vsel %vm2534, 65537, 0
      %v2567 = vsel %vm2535, 65537, 0
      %v2568 = vsel %vm2536, 65537, 0
      %v2569 = vsel %vm2537, 65537, 0
      %v2570 = vsel %vm2538, 65537, 0
      %v2571 = vsel %vm2539, 65537, 0
      %v2572 = vsel %vm2540, 65537, 0
      %v2573 = vunpack.c.l.b16 %v2541
      %v2574 = vunpack.c.l.b16 %v2542
      %v2575 = vunpack.c.l.b16 %v2543
      %v2576 = vunpack.c.l.b16 %v2544
      %v2577 = vunpack.c.l.b16 %v2545
      %v2578 = vunpack.c.l.b16 %v2546
      %v2579 = vunpack.c.l.b16 %v2547
      %v2580 = vunpack.c.l.b16 %v2548
      %v2581 = vunpack.c.l.b16 %v2549
      %v2582 = vunpack.c.l.b16 %v2550
      %v2583 = vunpack.c.l.b16 %v2551
      %v2584 = vunpack.c.l.b16 %v2552
      %v2585 = vunpack.c.l.b16 %v2553
      %v2586 = vunpack.c.l.b16 %v2554
      %v2587 = vunpack.c.l.b16 %v2555
      %v2588 = vunpack.c.l.b16 %v2556
      %v2589 = vunpack.c.l.b16 %v2557
      %v2590 = vunpack.c.l.b16 %v2558
      %v2591 = vunpack.c.l.b16 %v2559
      %v2592 = vunpack.c.l.b16 %v2560
      %v2593 = vunpack.c.l.b16 %v2561
      %v2594 = vunpack.c.l.b16 %v2562
      %v2595 = vunpack.c.l.b16 %v2563
      %v2596 = vunpack.c.l.b16 %v2564
      %v2597 = vunpack.c.l.b16 %v2565
      %v2598 = vunpack.c.l.b16 %v2566
      %v2599 = vunpack.c.l.b16 %v2567
      %v2600 = vunpack.c.l.b16 %v2568
      %v2601 = vunpack.c.l.b16 %v2569
      %v2602 = vunpack.c.l.b16 %v2570
      %v2603 = vunpack.c.l.b16 %v2571
      %v2604 = vunpack.c.l.b16 %v2572
      %v2605 = vpack.c.b16 %v2574, %v2573
      %v2606 = vpack.c.b16 %v2576, %v2575
      %v2607 = vpack.c.b16 %v2578, %v2577
      %v2608 = vpack.c.b16 %v2580, %v2579
      %v2609 = vpack.c.b16 %v2582, %v2581
      %v2610 = vpack.c.b16 %v2584, %v2583
      %v2611 = vpack.c.b16 %v2586, %v2585
      %v2612 = vpack.c.b16 %v2588, %v2587
      %v2613 = vpack.c.b16 %v2590, %v2589
      %v2614 = vpack.c.b16 %v2592, %v2591
      %v2615 = vpack.c.b16 %v2594, %v2593
      %v2616 = vpack.c.b16 %v2596, %v2595
      %v2617 = vpack.c.b16 %v2598, %v2597
      %v2618 = vpack.c.b16 %v2600, %v2599
      %v2619 = vpack.c.b16 %v2602, %v2601
      %v2620 = vpack.c.b16 %v2604, %v2603
      %v2622 = vshrl.u32 %v2605, 16
      %v2624 = vrot.slane %v2622, 7
      %v2625 = vshll.u32 %v2605, 16
      %v2627 = vor.u32 %v2624, %v2625
      %v2629 = vshrl.u32 %v2606, 16
      %v2631 = vrot.slane %v2629, 7
      %v2632 = vshll.u32 %v2606, 16
      %v2634 = vor.u32 %v2631, %v2632
      %v2635 = vsel %vm2083, %v2624, %v2634
      %v2637 = vshrl.u32 %v2607, 16
      %v2639 = vrot.slane %v2637, 7
      %v2640 = vshll.u32 %v2607, 16
      %v2642 = vor.u32 %v2639, %v2640
      %v2643 = vsel %vm2083, %v2631, %v2642
      %v2645 = vshrl.u32 %v2608, 16
      %v2647 = vrot.slane %v2645, 7
      %v2648 = vshll.u32 %v2608, 16
      %v2650 = vor.u32 %v2647, %v2648
      %v2651 = vsel %vm2083, %v2639, %v2650
      %v2653 = vshrl.u32 %v2609, 16
      %v2655 = vrot.slane %v2653, 7
      %v2656 = vshll.u32 %v2609, 16
      %v2658 = vor.u32 %v2655, %v2656
      %v2659 = vsel %vm2083, %v2647, %v2658
      %v2661 = vshrl.u32 %v2610, 16
      %v2663 = vrot.slane %v2661, 7
      %v2664 = vshll.u32 %v2610, 16
      %v2666 = vor.u32 %v2663, %v2664
      %v2667 = vsel %vm2083, %v2655, %v2666
      %v2669 = vshrl.u32 %v2611, 16
      %v2671 = vrot.slane %v2669, 7
      %v2672 = vshll.u32 %v2611, 16
      %v2674 = vor.u32 %v2671, %v2672
      %v2675 = vsel %vm2083, %v2663, %v2674
      %v2677 = vshrl.u32 %v2612, 16
      %v2679 = vrot.slane %v2677, 7
      %v2680 = vshll.u32 %v2612, 16
      %v2682 = vor.u32 %v2679, %v2680
      %v2683 = vsel %vm2083, %v2671, %v2682
      %v2685 = vshrl.u32 %v2613, 16
      %v2687 = vrot.slane %v2685, 7
      %v2688 = vshll.u32 %v2613, 16
      %v2690 = vor.u32 %v2687, %v2688
      %v2691 = vsel %vm2083, %v2679, %v2690
      %v2693 = vshrl.u32 %v2614, 16
      %v2695 = vrot.slane %v2693, 7
      %v2696 = vshll.u32 %v2614, 16
      %v2698 = vor.u32 %v2695, %v2696
      %v2699 = vsel %vm2083, %v2687, %v2698
      %v2701 = vshrl.u32 %v2615, 16
      %v2703 = vrot.slane %v2701, 7
      %v2704 = vshll.u32 %v2615, 16
      %v2706 = vor.u32 %v2703, %v2704
      %v2707 = vsel %vm2083, %v2695, %v2706
      %v2709 = vshrl.u32 %v2616, 16
      %v2711 = vrot.slane %v2709, 7
      %v2712 = vshll.u32 %v2616, 16
      %v2714 = vor.u32 %v2711, %v2712
      %v2715 = vsel %vm2083, %v2703, %v2714
      %v2717 = vshrl.u32 %v2617, 16
      %v2719 = vrot.slane %v2717, 7
      %v2720 = vshll.u32 %v2617, 16
      %v2722 = vor.u32 %v2719, %v2720
      %v2723 = vsel %vm2083, %v2711, %v2722
      %v2725 = vshrl.u32 %v2618, 16
      %v2727 = vrot.slane %v2725, 7
      %v2728 = vshll.u32 %v2618, 16
      %v2730 = vor.u32 %v2727, %v2728
      %v2731 = vsel %vm2083, %v2719, %v2730
      %v2733 = vshrl.u32 %v2619, 16
      %v2735 = vrot.slane %v2733, 7
      %v2736 = vshll.u32 %v2619, 16
      %v2738 = vor.u32 %v2735, %v2736
      %v2739 = vsel %vm2083, %v2727, %v2738
      %v2741 = vshrl.u32 %v2620, 16
      %v2743 = vrot.slane %v2741, 7
      %v2744 = vshll.u32 %v2620, 16
      %v2746 = vor.u32 %v2743, %v2744
      %v2747 = vsel %vm2083, %v2735, %v2746
      %vm2748 = vcmp.ne.s16.totalorder %v2627, 0
      %vm2749 = vcmp.ne.s16.totalorder %v2635, 0
      %vm2750 = vcmp.ne.s16.totalorder %v2643, 0
      %vm2751 = vcmp.ne.s16.totalorder %v2651, 0
      %vm2752 = vcmp.ne.s16.totalorder %v2659, 0
      %vm2753 = vcmp.ne.s16.totalorder %v2667, 0
      %vm2754 = vcmp.ne.s16.totalorder %v2675, 0
      %vm2755 = vcmp.ne.s16.totalorder %v2683, 0
      %vm2756 = vcmp.ne.s16.totalorder %v2691, 0
      %vm2757 = vcmp.ne.s16.totalorder %v2699, 0
      %vm2758 = vcmp.ne.s16.totalorder %v2707, 0
      %vm2759 = vcmp.ne.s16.totalorder %v2715, 0
      %vm2760 = vcmp.ne.s16.totalorder %v2723, 0
      %vm2761 = vcmp.ne.s16.totalorder %v2731, 0
      %vm2762 = vcmp.ne.s16.totalorder %v2739, 0
      %vm2763 = vcmp.ne.s16.totalorder %v2747, 0
      %vm2764 = vcmp.ne.s16.totalorder %v2743, 0
      %v2765 = vsel %vm2748, 0, %v2428
      %v2766 = vsel %vm2749, 0, %v2429
      %v2767 = vsel %vm2750, 0, %v2430
      %v2768 = vsel %vm2751, 0, %v2431
      %v2769 = vsel %vm2752, 0, %v2432
      %v2770 = vsel %vm2753, 0, %v2433
      %v2771 = vsel %vm2754, 0, %v2434
      %v2772 = vsel %vm2755, 0, %v2435
      %v2773 = vsel %vm2756, 0, %v2436
      %v2774 = vsel %vm2757, 0, %v2437
      %v2775 = vsel %vm2758, 0, %v2438
      %v2776 = vsel %vm2759, 0, %v2439
      %v2777 = vsel %vm2760, 0, %v2440
      %v2778 = vsel %vm2761, 0, %v2441
      %v2779 = vsel %vm2762, 0, %v2442
      %v2780 = vsel %vm2763, 0, %v2443
      %v2781 = vsel %vm2764, 0, %v2444
      %s2782 = scalar_lea.vmem %s5, 4
      %v2783 = vld [vmem:[%s2782] sm:$0x3]
      %v2785 = vshrl.u32 %v2765, 16
      %v2787 = vshll.u32 %v2765, 16
      %v2789 = vrot.slane %v2787, 1
      %v2790 = vor.u32 %v2785, %v2789
      %v2792 = vshll.u32 %v2766, 16
      %v2794 = vrot.slane %v2792, 1
      %v2795 = vsel %vm1705, %v2790, %v2794
      %v2796 = vshrl.u32 %v2766, 16
      %v2798 = vor.u32 %v2796, %v2794
      %v2800 = vshll.u32 %v2767, 16
      %v2802 = vrot.slane %v2800, 1
      %v2803 = vsel %vm1705, %v2798, %v2802
      %v2804 = vshrl.u32 %v2767, 16
      %v2806 = vor.u32 %v2804, %v2802
      %v2808 = vshll.u32 %v2768, 16
      %v2810 = vrot.slane %v2808, 1
      %v2811 = vsel %vm1705, %v2806, %v2810
      %v2812 = vshrl.u32 %v2768, 16
      %v2814 = vor.u32 %v2812, %v2810
      %v2816 = vshll.u32 %v2769, 16
      %v2818 = vrot.slane %v2816, 1
      %v2819 = vsel %vm1705, %v2814, %v2818
      %v2820 = vshrl.u32 %v2769, 16
      %v2822 = vor.u32 %v2820, %v2818
      %v2824 = vshll.u32 %v2770, 16
      %v2826 = vrot.slane %v2824, 1
      %v2827 = vsel %vm1705, %v2822, %v2826
      %v2828 = vshrl.u32 %v2770, 16
      %v2830 = vor.u32 %v2828, %v2826
      %v2832 = vshll.u32 %v2771, 16
      %v2834 = vrot.slane %v2832, 1
      %v2835 = vsel %vm1705, %v2830, %v2834
      %v2836 = vshrl.u32 %v2771, 16
      %v2838 = vor.u32 %v2836, %v2834
      %v2840 = vshll.u32 %v2772, 16
      %v2842 = vrot.slane %v2840, 1
      %v2843 = vsel %vm1705, %v2838, %v2842
      %v2844 = vshrl.u32 %v2772, 16
      %v2846 = vor.u32 %v2844, %v2842
      %v2848 = vshll.u32 %v2773, 16
      %v2850 = vrot.slane %v2848, 1
      %v2851 = vsel %vm1705, %v2846, %v2850
      %v2852 = vshrl.u32 %v2773, 16
      %v2854 = vor.u32 %v2852, %v2850
      %v2856 = vshll.u32 %v2774, 16
      %v2858 = vrot.slane %v2856, 1
      %v2859 = vsel %vm1705, %v2854, %v2858
      %v2860 = vshrl.u32 %v2774, 16
      %v2862 = vor.u32 %v2860, %v2858
      %v2864 = vshll.u32 %v2775, 16
      %v2866 = vrot.slane %v2864, 1
      %v2867 = vsel %vm1705, %v2862, %v2866
      %v2868 = vshrl.u32 %v2775, 16
      %v2870 = vor.u32 %v2868, %v2866
      %v2872 = vshll.u32 %v2776, 16
      %v2874 = vrot.slane %v2872, 1
      %v2875 = vsel %vm1705, %v2870, %v2874
      %v2876 = vshrl.u32 %v2776, 16
      %v2878 = vor.u32 %v2876, %v2874
      %v2880 = vshll.u32 %v2777, 16
      %v2882 = vrot.slane %v2880, 1
      %v2883 = vsel %vm1705, %v2878, %v2882
      %v2884 = vshrl.u32 %v2777, 16
      %v2886 = vor.u32 %v2884, %v2882
      %v2888 = vshll.u32 %v2778, 16
      %v2890 = vrot.slane %v2888, 1
      %v2891 = vsel %vm1705, %v2886, %v2890
      %v2892 = vshrl.u32 %v2778, 16
      %v2894 = vor.u32 %v2892, %v2890
      %v2896 = vshll.u32 %v2779, 16
      %v2898 = vrot.slane %v2896, 1
      %v2899 = vsel %vm1705, %v2894, %v2898
      %v2900 = vshrl.u32 %v2779, 16
      %v2902 = vor.u32 %v2900, %v2898
      %v2904 = vshll.u32 %v2780, 16
      %v2906 = vrot.slane %v2904, 1
      %v2907 = vsel %vm1705, %v2902, %v2906
      %v2908 = vshrl.u32 %v2780, 16
      %v2910 = vor.u32 %v2908, %v2906
      %v2912 = vshll.u32 %v2781, 16
      %v2914 = vrot.slane %v2912, 1
      %v2915 = vsel %vm1705, %v2910, %v2914
      %v2917 = vsel %vm888, %v2795, 0
      %v2920 = vsel %vm888, %v2803, 0
      %v2923 = vsel %vm888, %v2811, 0
      %v2926 = vsel %vm888, %v2819, 0
      %v2929 = vsel %vm888, %v2827, 0
      %v2932 = vsel %vm888, %v2835, 0
      %v2935 = vsel %vm888, %v2843, 0
      %v2938 = vsel %vm888, %v2851, 0
      %v2941 = vsel %vm888, %v2859, 0
      %v2944 = vsel %vm888, %v2867, 0
      %v2947 = vsel %vm888, %v2875, 0
      %v2950 = vsel %vm888, %v2883, 0
      %v2953 = vsel %vm888, %v2891, 0
      %v2956 = vsel %vm888, %v2899, 0
      %v2959 = vsel %vm888, %v2907, 0
      %v2962 = vsel %vm888, %v2915, 0
      %v2965 = vsel %vm1918, %v2783, 0
      %2967 = vmatprep.subr.bf16.mxu0 0
      %2968 = vmatpush1.bf16.msra.mxu0 %v2965
      %2969 = vmatprep.subr.bf16.mxu0 0
      %2970 = vmatpush1.bf16.msra.mxu0 0
      %2971 = vmatprep.subr.bf16.mxu0 0
      %2972 = vmatpush1.bf16.msra.mxu0 0
      %2973 = vmatprep.subr.bf16.mxu0 0
      %2974 = vmatpush1.bf16.msra.mxu0 0
      %2975 = vmatprep.subr.bf16.mxu0 0
      %2976 = vmatpush1.bf16.msra.mxu0 0
      %2977 = vmatprep.subr.bf16.mxu0 0
      %2978 = vmatpush1.bf16.msra.mxu0 0
      %2979 = vmatprep.subr.bf16.mxu0 0
      %2980 = vmatpush1.bf16.msra.mxu0 0
      %2981 = vmatprep.subr.bf16.mxu0 0
      %2982 = vmatpush1.bf16.msra.mxu0 0
      %2983 = vmatprep.subr.bf16.mxu0 0
      %2984 = vmatpush1.bf16.msra.mxu0 0
      %2985 = vmatprep.subr.bf16.mxu0 0
      %2986 = vmatpush1.bf16.msra.mxu0 0
      %2987 = vmatprep.subr.bf16.mxu0 0
      %2988 = vmatpush1.bf16.msra.mxu0 0
      %2989 = vmatprep.subr.bf16.mxu0 0
      %2990 = vmatpush1.bf16.msra.mxu0 0
      %2991 = vmatprep.subr.bf16.mxu0 0
      %2992 = vmatpush1.bf16.msra.mxu0 0
      %2993 = vmatprep.subr.bf16.mxu0 0
      %2994 = vmatpush1.bf16.msra.mxu0 0
      %2995 = vmatprep.subr.bf16.mxu0 0
      %2996 = vmatpush1.bf16.msra.mxu0 0
      %2997 = vmatprep.subr.bf16.mxu0 0
      %2998 = vmatpush1.bf16.msra.mxu0 0
      %2999 = vmatprep.mubr.bf16.mxu0 0
      %3000 = vmatmul.mubr.bf16.gmra.mrb[0].mxu0 %v2917
      %v3001 = vpop.f32.mrb[0].mxu0
      %v3002 = vadd.f32 0.0, %v3001
      %v3003 = vpop.f32.mrb[0].mxu0
      %v3004 = vpop.f32.mrb[0].mxu0
      %v3005 = vadd.f32 0.0, %v3004
      %v3006 = vpop.f32.mrb[0].mxu0
      %3007 = vmatprep.mubr.bf16.mxu0 0
      %3008 = vmatmul.mubr.bf16.gmra.mrb[0].mxu0 %v2920
      %v3009 = vpop.f32.mrb[0].mxu0
      %v3010 = vadd.f32 0.0, %v3009
      %v3011 = vpop.f32.mrb[0].mxu0
      %v3012 = vpop.f32.mrb[0].mxu0
      %v3013 = vadd.f32 0.0, %v3012
      %v3014 = vpop.f32.mrb[0].mxu0
      %3015 = vmatprep.mubr.bf16.mxu0 0
      %3016 = vmatmul.mubr.bf16.gmra.mrb[0].mxu0 %v2923
      %v3017 = vpop.f32.mrb[0].mxu0
      %v3018 = vadd.f32 0.0, %v3017
      %v3019 = vpop.f32.mrb[0].mxu0
      %v3020 = vpop.f32.mrb[0].mxu0
      %v3021 = vadd.f32 0.0, %v3020
      %v3022 = vpop.f32.mrb[0].mxu0
      %3023 = vmatprep.mubr.bf16.mxu0 0
      %3024 = vmatmul.mubr.bf16.gmra.mrb[0].mxu0 %v2926
      %v3025 = vpop.f32.mrb[0].mxu0
      %v3026 = vadd.f32 0.0, %v3025
      %v3027 = vpop.f32.mrb[0].mxu0
      %v3028 = vpop.f32.mrb[0].mxu0
      %v3029 = vadd.f32 0.0, %v3028
      %v3030 = vpop.f32.mrb[0].mxu0
      %3031 = vmatprep.mubr.bf16.mxu0 0
      %3032 = vmatmul.mubr.bf16.gmra.mrb[0].mxu0 %v2929
      %v3033 = vpop.f32.mrb[0].mxu0
      %v3034 = vadd.f32 0.0, %v3033
      %v3035 = vpop.f32.mrb[0].mxu0
      %v3036 = vpop.f32.mrb[0].mxu0
      %v3037 = vadd.f32 0.0, %v3036
      %v3038 = vpop.f32.mrb[0].mxu0
      %3039 = vmatprep.mubr.bf16.mxu0 0
      %3040 = vmatmul.mubr.bf16.gmra.mrb[0].mxu0 %v2932
      %v3041 = vpop.f32.mrb[0].mxu0
      %v3042 = vadd.f32 0.0, %v3041
      %v3043 = vpop.f32.mrb[0].mxu0
      %v3044 = vpop.f32.mrb[0].mxu0
      %v3045 = vadd.f32 0.0, %v3044
      %v3046 = vpop.f32.mrb[0].mxu0
      %3047 = vmatprep.mubr.bf16.mxu0 0
      %3048 = vmatmul.mubr.bf16.gmra.mrb[0].mxu0 %v2935
      %v3049 = vpop.f32.mrb[0].mxu0
      %v3050 = vadd.f32 0.0, %v3049
      %v3051 = vpop.f32.mrb[0].mxu0
      %v3052 = vpop.f32.mrb[0].mxu0
      %v3053 = vadd.f32 0.0, %v3052
      %v3054 = vpop.f32.mrb[0].mxu0
      %3055 = vmatprep.mubr.bf16.mxu0 0
      %3056 = vmatmul.mubr.bf16.gmra.mrb[0].mxu0 %v2938
      %v3057 = vpop.f32.mrb[0].mxu0
      %v3058 = vadd.f32 0.0, %v3057
      %v3059 = vpop.f32.mrb[0].mxu0
      %v3060 = vpop.f32.mrb[0].mxu0
      %v3061 = vadd.f32 0.0, %v3060
      %v3062 = vpop.f32.mrb[0].mxu0
      %3063 = vmatprep.mubr.bf16.mxu0 0
      %3064 = vmatmul.mubr.bf16.gmra.mrb[0].mxu0 %v2941
      %v3065 = vpop.f32.mrb[0].mxu0
      %v3066 = vadd.f32 0.0, %v3065
      %v3067 = vpop.f32.mrb[0].mxu0
      %v3068 = vpop.f32.mrb[0].mxu0
      %v3069 = vadd.f32 0.0, %v3068
      %v3070 = vpop.f32.mrb[0].mxu0
      %3071 = vmatprep.mubr.bf16.mxu0 0
      %3072 = vmatmul.mubr.bf16.gmra.mrb[0].mxu0 %v2944
      %v3073 = vpop.f32.mrb[0].mxu0
      %v3074 = vadd.f32 0.0, %v3073
      %v3075 = vpop.f32.mrb[0].mxu0
      %v3076 = vpop.f32.mrb[0].mxu0
      %v3077 = vadd.f32 0.0, %v3076
      %v3078 = vpop.f32.mrb[0].mxu0
      %3079 = vmatprep.mubr.bf16.mxu0 0
      %3080 = vmatmul.mubr.bf16.gmra.mrb[0].mxu0 %v2947
      %v3081 = vpop.f32.mrb[0].mxu0
      %v3082 = vadd.f32 0.0, %v3081
      %v3083 = vpop.f32.mrb[0].mxu0
      %v3084 = vpop.f32.mrb[0].mxu0
      %v3085 = vadd.f32 0.0, %v3084
      %v3086 = vpop.f32.mrb[0].mxu0
      %3087 = vmatprep.mubr.bf16.mxu0 0
      %3088 = vmatmul.mubr.bf16.gmra.mrb[0].mxu0 %v2950
      %v3089 = vpop.f32.mrb[0].mxu0
      %v3090 = vadd.f32 0.0, %v3089
      %v3091 = vpop.f32.mrb[0].mxu0
      %v3092 = vpop.f32.mrb[0].mxu0
      %v3093 = vadd.f32 0.0, %v3092
      %v3094 = vpop.f32.mrb[0].mxu0
      %3095 = vmatprep.mubr.bf16.mxu0 0
      %3096 = vmatmul.mubr.bf16.gmra.mrb[0].mxu0 %v2953
      %v3097 = vpop.f32.mrb[0].mxu0
      %v3098 = vadd.f32 0.0, %v3097
      %v3099 = vpop.f32.mrb[0].mxu0
      %v3100 = vpop.f32.mrb[0].mxu0
      %v3101 = vadd.f32 0.0, %v3100
      %v3102 = vpop.f32.mrb[0].mxu0
      %3103 = vmatprep.mubr.bf16.mxu0 0
      %3104 = vmatmul.mubr.bf16.gmra.mrb[0].mxu0 %v2956
      %v3105 = vpop.f32.mrb[0].mxu0
      %v3106 = vadd.f32 0.0, %v3105
      %v3107 = vpop.f32.mrb[0].mxu0
      %v3108 = vpop.f32.mrb[0].mxu0
      %v3109 = vadd.f32 0.0, %v3108
      %v3110 = vpop.f32.mrb[0].mxu0
      %3111 = vmatprep.mubr.bf16.mxu0 0
      %3112 = vmatmul.mubr.bf16.gmra.mrb[0].mxu0 %v2959
      %v3113 = vpop.f32.mrb[0].mxu0
      %v3114 = vadd.f32 0.0, %v3113
      %v3115 = vpop.f32.mrb[0].mxu0
      %v3116 = vpop.f32.mrb[0].mxu0
      %v3117 = vadd.f32 0.0, %v3116
      %v3118 = vpop.f32.mrb[0].mxu0
      %3119 = vmatprep.mubr.bf16.mxu0 0
      %3120 = vmatmul.mubr.bf16.gmra.mrb[0].mxu0 %v2962
      %v3121 = vpop.f32.mrb[0].mxu0
      %v3122 = vadd.f32 0.0, %v3121
      %v3123 = vpop.f32.mrb[0].mxu0
      %v3124 = vpop.f32.mrb[0].mxu0
      %v3125 = vadd.f32 0.0, %v3124
      %v3126 = vpop.f32.mrb[0].mxu0
      %3127 = vdwg.mxu0
      %v3128 = vadd.f32 %v2302, %v3002
      %v3129 = vadd.f32 %v2305, %v3005
      %v3130 = vadd.f32 %v2310, %v3010
      %v3131 = vadd.f32 %v2313, %v3013
      %v3132 = vadd.f32 %v2318, %v3018
      %v3133 = vadd.f32 %v2321, %v3021
      %v3134 = vadd.f32 %v2326, %v3026
      %v3135 = vadd.f32 %v2329, %v3029
      %v3136 = vadd.f32 %v2334, %v3034
      %v3137 = vadd.f32 %v2337, %v3037
      %v3138 = vadd.f32 %v2342, %v3042
      %v3139 = vadd.f32 %v2345, %v3045
      %v3140 = vadd.f32 %v2350, %v3050
      %v3141 = vadd.f32 %v2353, %v3053
      %v3142 = vadd.f32 %v2358, %v3058
      %v3143 = vadd.f32 %v2361, %v3061
      %v3144 = vadd.f32 %v2366, %v3066
      %v3145 = vadd.f32 %v2369, %v3069
      %v3146 = vadd.f32 %v2374, %v3074
      %v3147 = vadd.f32 %v2377, %v3077
      %v3148 = vadd.f32 %v2382, %v3082
      %v3149 = vadd.f32 %v2385, %v3085
      %v3150 = vadd.f32 %v2390, %v3090
      %v3151 = vadd.f32 %v2393, %v3093
      %v3152 = vadd.f32 %v2398, %v3098
      %v3153 = vadd.f32 %v2401, %v3101
      %v3154 = vadd.f32 %v2406, %v3106
      %v3155 = vadd.f32 %v2409, %v3109
      %v3156 = vadd.f32 %v2414, %v3114
      %v3157 = vadd.f32 %v2417, %v3117
      %v3158 = vadd.f32 %v2422, %v3122
      %v3159 = vadd.f32 %v2425, %v3125
      %v3160 = vld [vmem:[#allocation2 + $0x8] sm:$0x80]
      %v3161 = vld [vmem:[#allocation2 + $0x88] sm:$0xff]
      %v3162 = vsel %vm1833, 0, %v3160
      %v3163 = vsel %vm1834, 0, %v2429
      %v3164 = vsel %vm1835, 0, %v2430
      %v3165 = vsel %vm1836, 0, %v2431
      %v3166 = vsel %vm1837, 0, %v2432
      %v3167 = vsel %vm1838, 0, %v2433
      %v3168 = vsel %vm1839, 0, %v2434
      %v3169 = vsel %vm1840, 0, %v2435
      %v3170 = vsel %vm1841, 0, %v2436
      %v3171 = vsel %vm1842, 0, %v2437
      %v3172 = vsel %vm1843, 0, %v2438
      %v3173 = vsel %vm1844, 0, %v2439
      %v3174 = vsel %vm1845, 0, %v2440
      %v3175 = vsel %vm1846, 0, %v2441
      %v3176 = vsel %vm1847, 0, %v2442
      %v3177 = vsel %vm1848, 0, %v2443
      %v3178 = vsel %vm1849, 0, %v3161
      %s3179 = scalar_lea.vmem %s5, 6
      %v3180 = vld [vmem:[%s3179] sm:$0x3]
      %v3182 = vshrl.u32 %v3162, 16
      %v3184 = vrot.slane %v3182, 7
      %v3186 = vshrl.u32 %v3163, 16
      %v3188 = vrot.slane %v3186, 7
      %v3189 = vshll.u32 %v3163, 16
      %v3191 = vor.u32 %v3188, %v3189
      %v3192 = vsel %vm2083, %v3184, %v3191
      %v3194 = vshrl.u32 %v3164, 16
      %v3196 = vrot.slane %v3194, 7
      %v3197 = vshll.u32 %v3164, 16
      %v3199 = vor.u32 %v3196, %v3197
      %v3200 = vsel %vm2083, %v3188, %v3199
      %v3202 = vshrl.u32 %v3165, 16
      %v3204 = vrot.slane %v3202, 7
      %v3205 = vshll.u32 %v3165, 16
      %v3207 = vor.u32 %v3204, %v3205
      %v3208 = vsel %vm2083, %v3196, %v3207
      %v3210 = vshrl.u32 %v3166, 16
      %v3212 = vrot.slane %v3210, 7
      %v3213 = vshll.u32 %v3166, 16
      %v3215 = vor.u32 %v3212, %v3213
      %v3216 = vsel %vm2083, %v3204, %v3215
      %v3218 = vshrl.u32 %v3167, 16
      %v3220 = vrot.slane %v3218, 7
      %v3221 = vshll.u32 %v3167, 16
      %v3223 = vor.u32 %v3220, %v3221
      %v3224 = vsel %vm2083, %v3212, %v3223
      %v3226 = vshrl.u32 %v3168, 16
      %v3228 = vrot.slane %v3226, 7
      %v3229 = vshll.u32 %v3168, 16
      %v3231 = vor.u32 %v3228, %v3229
      %v3232 = vsel %vm2083, %v3220, %v3231
      %v3234 = vshrl.u32 %v3169, 16
      %v3236 = vrot.slane %v3234, 7
      %v3237 = vshll.u32 %v3169, 16
      %v3239 = vor.u32 %v3236, %v3237
      %v3240 = vsel %vm2083, %v3228, %v3239
      %v3242 = vshrl.u32 %v3170, 16
      %v3244 = vrot.slane %v3242, 7
      %v3245 = vshll.u32 %v3170, 16
      %v3247 = vor.u32 %v3244, %v3245
      %v3248 = vsel %vm2083, %v3236, %v3247
      %v3250 = vshrl.u32 %v3171, 16
      %v3252 = vrot.slane %v3250, 7
      %v3253 = vshll.u32 %v3171, 16
      %v3255 = vor.u32 %v3252, %v3253
      %v3256 = vsel %vm2083, %v3244, %v3255
      %v3258 = vshrl.u32 %v3172, 16
      %v3260 = vrot.slane %v3258, 7
      %v3261 = vshll.u32 %v3172, 16
      %v3263 = vor.u32 %v3260, %v3261
      %v3264 = vsel %vm2083, %v3252, %v3263
      %v3266 = vshrl.u32 %v3173, 16
      %v3268 = vrot.slane %v3266, 7
      %v3269 = vshll.u32 %v3173, 16
      %v3271 = vor.u32 %v3268, %v3269
      %v3272 = vsel %vm2083, %v3260, %v3271
      %v3274 = vshrl.u32 %v3174, 16
      %v3276 = vrot.slane %v3274, 7
      %v3277 = vshll.u32 %v3174, 16
      %v3279 = vor.u32 %v3276, %v3277
      %v3280 = vsel %vm2083, %v3268, %v3279
      %v3282 = vshrl.u32 %v3175, 16
      %v3284 = vrot.slane %v3282, 7
      %v3285 = vshll.u32 %v3175, 16
      %v3287 = vor.u32 %v3284, %v3285
      %v3288 = vsel %vm2083, %v3276, %v3287
      %v3290 = vshrl.u32 %v3176, 16
      %v3292 = vrot.slane %v3290, 7
      %v3293 = vshll.u32 %v3176, 16
      %v3295 = vor.u32 %v3292, %v3293
      %v3296 = vsel %vm2083, %v3284, %v3295
      %v3298 = vshrl.u32 %v3177, 16
      %v3300 = vrot.slane %v3298, 7
      %v3301 = vshll.u32 %v3177, 16
      %v3303 = vor.u32 %v3300, %v3301
      %v3304 = vsel %vm2083, %v3292, %v3303
      %v3306 = vshrl.u32 %v3178, 16
      %v3308 = vrot.slane %v3306, 7
      %v3309 = vshll.u32 %v3178, 16
      %v3311 = vor.u32 %v3308, %v3309
      %v3312 = vsel %vm2083, %v3300, %v3311
      %v3314 = vsel %vm888, %v3192, 0
      %v3317 = vsel %vm888, %v3200, 0
      %v3320 = vsel %vm888, %v3208, 0
      %v3323 = vsel %vm888, %v3216, 0
      %v3326 = vsel %vm888, %v3224, 0
      %v3329 = vsel %vm888, %v3232, 0
      %v3332 = vsel %vm888, %v3240, 0
      %v3335 = vsel %vm888, %v3248, 0
      %v3338 = vsel %vm888, %v3256, 0
      %v3341 = vsel %vm888, %v3264, 0
      %v3344 = vsel %vm888, %v3272, 0
      %v3347 = vsel %vm888, %v3280, 0
      %v3350 = vsel %vm888, %v3288, 0
      %v3353 = vsel %vm888, %v3296, 0
      %v3356 = vsel %vm888, %v3304, 0
      %v3359 = vsel %vm888, %v3312, 0
      %v3362 = vsel %vm1918, %v3180, 0
      %3364 = vmatprep.subr.bf16.mxu0 0
      %3365 = vmatpush1.bf16.msra.mxu0 %v3362
      %3366 = vmatprep.subr.bf16.mxu0 0
      %3367 = vmatpush1.bf16.msra.mxu0 0
      %3368 = vmatprep.subr.bf16.mxu0 0
      %3369 = vmatpush1.bf16.msra.mxu0 0
      %3370 = vmatprep.subr.bf16.mxu0 0
      %3371 = vmatpush1.bf16.msra.mxu0 0
      %3372 = vmatprep.subr.bf16.mxu0 0
      %3373 = vmatpush1.bf16.msra.mxu0 0
      %3374 = vmatprep.subr.bf16.mxu0 0
      %3375 = vmatpush1.bf16.msra.mxu0 0
      %3376 = vmatprep.subr.bf16.mxu0 0
      %3377 = vmatpush1.bf16.msra.mxu0 0
      %3378 = vmatprep.subr.bf16.mxu0 0
      %3379 = vmatpush1.bf16.msra.mxu0 0
      %3380 = vmatprep.subr.bf16.mxu0 0
      %3381 = vmatpush1.bf16.msra.mxu0 0
      %3382 = vmatprep.subr.bf16.mxu0 0
      %3383 = vmatpush1.bf16.msra.mxu0 0
      %3384 = vmatprep.subr.bf16.mxu0 0
      %3385 = vmatpush1.bf16.msra.mxu0 0
      %3386 = vmatprep.subr.bf16.mxu0 0
      %3387 = vmatpush1.bf16.msra.mxu0 0
      %3388 = vmatprep.subr.bf16.mxu0 0
      %3389 = vmatpush1.bf16.msra.mxu0 0
      %3390 = vmatprep.subr.bf16.mxu0 0
      %3391 = vmatpush1.bf16.msra.mxu0 0
      %3392 = vmatprep.subr.bf16.mxu0 0
      %3393 = vmatpush1.bf16.msra.mxu0 0
      %3394 = vmatprep.subr.bf16.mxu0 0
      %3395 = vmatpush1.bf16.msra.mxu0 0
      %3396 = vmatprep.mubr.bf16.mxu0 0
      %3397 = vmatmul.mubr.bf16.gmra.mrb[0].mxu0 %v3314
      %v3398 = vpop.f32.mrb[0].mxu0
      %v3399 = vadd.f32 0.0, %v3398
      %v3400 = vpop.f32.mrb[0].mxu0
      %v3401 = vpop.f32.mrb[0].mxu0
      %v3402 = vadd.f32 0.0, %v3401
      %v3403 = vpop.f32.mrb[0].mxu0
      %3404 = vmatprep.mubr.bf16.mxu0 0
      %3405 = vmatmul.mubr.bf16.gmra.mrb[0].mxu0 %v3317
      %v3406 = vpop.f32.mrb[0].mxu0
      %v3407 = vadd.f32 0.0, %v3406
      %v3408 = vpop.f32.mrb[0].mxu0
      %v3409 = vpop.f32.mrb[0].mxu0
      %v3410 = vadd.f32 0.0, %v3409
      %v3411 = vpop.f32.mrb[0].mxu0
      %3412 = vmatprep.mubr.bf16.mxu0 0
      %3413 = vmatmul.mubr.bf16.gmra.mrb[0].mxu0 %v3320
      %v3414 = vpop.f32.mrb[0].mxu0
      %v3415 = vadd.f32 0.0, %v3414
      %v3416 = vpop.f32.mrb[0].mxu0
      %v3417 = vpop.f32.mrb[0].mxu0
      %v3418 = vadd.f32 0.0, %v3417
      %v3419 = vpop.f32.mrb[0].mxu0
      %3420 = vmatprep.mubr.bf16.mxu0 0
      %3421 = vmatmul.mubr.bf16.gmra.mrb[0].mxu0 %v3323
      %v3422 = vpop.f32.mrb[0].mxu0
      %v3423 = vadd.f32 0.0, %v3422
      %v3424 = vpop.f32.mrb[0].mxu0
      %v3425 = vpop.f32.mrb[0].mxu0
      %v3426 = vadd.f32 0.0, %v3425
      %v3427 = vpop.f32.mrb[0].mxu0
      %3428 = vmatprep.mubr.bf16.mxu0 0
      %3429 = vmatmul.mubr.bf16.gmra.mrb[0].mxu0 %v3326
      %v3430 = vpop.f32.mrb[0].mxu0
      %v3431 = vadd.f32 0.0, %v3430
      %v3432 = vpop.f32.mrb[0].mxu0
      %v3433 = vpop.f32.mrb[0].mxu0
      %v3434 = vadd.f32 0.0, %v3433
      %v3435 = vpop.f32.mrb[0].mxu0
      %3436 = vmatprep.mubr.bf16.mxu0 0
      %3437 = vmatmul.mubr.bf16.gmra.mrb[0].mxu0 %v3329
      %v3438 = vpop.f32.mrb[0].mxu0
      %v3439 = vadd.f32 0.0, %v3438
      %v3440 = vpop.f32.mrb[0].mxu0
      %v3441 = vpop.f32.mrb[0].mxu0
      %v3442 = vadd.f32 0.0, %v3441
      %v3443 = vpop.f32.mrb[0].mxu0
      %3444 = vmatprep.mubr.bf16.mxu0 0
      %3445 = vmatmul.mubr.bf16.gmra.mrb[0].mxu0 %v3332
      %v3446 = vpop.f32.mrb[0].mxu0
      %v3447 = vadd.f32 0.0, %v3446
      %v3448 = vpop.f32.mrb[0].mxu0
      %v3449 = vpop.f32.mrb[0].mxu0
      %v3450 = vadd.f32 0.0, %v3449
      %v3451 = vpop.f32.mrb[0].mxu0
      %3452 = vmatprep.mubr.bf16.mxu0 0
      %3453 = vmatmul.mubr.bf16.gmra.mrb[0].mxu0 %v3335
      %v3454 = vpop.f32.mrb[0].mxu0
      %v3455 = vadd.f32 0.0, %v3454
      %v3456 = vpop.f32.mrb[0].mxu0
      %v3457 = vpop.f32.mrb[0].mxu0
      %v3458 = vadd.f32 0.0, %v3457
      %v3459 = vpop.f32.mrb[0].mxu0
      %3460 = vmatprep.mubr.bf16.mxu0 0
      %3461 = vmatmul.mubr.bf16.gmra.mrb[0].mxu0 %v3338
      %v3462 = vpop.f32.mrb[0].mxu0
      %v3463 = vadd.f32 0.0, %v3462
      %v3464 = vpop.f32.mrb[0].mxu0
      %v3465 = vpop.f32.mrb[0].mxu0
      %v3466 = vadd.f32 0.0, %v3465
      %v3467 = vpop.f32.mrb[0].mxu0
      %3468 = vmatprep.mubr.bf16.mxu0 0
      %3469 = vmatmul.mubr.bf16.gmra.mrb[0].mxu0 %v3341
      %v3470 = vpop.f32.mrb[0].mxu0
      %v3471 = vadd.f32 0.0, %v3470
      %v3472 = vpop.f32.mrb[0].mxu0
      %v3473 = vpop.f32.mrb[0].mxu0
      %v3474 = vadd.f32 0.0, %v3473
      %v3475 = vpop.f32.mrb[0].mxu0
      %3476 = vmatprep.mubr.bf16.mxu0 0
      %3477 = vmatmul.mubr.bf16.gmra.mrb[0].mxu0 %v3344
      %v3478 = vpop.f32.mrb[0].mxu0
      %v3479 = vadd.f32 0.0, %v3478
      %v3480 = vpop.f32.mrb[0].mxu0
      %v3481 = vpop.f32.mrb[0].mxu0
      %v3482 = vadd.f32 0.0, %v3481
      %v3483 = vpop.f32.mrb[0].mxu0
      %3484 = vmatprep.mubr.bf16.mxu0 0
      %3485 = vmatmul.mubr.bf16.gmra.mrb[0].mxu0 %v3347
      %v3486 = vpop.f32.mrb[0].mxu0
      %v3487 = vadd.f32 0.0, %v3486
      %v3488 = vpop.f32.mrb[0].mxu0
      %v3489 = vpop.f32.mrb[0].mxu0
      %v3490 = vadd.f32 0.0, %v3489
      %v3491 = vpop.f32.mrb[0].mxu0
      %3492 = vmatprep.mubr.bf16.mxu0 0
      %3493 = vmatmul.mubr.bf16.gmra.mrb[0].mxu0 %v3350
      %v3494 = vpop.f32.mrb[0].mxu0
      %v3495 = vadd.f32 0.0, %v3494
      %v3496 = vpop.f32.mrb[0].mxu0
      %v3497 = vpop.f32.mrb[0].mxu0
      %v3498 = vadd.f32 0.0, %v3497
      %v3499 = vpop.f32.mrb[0].mxu0
      %3500 = vmatprep.mubr.bf16.mxu0 0
      %3501 = vmatmul.mubr.bf16.gmra.mrb[0].mxu0 %v3353
      %v3502 = vpop.f32.mrb[0].mxu0
      %v3503 = vadd.f32 0.0, %v3502
      %v3504 = vpop.f32.mrb[0].mxu0
      %v3505 = vpop.f32.mrb[0].mxu0
      %v3506 = vadd.f32 0.0, %v3505
      %v3507 = vpop.f32.mrb[0].mxu0
      %3508 = vmatprep.mubr.bf16.mxu0 0
      %3509 = vmatmul.mubr.bf16.gmra.mrb[0].mxu0 %v3356
      %v3510 = vpop.f32.mrb[0].mxu0
      %v3511 = vadd.f32 0.0, %v3510
      %v3512 = vpop.f32.mrb[0].mxu0
      %v3513 = vpop.f32.mrb[0].mxu0
      %v3514 = vadd.f32 0.0, %v3513
      %v3515 = vpop.f32.mrb[0].mxu0
      %3516 = vmatprep.mubr.bf16.mxu0 0
      %3517 = vmatmul.mubr.bf16.gmra.mrb[0].mxu0 %v3359
      %v3518 = vpop.f32.mrb[0].mxu0
      %v3519 = vadd.f32 0.0, %v3518
      %v3520 = vpop.f32.mrb[0].mxu0
      %v3521 = vpop.f32.mrb[0].mxu0
      %v3522 = vadd.f32 0.0, %v3521
      %v3523 = vpop.f32.mrb[0].mxu0
      %3524 = vdwg.mxu0
      %v3525 = vadd.f32 %v3128, %v3399
      %v3526 = vadd.f32 %v3129, %v3402
      %v3527 = vadd.f32 %v3130, %v3407
      %v3528 = vadd.f32 %v3131, %v3410
      %v3529 = vadd.f32 %v3132, %v3415
      %v3530 = vadd.f32 %v3133, %v3418
      %v3531 = vadd.f32 %v3134, %v3423
      %v3532 = vadd.f32 %v3135, %v3426
      %v3533 = vadd.f32 %v3136, %v3431
      %v3534 = vadd.f32 %v3137, %v3434
      %v3535 = vadd.f32 %v3138, %v3439
      %v3536 = vadd.f32 %v3139, %v3442
      %v3537 = vadd.f32 %v3140, %v3447
      %v3538 = vadd.f32 %v3141, %v3450
      %v3539 = vadd.f32 %v3142, %v3455
      %v3540 = vadd.f32 %v3143, %v3458
      %v3541 = vadd.f32 %v3144, %v3463
      %v3542 = vadd.f32 %v3145, %v3466
      %v3543 = vadd.f32 %v3146, %v3471
      %v3544 = vadd.f32 %v3147, %v3474
      %v3545 = vadd.f32 %v3148, %v3479
      %v3546 = vadd.f32 %v3149, %v3482
      %v3547 = vadd.f32 %v3150, %v3487
      %v3548 = vadd.f32 %v3151, %v3490
      %v3549 = vadd.f32 %v3152, %v3495
      %v3550 = vadd.f32 %v3153, %v3498
      %v3551 = vadd.f32 %v3154, %v3503
      %v3552 = vadd.f32 %v3155, %v3506
      %v3553 = vadd.f32 %v3156, %v3511
      %v3554 = vadd.f32 %v3157, %v3514
      %v3555 = vadd.f32 %v3158, %v3519
      %v3556 = vadd.f32 %v3159, %v3522
      %s3557 = scalar_lea.vmem %s5, 8
      %v3558 = vld [vmem:[%s3557] sm:$0x3]
      %v3560 = vsel %vm888, %v2429, 0
      %v3563 = vsel %vm888, %v2430, 0
      %v3566 = vsel %vm888, %v2431, 0
      %v3569 = vsel %vm888, %v2432, 0
      %v3572 = vsel %vm888, %v2433, 0
      %v3575 = vsel %vm888, %v2434, 0
      %v3578 = vsel %vm888, %v2435, 0
      %v3581 = vsel %vm888, %v2436, 0
      %v3584 = vsel %vm888, %v2437, 0
      %v3587 = vsel %vm888, %v2438, 0
      %v3590 = vsel %vm888, %v2439, 0
      %v3593 = vsel %vm888, %v2440, 0
      %v3596 = vsel %vm888, %v2441, 0
      %v3599 = vsel %vm888, %v2442, 0
      %v3602 = vsel %vm888, %v2443, 0
      %v3605 = vsel %vm888, %v3161, 0
      %v3608 = vsel %vm1918, %v3558, 0
      %3610 = vmatprep.subr.bf16.mxu0 0
      %3611 = vmatpush1.bf16.msra.mxu0 %v3608
      %3612 = vmatprep.subr.bf16.mxu0 0
      %3613 = vmatpush1.bf16.msra.mxu0 0
      %3614 = vmatprep.subr.bf16.mxu0 0
      %3615 = vmatpush1.bf16.msra.mxu0 0
      %3616 = vmatprep.subr.bf16.mxu0 0
      %3617 = vmatpush1.bf16.msra.mxu0 0
      %3618 = vmatprep.subr.bf16.mxu0 0
      %3619 = vmatpush1.bf16.msra.mxu0 0
      %3620 = vmatprep.subr.bf16.mxu0 0
      %3621 = vmatpush1.bf16.msra.mxu0 0
      %3622 = vmatprep.subr.bf16.mxu0 0
      %3623 = vmatpush1.bf16.msra.mxu0 0
      %3624 = vmatprep.subr.bf16.mxu0 0
      %3625 = vmatpush1.bf16.msra.mxu0 0
      %3626 = vmatprep.subr.bf16.mxu0 0
      %3627 = vmatpush1.bf16.msra.mxu0 0
      %3628 = vmatprep.subr.bf16.mxu0 0
      %3629 = vmatpush1.bf16.msra.mxu0 0
      %3630 = vmatprep.subr.bf16.mxu0 0
      %3631 = vmatpush1.bf16.msra.mxu0 0
      %3632 = vmatprep.subr.bf16.mxu0 0
      %3633 = vmatpush1.bf16.msra.mxu0 0
      %3634 = vmatprep.subr.bf16.mxu0 0
      %3635 = vmatpush1.bf16.msra.mxu0 0
      %3636 = vmatprep.subr.bf16.mxu0 0
      %3637 = vmatpush1.bf16.msra.mxu0 0
      %3638 = vmatprep.subr.bf16.mxu0 0
      %3639 = vmatpush1.bf16.msra.mxu0 0
      %3640 = vmatprep.subr.bf16.mxu0 0
      %3641 = vmatpush1.bf16.msra.mxu0 0
      %3642 = vmatprep.mubr.bf16.mxu0 0
      %3643 = vmatmul.mubr.bf16.gmra.mrb[0].mxu0 %v3560
      %v3644 = vpop.f32.mrb[0].mxu0
      %v3645 = vadd.f32 0.0, %v3644
      %v3646 = vpop.f32.mrb[0].mxu0
      %v3647 = vpop.f32.mrb[0].mxu0
      %v3648 = vadd.f32 0.0, %v3647
      %v3649 = vpop.f32.mrb[0].mxu0
      %3650 = vmatprep.mubr.bf16.mxu0 0
      %3651 = vmatmul.mubr.bf16.gmra.mrb[0].mxu0 %v3563
      %v3652 = vpop.f32.mrb[0].mxu0
      %v3653 = vadd.f32 0.0, %v3652
      %v3654 = vpop.f32.mrb[0].mxu0
      %v3655 = vpop.f32.mrb[0].mxu0
      %v3656 = vadd.f32 0.0, %v3655
      %v3657 = vpop.f32.mrb[0].mxu0
      %3658 = vmatprep.mubr.bf16.mxu0 0
      %3659 = vmatmul.mubr.bf16.gmra.mrb[0].mxu0 %v3566
      %v3660 = vpop.f32.mrb[0].mxu0
      %v3661 = vadd.f32 0.0, %v3660
      %v3662 = vpop.f32.mrb[0].mxu0
      %v3663 = vpop.f32.mrb[0].mxu0
      %v3664 = vadd.f32 0.0, %v3663
      %v3665 = vpop.f32.mrb[0].mxu0
      %3666 = vmatprep.mubr.bf16.mxu0 0
      %3667 = vmatmul.mubr.bf16.gmra.mrb[0].mxu0 %v3569
      %v3668 = vpop.f32.mrb[0].mxu0
      %v3669 = vadd.f32 0.0, %v3668
      %v3670 = vpop.f32.mrb[0].mxu0
      %v3671 = vpop.f32.mrb[0].mxu0
      %v3672 = vadd.f32 0.0, %v3671
      %v3673 = vpop.f32.mrb[0].mxu0
      %3674 = vmatprep.mubr.bf16.mxu0 0
      %3675 = vmatmul.mubr.bf16.gmra.mrb[0].mxu0 %v3572
      %v3676 = vpop.f32.mrb[0].mxu0
      %v3677 = vadd.f32 0.0, %v3676
      %v3678 = vpop.f32.mrb[0].mxu0
      %v3679 = vpop.f32.mrb[0].mxu0
      %v3680 = vadd.f32 0.0, %v3679
      %v3681 = vpop.f32.mrb[0].mxu0
      %3682 = vmatprep.mubr.bf16.mxu0 0
      %3683 = vmatmul.mubr.bf16.gmra.mrb[0].mxu0 %v3575
      %v3684 = vpop.f32.mrb[0].mxu0
      %v3685 = vadd.f32 0.0, %v3684
      %v3686 = vpop.f32.mrb[0].mxu0
      %v3687 = vpop.f32.mrb[0].mxu0
      %v3688 = vadd.f32 0.0, %v3687
      %v3689 = vpop.f32.mrb[0].mxu0
      %3690 = vmatprep.mubr.bf16.mxu0 0
      %3691 = vmatmul.mubr.bf16.gmra.mrb[0].mxu0 %v3578
      %v3692 = vpop.f32.mrb[0].mxu0
      %v3693 = vadd.f32 0.0, %v3692
      %v3694 = vpop.f32.mrb[0].mxu0
      %v3695 = vpop.f32.mrb[0].mxu0
      %v3696 = vadd.f32 0.0, %v3695
      %v3697 = vpop.f32.mrb[0].mxu0
      %3698 = vmatprep.mubr.bf16.mxu0 0
      %3699 = vmatmul.mubr.bf16.gmra.mrb[0].mxu0 %v3581
      %v3700 = vpop.f32.mrb[0].mxu0
      %v3701 = vadd.f32 0.0, %v3700
      %v3702 = vpop.f32.mrb[0].mxu0
      %v3703 = vpop.f32.mrb[0].mxu0
      %v3704 = vadd.f32 0.0, %v3703
      %v3705 = vpop.f32.mrb[0].mxu0
      %3706 = vmatprep.mubr.bf16.mxu0 0
      %3707 = vmatmul.mubr.bf16.gmra.mrb[0].mxu0 %v3584
      %v3708 = vpop.f32.mrb[0].mxu0
      %v3709 = vadd.f32 0.0, %v3708
      %v3710 = vpop.f32.mrb[0].mxu0
      %v3711 = vpop.f32.mrb[0].mxu0
      %v3712 = vadd.f32 0.0, %v3711
      %v3713 = vpop.f32.mrb[0].mxu0
      %3714 = vmatprep.mubr.bf16.mxu0 0
      %3715 = vmatmul.mubr.bf16.gmra.mrb[0].mxu0 %v3587
      %v3716 = vpop.f32.mrb[0].mxu0
      %v3717 = vadd.f32 0.0, %v3716
      %v3718 = vpop.f32.mrb[0].mxu0
      %v3719 = vpop.f32.mrb[0].mxu0
      %v3720 = vadd.f32 0.0, %v3719
      %v3721 = vpop.f32.mrb[0].mxu0
      %3722 = vmatprep.mubr.bf16.mxu0 0
      %3723 = vmatmul.mubr.bf16.gmra.mrb[0].mxu0 %v3590
      %v3724 = vpop.f32.mrb[0].mxu0
      %v3725 = vadd.f32 0.0, %v3724
      %v3726 = vpop.f32.mrb[0].mxu0
      %v3727 = vpop.f32.mrb[0].mxu0
      %v3728 = vadd.f32 0.0, %v3727
      %v3729 = vpop.f32.mrb[0].mxu0
      %3730 = vmatprep.mubr.bf16.mxu0 0
      %3731 = vmatmul.mubr.bf16.gmra.mrb[0].mxu0 %v3593
      %v3732 = vpop.f32.mrb[0].mxu0
      %v3733 = vadd.f32 0.0, %v3732
      %v3734 = vpop.f32.mrb[0].mxu0
      %v3735 = vpop.f32.mrb[0].mxu0
      %v3736 = vadd.f32 0.0, %v3735
      %v3737 = vpop.f32.mrb[0].mxu0
      %3738 = vmatprep.mubr.bf16.mxu0 0
      %3739 = vmatmul.mubr.bf16.gmra.mrb[0].mxu0 %v3596
      %v3740 = vpop.f32.mrb[0].mxu0
      %v3741 = vadd.f32 0.0, %v3740
      %v3742 = vpop.f32.mrb[0].mxu0
      %v3743 = vpop.f32.mrb[0].mxu0
      %v3744 = vadd.f32 0.0, %v3743
      %v3745 = vpop.f32.mrb[0].mxu0
      %3746 = vmatprep.mubr.bf16.mxu0 0
      %3747 = vmatmul.mubr.bf16.gmra.mrb[0].mxu0 %v3599
      %v3748 = vpop.f32.mrb[0].mxu0
      %v3749 = vadd.f32 0.0, %v3748
      %v3750 = vpop.f32.mrb[0].mxu0
      %v3751 = vpop.f32.mrb[0].mxu0
      %v3752 = vadd.f32 0.0, %v3751
      %v3753 = vpop.f32.mrb[0].mxu0
      %3754 = vmatprep.mubr.bf16.mxu0 0
      %3755 = vmatmul.mubr.bf16.gmra.mrb[0].mxu0 %v3602
      %v3756 = vpop.f32.mrb[0].mxu0
      %v3757 = vadd.f32 0.0, %v3756
      %v3758 = vpop.f32.mrb[0].mxu0
      %v3759 = vpop.f32.mrb[0].mxu0
      %v3760 = vadd.f32 0.0, %v3759
      %v3761 = vpop.f32.mrb[0].mxu0
      %3762 = vmatprep.mubr.bf16.mxu0 0
      %3763 = vmatmul.mubr.bf16.gmra.mrb[0].mxu0 %v3605
      %v3764 = vpop.f32.mrb[0].mxu0
      %v3765 = vadd.f32 0.0, %v3764
      %v3766 = vpop.f32.mrb[0].mxu0
      %v3767 = vpop.f32.mrb[0].mxu0
      %v3768 = vadd.f32 0.0, %v3767
      %v3769 = vpop.f32.mrb[0].mxu0
      %3770 = vdwg.mxu0
      %v3771 = vadd.f32 %v3525, %v3645
      %v3772 = vadd.f32 %v3526, %v3648
      %v3773 = vadd.f32 %v3527, %v3653
      %v3774 = vadd.f32 %v3528, %v3656
      %v3775 = vadd.f32 %v3529, %v3661
      %v3776 = vadd.f32 %v3530, %v3664
      %v3777 = vadd.f32 %v3531, %v3669
      %v3778 = vadd.f32 %v3532, %v3672
      %v3779 = vadd.f32 %v3533, %v3677
      %v3780 = vadd.f32 %v3534, %v3680
      %v3781 = vadd.f32 %v3535, %v3685
      %v3782 = vadd.f32 %v3536, %v3688
      %v3783 = vadd.f32 %v3537, %v3693
      %v3784 = vadd.f32 %v3538, %v3696
      %v3785 = vadd.f32 %v3539, %v3701
      %v3786 = vadd.f32 %v3540, %v3704
      %v3787 = vadd.f32 %v3541, %v3709
      %v3788 = vadd.f32 %v3542, %v3712
      %v3789 = vadd.f32 %v3543, %v3717
      %v3790 = vadd.f32 %v3544, %v3720
      %v3791 = vadd.f32 %v3545, %v3725
      %v3792 = vadd.f32 %v3546, %v3728
      %v3793 = vadd.f32 %v3547, %v3733
      %v3794 = vadd.f32 %v3548, %v3736
      %v3795 = vadd.f32 %v3549, %v3741
      %v3796 = vadd.f32 %v3550, %v3744
      %v3797 = vadd.f32 %v3551, %v3749
      %v3798 = vadd.f32 %v3552, %v3752
      %v3799 = vadd.f32 %v3553, %v3757
      %v3800 = vadd.f32 %v3554, %v3760
      %v3801 = vadd.f32 %v3555, %v3765
      %v3802 = vadd.f32 %v3556, %v3768
      %v3803 = vld [vmem:[#allocation2 + $0x10] sm:$0xff]
      %v3804 = vld [vmem:[#allocation2 + $0x18] sm:$0xff]
      %v3805 = vld [vmem:[#allocation2 + $0x20] sm:$0xff]
      %v3806 = vld [vmem:[#allocation2 + $0x28] sm:$0xff]
      %v3807 = vld [vmem:[#allocation2 + $0x30] sm:$0xff]
      %v3808 = vld [vmem:[#allocation2 + $0x38] sm:$0xff]
      %v3809 = vld [vmem:[#allocation2 + $0x40] sm:$0xff]
      %v3810 = vld [vmem:[#allocation2 + $0x48] sm:$0xff]
      %v3811 = vld [vmem:[#allocation2 + $0x50] sm:$0xff]
      %v3812 = vld [vmem:[#allocation2 + $0x58] sm:$0xff]
      %v3813 = vld [vmem:[#allocation2 + $0x60] sm:$0xff]
      %v3814 = vld [vmem:[#allocation2 + $0x68] sm:$0xff]
      %v3815 = vld [vmem:[#allocation2 + $0x70] sm:$0xff]
      %v3816 = vld [vmem:[#allocation2 + $0x78] sm:$0xff]
      %v3817 = vld [vmem:[#allocation2 + $0x80] sm:$0xff]
      %v3818 = vld [vmem:[#allocation2 + $0x88] sm:$0xff]
      %v3819 = vld [vmem:[#allocation2 + $0x90] sm:$0x1]
      %v3820 = vsel %vm2748, 0, %v3803
      %v3821 = vsel %vm2749, 0, %v3804
      %v3822 = vsel %vm2750, 0, %v3805
      %v3823 = vsel %vm2751, 0, %v3806
      %v3824 = vsel %vm2752, 0, %v3807
      %v3825 = vsel %vm2753, 0, %v3808
      %v3826 = vsel %vm2754, 0, %v3809
      %v3827 = vsel %vm2755, 0, %v3810
      %v3828 = vsel %vm2756, 0, %v3811
      %v3829 = vsel %vm2757, 0, %v3812
      %v3830 = vsel %vm2758, 0, %v3813
      %v3831 = vsel %vm2759, 0, %v3814
      %v3832 = vsel %vm2760, 0, %v3815
      %v3833 = vsel %vm2761, 0, %v3816
      %v3834 = vsel %vm2762, 0, %v3817
      %v3835 = vsel %vm2763, 0, %v3818
      %v3836 = vsel %vm2764, 0, %v3819
      %s3837 = scalar_lea.vmem %s5, 10
      %v3838 = vld [vmem:[%s3837] sm:$0x3]
      %v3840 = vshrl.u32 %v3820, 16
      %v3842 = vshll.u32 %v3820, 16
      %v3844 = vrot.slane %v3842, 1
      %v3845 = vor.u32 %v3840, %v3844
      %v3847 = vshll.u32 %v3821, 16
      %v3849 = vrot.slane %v3847, 1
      %v3850 = vsel %vm1705, %v3845, %v3849
      %v3851 = vshrl.u32 %v3821, 16
      %v3853 = vor.u32 %v3851, %v3849
      %v3855 = vshll.u32 %v3822, 16
      %v3857 = vrot.slane %v3855, 1
      %v3858 = vsel %vm1705, %v3853, %v3857
      %v3859 = vshrl.u32 %v3822, 16
      %v3861 = vor.u32 %v3859, %v3857
      %v3863 = vshll.u32 %v3823, 16
      %v3865 = vrot.slane %v3863, 1
      %v3866 = vsel %vm1705, %v3861, %v3865
      %v3867 = vshrl.u32 %v3823, 16
      %v3869 = vor.u32 %v3867, %v3865
      %v3871 = vshll.u32 %v3824, 16
      %v3873 = vrot.slane %v3871, 1
      %v3874 = vsel %vm1705, %v3869, %v3873
      %v3875 = vshrl.u32 %v3824, 16
      %v3877 = vor.u32 %v3875, %v3873
      %v3879 = vshll.u32 %v3825, 16
      %v3881 = vrot.slane %v3879, 1
      %v3882 = vsel %vm1705, %v3877, %v3881
      %v3883 = vshrl.u32 %v3825, 16
      %v3885 = vor.u32 %v3883, %v3881
      %v3887 = vshll.u32 %v3826, 16
      %v3889 = vrot.slane %v3887, 1
      %v3890 = vsel %vm1705, %v3885, %v3889
      %v3891 = vshrl.u32 %v3826, 16
      %v3893 = vor.u32 %v3891, %v3889
      %v3895 = vshll.u32 %v3827, 16
      %v3897 = vrot.slane %v3895, 1
      %v3898 = vsel %vm1705, %v3893, %v3897
      %v3899 = vshrl.u32 %v3827, 16
      %v3901 = vor.u32 %v3899, %v3897
      %v3903 = vshll.u32 %v3828, 16
      %v3905 = vrot.slane %v3903, 1
      %v3906 = vsel %vm1705, %v3901, %v3905
      %v3907 = vshrl.u32 %v3828, 16
      %v3909 = vor.u32 %v3907, %v3905
      %v3911 = vshll.u32 %v3829, 16
      %v3913 = vrot.slane %v3911, 1
      %v3914 = vsel %vm1705, %v3909, %v3913
      %v3915 = vshrl.u32 %v3829, 16
      %v3917 = vor.u32 %v3915, %v3913
      %v3919 = vshll.u32 %v3830, 16
      %v3921 = vrot.slane %v3919, 1
      %v3922 = vsel %vm1705, %v3917, %v3921
      %v3923 = vshrl.u32 %v3830, 16
      %v3925 = vor.u32 %v3923, %v3921
      %v3927 = vshll.u32 %v3831, 16
      %v3929 = vrot.slane %v3927, 1
      %v3930 = vsel %vm1705, %v3925, %v3929
      %v3931 = vshrl.u32 %v3831, 16
      %v3933 = vor.u32 %v3931, %v3929
      %v3935 = vshll.u32 %v3832, 16
      %v3937 = vrot.slane %v3935, 1
      %v3938 = vsel %vm1705, %v3933, %v3937
      %v3939 = vshrl.u32 %v3832, 16
      %v3941 = vor.u32 %v3939, %v3937
      %v3943 = vshll.u32 %v3833, 16
      %v3945 = vrot.slane %v3943, 1
      %v3946 = vsel %vm1705, %v3941, %v3945
      %v3947 = vshrl.u32 %v3833, 16
      %v3949 = vor.u32 %v3947, %v3945
      %v3951 = vshll.u32 %v3834, 16
      %v3953 = vrot.slane %v3951, 1
      %v3954 = vsel %vm1705, %v3949, %v3953
      %v3955 = vshrl.u32 %v3834, 16
      %v3957 = vor.u32 %v3955, %v3953
      %v3959 = vshll.u32 %v3835, 16
      %v3961 = vrot.slane %v3959, 1
      %v3962 = vsel %vm1705, %v3957, %v3961
      %v3963 = vshrl.u32 %v3835, 16
      %v3965 = vor.u32 %v3963, %v3961
      %v3967 = vshll.u32 %v3836, 16
      %v3969 = vrot.slane %v3967, 1
      %v3970 = vsel %vm1705, %v3965, %v3969
      %v3972 = vsel %vm888, %v3850, 0
      %v3975 = vsel %vm888, %v3858, 0
      %v3978 = vsel %vm888, %v3866, 0
      %v3981 = vsel %vm888, %v3874, 0
      %v3984 = vsel %vm888, %v3882, 0
      %v3987 = vsel %vm888, %v3890, 0
      %v3990 = vsel %vm888, %v3898, 0
      %v3993 = vsel %vm888, %v3906, 0
      %v3996 = vsel %vm888, %v3914, 0
      %v3999 = vsel %vm888, %v3922, 0
      %v4002 = vsel %vm888, %v3930, 0
      %v4005 = vsel %vm888, %v3938, 0
      %v4008 = vsel %vm888, %v3946, 0
      %v4011 = vsel %vm888, %v3954, 0
      %v4014 = vsel %vm888, %v3962, 0
      %v4017 = vsel %vm888, %v3970, 0
      %v4020 = vsel %vm1918, %v3838, 0
      %4022 = vmatprep.subr.bf16.mxu0 0
      %4023 = vmatpush1.bf16.msra.mxu0 %v4020
      %4024 = vmatprep.subr.bf16.mxu0 0
      %4025 = vmatpush1.bf16.msra.mxu0 0
      %4026 = vmatprep.subr.bf16.mxu0 0
      %4027 = vmatpush1.bf16.msra.mxu0 0
      %4028 = vmatprep.subr.bf16.mxu0 0
      %4029 = vmatpush1.bf16.msra.mxu0 0
      %4030 = vmatprep.subr.bf16.mxu0 0
      %4031 = vmatpush1.bf16.msra.mxu0 0
      %4032 = vmatprep.subr.bf16.mxu0 0
      %4033 = vmatpush1.bf16.msra.mxu0 0
      %4034 = vmatprep.subr.bf16.mxu0 0
      %4035 = vmatpush1.bf16.msra.mxu0 0
      %4036 = vmatprep.subr.bf16.mxu0 0
      %4037 = vmatpush1.bf16.msra.mxu0 0
      %4038 = vmatprep.subr.bf16.mxu0 0
      %4039 = vmatpush1.bf16.msra.mxu0 0
      %4040 = vmatprep.subr.bf16.mxu0 0
      %4041 = vmatpush1.bf16.msra.mxu0 0
      %4042 = vmatprep.subr.bf16.mxu0 0
      %4043 = vmatpush1.bf16.msra.mxu0 0
      %4044 = vmatprep.subr.bf16.mxu0 0
      %4045 = vmatpush1.bf16.msra.mxu0 0
      %4046 = vmatprep.subr.bf16.mxu0 0
      %4047 = vmatpush1.bf16.msra.mxu0 0
      %4048 = vmatprep.subr.bf16.mxu0 0
      %4049 = vmatpush1.bf16.msra.mxu0 0
      %4050 = vmatprep.subr.bf16.mxu0 0
      %4051 = vmatpush1.bf16.msra.mxu0 0
      %4052 = vmatprep.subr.bf16.mxu0 0
      %4053 = vmatpush1.bf16.msra.mxu0 0
      %4054 = vmatprep.mubr.bf16.mxu0 0
      %4055 = vmatmul.mubr.bf16.gmra.mrb[0].mxu0 %v3972
      %v4056 = vpop.f32.mrb[0].mxu0
      %v4057 = vadd.f32 0.0, %v4056
      %v4058 = vpop.f32.mrb[0].mxu0
      %v4059 = vpop.f32.mrb[0].mxu0
      %v4060 = vadd.f32 0.0, %v4059
      %v4061 = vpop.f32.mrb[0].mxu0
      %4062 = vmatprep.mubr.bf16.mxu0 0
      %4063 = vmatmul.mubr.bf16.gmra.mrb[0].mxu0 %v3975
      %v4064 = vpop.f32.mrb[0].mxu0
      %v4065 = vadd.f32 0.0, %v4064
      %v4066 = vpop.f32.mrb[0].mxu0
      %v4067 = vpop.f32.mrb[0].mxu0
      %v4068 = vadd.f32 0.0, %v4067
      %v4069 = vpop.f32.mrb[0].mxu0
      %4070 = vmatprep.mubr.bf16.mxu0 0
      %4071 = vmatmul.mubr.bf16.gmra.mrb[0].mxu0 %v3978
      %v4072 = vpop.f32.mrb[0].mxu0
      %v4073 = vadd.f32 0.0, %v4072
      %v4074 = vpop.f32.mrb[0].mxu0
      %v4075 = vpop.f32.mrb[0].mxu0
      %v4076 = vadd.f32 0.0, %v4075
      %v4077 = vpop.f32.mrb[0].mxu0
      %4078 = vmatprep.mubr.bf16.mxu0 0
      %4079 = vmatmul.mubr.bf16.gmra.mrb[0].mxu0 %v3981
      %v4080 = vpop.f32.mrb[0].mxu0
      %v4081 = vadd.f32 0.0, %v4080
      %v4082 = vpop.f32.mrb[0].mxu0
      %v4083 = vpop.f32.mrb[0].mxu0
      %v4084 = vadd.f32 0.0, %v4083
      %v4085 = vpop.f32.mrb[0].mxu0
      %4086 = vmatprep.mubr.bf16.mxu0 0
      %4087 = vmatmul.mubr.bf16.gmra.mrb[0].mxu0 %v3984
      %v4088 = vpop.f32.mrb[0].mxu0
      %v4089 = vadd.f32 0.0, %v4088
      %v4090 = vpop.f32.mrb[0].mxu0
      %v4091 = vpop.f32.mrb[0].mxu0
      %v4092 = vadd.f32 0.0, %v4091
      %v4093 = vpop.f32.mrb[0].mxu0
      %4094 = vmatprep.mubr.bf16.mxu0 0
      %4095 = vmatmul.mubr.bf16.gmra.mrb[0].mxu0 %v3987
      %v4096 = vpop.f32.mrb[0].mxu0
      %v4097 = vadd.f32 0.0, %v4096
      %v4098 = vpop.f32.mrb[0].mxu0
      %v4099 = vpop.f32.mrb[0].mxu0
      %v4100 = vadd.f32 0.0, %v4099
      %v4101 = vpop.f32.mrb[0].mxu0
      %4102 = vmatprep.mubr.bf16.mxu0 0
      %4103 = vmatmul.mubr.bf16.gmra.mrb[0].mxu0 %v3990
      %v4104 = vpop.f32.mrb[0].mxu0
      %v4105 = vadd.f32 0.0, %v4104
      %v4106 = vpop.f32.mrb[0].mxu0
      %v4107 = vpop.f32.mrb[0].mxu0
      %v4108 = vadd.f32 0.0, %v4107
      %v4109 = vpop.f32.mrb[0].mxu0
      %4110 = vmatprep.mubr.bf16.mxu0 0
      %4111 = vmatmul.mubr.bf16.gmra.mrb[0].mxu0 %v3993
      %v4112 = vpop.f32.mrb[0].mxu0
      %v4113 = vadd.f32 0.0, %v4112
      %v4114 = vpop.f32.mrb[0].mxu0
      %v4115 = vpop.f32.mrb[0].mxu0
      %v4116 = vadd.f32 0.0, %v4115
      %v4117 = vpop.f32.mrb[0].mxu0
      %4118 = vmatprep.mubr.bf16.mxu0 0
      %4119 = vmatmul.mubr.bf16.gmra.mrb[0].mxu0 %v3996
      %v4120 = vpop.f32.mrb[0].mxu0
      %v4121 = vadd.f32 0.0, %v4120
      %v4122 = vpop.f32.mrb[0].mxu0
      %v4123 = vpop.f32.mrb[0].mxu0
      %v4124 = vadd.f32 0.0, %v4123
      %v4125 = vpop.f32.mrb[0].mxu0
      %4126 = vmatprep.mubr.bf16.mxu0 0
      %4127 = vmatmul.mubr.bf16.gmra.mrb[0].mxu0 %v3999
      %v4128 = vpop.f32.mrb[0].mxu0
      %v4129 = vadd.f32 0.0, %v4128
      %v4130 = vpop.f32.mrb[0].mxu0
      %v4131 = vpop.f32.mrb[0].mxu0
      %v4132 = vadd.f32 0.0, %v4131
      %v4133 = vpop.f32.mrb[0].mxu0
      %4134 = vmatprep.mubr.bf16.mxu0 0
      %4135 = vmatmul.mubr.bf16.gmra.mrb[0].mxu0 %v4002
      %v4136 = vpop.f32.mrb[0].mxu0
      %v4137 = vadd.f32 0.0, %v4136
      %v4138 = vpop.f32.mrb[0].mxu0
      %v4139 = vpop.f32.mrb[0].mxu0
      %v4140 = vadd.f32 0.0, %v4139
      %v4141 = vpop.f32.mrb[0].mxu0
      %4142 = vmatprep.mubr.bf16.mxu0 0
      %4143 = vmatmul.mubr.bf16.gmra.mrb[0].mxu0 %v4005
      %v4144 = vpop.f32.mrb[0].mxu0
      %v4145 = vadd.f32 0.0, %v4144
      %v4146 = vpop.f32.mrb[0].mxu0
      %v4147 = vpop.f32.mrb[0].mxu0
      %v4148 = vadd.f32 0.0, %v4147
      %v4149 = vpop.f32.mrb[0].mxu0
      %4150 = vmatprep.mubr.bf16.mxu0 0
      %4151 = vmatmul.mubr.bf16.gmra.mrb[0].mxu0 %v4008
      %v4152 = vpop.f32.mrb[0].mxu0
      %v4153 = vadd.f32 0.0, %v4152
      %v4154 = vpop.f32.mrb[0].mxu0
      %v4155 = vpop.f32.mrb[0].mxu0
      %v4156 = vadd.f32 0.0, %v4155
      %v4157 = vpop.f32.mrb[0].mxu0
      %4158 = vmatprep.mubr.bf16.mxu0 0
      %4159 = vmatmul.mubr.bf16.gmra.mrb[0].mxu0 %v4011
      %v4160 = vpop.f32.mrb[0].mxu0
      %v4161 = vadd.f32 0.0, %v4160
      %v4162 = vpop.f32.mrb[0].mxu0
      %v4163 = vpop.f32.mrb[0].mxu0
      %v4164 = vadd.f32 0.0, %v4163
      %v4165 = vpop.f32.mrb[0].mxu0
      %4166 = vmatprep.mubr.bf16.mxu0 0
      %4167 = vmatmul.mubr.bf16.gmra.mrb[0].mxu0 %v4014
      %v4168 = vpop.f32.mrb[0].mxu0
      %v4169 = vadd.f32 0.0, %v4168
      %v4170 = vpop.f32.mrb[0].mxu0
      %v4171 = vpop.f32.mrb[0].mxu0
      %v4172 = vadd.f32 0.0, %v4171
      %v4173 = vpop.f32.mrb[0].mxu0
      %4174 = vmatprep.mubr.bf16.mxu0 0
      %4175 = vmatmul.mubr.bf16.gmra.mrb[0].mxu0 %v4017
      %v4176 = vpop.f32.mrb[0].mxu0
      %v4177 = vadd.f32 0.0, %v4176
      %v4178 = vpop.f32.mrb[0].mxu0
      %v4179 = vpop.f32.mrb[0].mxu0
      %v4180 = vadd.f32 0.0, %v4179
      %v4181 = vpop.f32.mrb[0].mxu0
      %4182 = vdwg.mxu0
      %v4183 = vadd.f32 %v3771, %v4057
      %v4184 = vadd.f32 %v3772, %v4060
      %v4185 = vadd.f32 %v3773, %v4065
      %v4186 = vadd.f32 %v3774, %v4068
      %v4187 = vadd.f32 %v3775, %v4073
      %v4188 = vadd.f32 %v3776, %v4076
      %v4189 = vadd.f32 %v3777, %v4081
      %v4190 = vadd.f32 %v3778, %v4084
      %v4191 = vadd.f32 %v3779, %v4089
      %v4192 = vadd.f32 %v3780, %v4092
      %v4193 = vadd.f32 %v3781, %v4097
      %v4194 = vadd.f32 %v3782, %v4100
      %v4195 = vadd.f32 %v3783, %v4105
      %v4196 = vadd.f32 %v3784, %v4108
      %v4197 = vadd.f32 %v3785, %v4113
      %v4198 = vadd.f32 %v3786, %v4116
      %v4199 = vadd.f32 %v3787, %v4121
      %v4200 = vadd.f32 %v3788, %v4124
      %v4201 = vadd.f32 %v3789, %v4129
      %v4202 = vadd.f32 %v3790, %v4132
      %v4203 = vadd.f32 %v3791, %v4137
      %v4204 = vadd.f32 %v3792, %v4140
      %v4205 = vadd.f32 %v3793, %v4145
      %v4206 = vadd.f32 %v3794, %v4148
      %v4207 = vadd.f32 %v3795, %v4153
      %v4208 = vadd.f32 %v3796, %v4156
      %v4209 = vadd.f32 %v3797, %v4161
      %v4210 = vadd.f32 %v3798, %v4164
      %v4211 = vadd.f32 %v3799, %v4169
      %v4212 = vadd.f32 %v3800, %v4172
      %v4213 = vadd.f32 %v3801, %v4177
      %v4214 = vadd.f32 %v3802, %v4180
      %v4215 = vld [vmem:[#allocation2 + $0x10] sm:$0x80]
      %v4216 = vld [vmem:[#allocation2 + $0x90] sm:$0xff]
      %v4217 = vsel %vm1833, 0, %v4215
      %v4218 = vsel %vm1834, 0, %v3804
      %v4219 = vsel %vm1835, 0, %v3805
      %v4220 = vsel %vm1836, 0, %v3806
      %v4221 = vsel %vm1837, 0, %v3807
      %v4222 = vsel %vm1838, 0, %v3808
      %v4223 = vsel %vm1839, 0, %v3809
      %v4224 = vsel %vm1840, 0, %v3810
      %v4225 = vsel %vm1841, 0, %v3811
      %v4226 = vsel %vm1842, 0, %v3812
      %v4227 = vsel %vm1843, 0, %v3813
      %v4228 = vsel %vm1844, 0, %v3814
      %v4229 = vsel %vm1845, 0, %v3815
      %v4230 = vsel %vm1846, 0, %v3816
      %v4231 = vsel %vm1847, 0, %v3817
      %v4232 = vsel %vm1848, 0, %v3818
      %v4233 = vsel %vm1849, 0, %v4216
      %s4234 = scalar_lea.vmem %s5, 12
      %v4235 = vld [vmem:[%s4234] sm:$0x3]
      %v4237 = vshrl.u32 %v4217, 16
      %v4239 = vrot.slane %v4237, 7
      %v4241 = vshrl.u32 %v4218, 16
      %v4243 = vrot.slane %v4241, 7
      %v4244 = vshll.u32 %v4218, 16
      %v4246 = vor.u32 %v4243, %v4244
      %v4247 = vsel %vm2083, %v4239, %v4246
      %v4249 = vshrl.u32 %v4219, 16
      %v4251 = vrot.slane %v4249, 7
      %v4252 = vshll.u32 %v4219, 16
      %v4254 = vor.u32 %v4251, %v4252
      %v4255 = vsel %vm2083, %v4243, %v4254
      %v4257 = vshrl.u32 %v4220, 16
      %v4259 = vrot.slane %v4257, 7
      %v4260 = vshll.u32 %v4220, 16
      %v4262 = vor.u32 %v4259, %v4260
      %v4263 = vsel %vm2083, %v4251, %v4262
      %v4265 = vshrl.u32 %v4221, 16
      %v4267 = vrot.slane %v4265, 7
      %v4268 = vshll.u32 %v4221, 16
      %v4270 = vor.u32 %v4267, %v4268
      %v4271 = vsel %vm2083, %v4259, %v4270
      %v4273 = vshrl.u32 %v4222, 16
      %v4275 = vrot.slane %v4273, 7
      %v4276 = vshll.u32 %v4222, 16
      %v4278 = vor.u32 %v4275, %v4276
      %v4279 = vsel %vm2083, %v4267, %v4278
      %v4281 = vshrl.u32 %v4223, 16
      %v4283 = vrot.slane %v4281, 7
      %v4284 = vshll.u32 %v4223, 16
      %v4286 = vor.u32 %v4283, %v4284
      %v4287 = vsel %vm2083, %v4275, %v4286
      %v4289 = vshrl.u32 %v4224, 16
      %v4291 = vrot.slane %v4289, 7
      %v4292 = vshll.u32 %v4224, 16
      %v4294 = vor.u32 %v4291, %v4292
      %v4295 = vsel %vm2083, %v4283, %v4294
      %v4297 = vshrl.u32 %v4225, 16
      %v4299 = vrot.slane %v4297, 7
      %v4300 = vshll.u32 %v4225, 16
      %v4302 = vor.u32 %v4299, %v4300
      %v4303 = vsel %vm2083, %v4291, %v4302
      %v4305 = vshrl.u32 %v4226, 16
      %v4307 = vrot.slane %v4305, 7
      %v4308 = vshll.u32 %v4226, 16
      %v4310 = vor.u32 %v4307, %v4308
      %v4311 = vsel %vm2083, %v4299, %v4310
      %v4313 = vshrl.u32 %v4227, 16
      %v4315 = vrot.slane %v4313, 7
      %v4316 = vshll.u32 %v4227, 16
      %v4318 = vor.u32 %v4315, %v4316
      %v4319 = vsel %vm2083, %v4307, %v4318
      %v4321 = vshrl.u32 %v4228, 16
      %v4323 = vrot.slane %v4321, 7
      %v4324 = vshll.u32 %v4228, 16
      %v4326 = vor.u32 %v4323, %v4324
      %v4327 = vsel %vm2083, %v4315, %v4326
      %v4329 = vshrl.u32 %v4229, 16
      %v4331 = vrot.slane %v4329, 7
      %v4332 = vshll.u32 %v4229, 16
      %v4334 = vor.u32 %v4331, %v4332
      %v4335 = vsel %vm2083, %v4323, %v4334
      %v4337 = vshrl.u32 %v4230, 16
      %v4339 = vrot.slane %v4337, 7
      %v4340 = vshll.u32 %v4230, 16
      %v4342 = vor.u32 %v4339, %v4340
      %v4343 = vsel %vm2083, %v4331, %v4342
      %v4345 = vshrl.u32 %v4231, 16
      %v4347 = vrot.slane %v4345, 7
      %v4348 = vshll.u32 %v4231, 16
      %v4350 = vor.u32 %v4347, %v4348
      %v4351 = vsel %vm2083, %v4339, %v4350
      %v4353 = vshrl.u32 %v4232, 16
      %v4355 = vrot.slane %v4353, 7
      %v4356 = vshll.u32 %v4232, 16
      %v4358 = vor.u32 %v4355, %v4356
      %v4359 = vsel %vm2083, %v4347, %v4358
      %v4361 = vshrl.u32 %v4233, 16
      %v4363 = vrot.slane %v4361, 7
      %v4364 = vshll.u32 %v4233, 16
      %v4366 = vor.u32 %v4363, %v4364
      %v4367 = vsel %vm2083, %v4355, %v4366
      %v4369 = vsel %vm888, %v4247, 0
      %v4372 = vsel %vm888, %v4255, 0
      %v4375 = vsel %vm888, %v4263, 0
      %v4378 = vsel %vm888, %v4271, 0
      %v4381 = vsel %vm888, %v4279, 0
      %v4384 = vsel %vm888, %v4287, 0
      %v4387 = vsel %vm888, %v4295, 0
      %v4390 = vsel %vm888, %v4303, 0
      %v4393 = vsel %vm888, %v4311, 0
      %v4396 = vsel %vm888, %v4319, 0
      %v4399 = vsel %vm888, %v4327, 0
      %v4402 = vsel %vm888, %v4335, 0
      %v4405 = vsel %vm888, %v4343, 0
      %v4408 = vsel %vm888, %v4351, 0
      %v4411 = vsel %vm888, %v4359, 0
      %v4414 = vsel %vm888, %v4367, 0
      %v4417 = vsel %vm1918, %v4235, 0
      %4419 = vmatprep.subr.bf16.mxu0 0
      %4420 = vmatpush1.bf16.msra.mxu0 %v4417
      %4421 = vmatprep.subr.bf16.mxu0 0
      %4422 = vmatpush1.bf16.msra.mxu0 0
      %4423 = vmatprep.subr.bf16.mxu0 0
      %4424 = vmatpush1.bf16.msra.mxu0 0
      %4425 = vmatprep.subr.bf16.mxu0 0
      %4426 = vmatpush1.bf16.msra.mxu0 0
      %4427 = vmatprep.subr.bf16.mxu0 0
      %4428 = vmatpush1.bf16.msra.mxu0 0
      %4429 = vmatprep.subr.bf16.mxu0 0
      %4430 = vmatpush1.bf16.msra.mxu0 0
      %4431 = vmatprep.subr.bf16.mxu0 0
      %4432 = vmatpush1.bf16.msra.mxu0 0
      %4433 = vmatprep.subr.bf16.mxu0 0
      %4434 = vmatpush1.bf16.msra.mxu0 0
      %4435 = vmatprep.subr.bf16.mxu0 0
      %4436 = vmatpush1.bf16.msra.mxu0 0
      %4437 = vmatprep.subr.bf16.mxu0 0
      %4438 = vmatpush1.bf16.msra.mxu0 0
      %4439 = vmatprep.subr.bf16.mxu0 0
      %4440 = vmatpush1.bf16.msra.mxu0 0
      %4441 = vmatprep.subr.bf16.mxu0 0
      %4442 = vmatpush1.bf16.msra.mxu0 0
      %4443 = vmatprep.subr.bf16.mxu0 0
      %4444 = vmatpush1.bf16.msra.mxu0 0
      %4445 = vmatprep.subr.bf16.mxu0 0
      %4446 = vmatpush1.bf16.msra.mxu0 0
      %4447 = vmatprep.subr.bf16.mxu0 0
      %4448 = vmatpush1.bf16.msra.mxu0 0
      %4449 = vmatprep.subr.bf16.mxu0 0
      %4450 = vmatpush1.bf16.msra.mxu0 0
      %4451 = vmatprep.mubr.bf16.mxu0 0
      %4452 = vmatmul.mubr.bf16.gmra.mrb[0].mxu0 %v4369
      %v4453 = vpop.f32.mrb[0].mxu0
      %v4454 = vadd.f32 0.0, %v4453
      %v4455 = vpop.f32.mrb[0].mxu0
      %v4456 = vpop.f32.mrb[0].mxu0
      %v4457 = vadd.f32 0.0, %v4456
      %v4458 = vpop.f32.mrb[0].mxu0
      %4459 = vmatprep.mubr.bf16.mxu0 0
      %4460 = vmatmul.mubr.bf16.gmra.mrb[0].mxu0 %v4372
      %v4461 = vpop.f32.mrb[0].mxu0
      %v4462 = vadd.f32 0.0, %v4461
      %v4463 = vpop.f32.mrb[0].mxu0
      %v4464 = vpop.f32.mrb[0].mxu0
      %v4465 = vadd.f32 0.0, %v4464
      %v4466 = vpop.f32.mrb[0].mxu0
      %4467 = vmatprep.mubr.bf16.mxu0 0
      %4468 = vmatmul.mubr.bf16.gmra.mrb[0].mxu0 %v4375
      %v4469 = vpop.f32.mrb[0].mxu0
      %v4470 = vadd.f32 0.0, %v4469
      %v4471 = vpop.f32.mrb[0].mxu0
      %v4472 = vpop.f32.mrb[0].mxu0
      %v4473 = vadd.f32 0.0, %v4472
      %v4474 = vpop.f32.mrb[0].mxu0
      %4475 = vmatprep.mubr.bf16.mxu0 0
      %4476 = vmatmul.mubr.bf16.gmra.mrb[0].mxu0 %v4378
      %v4477 = vpop.f32.mrb[0].mxu0
      %v4478 = vadd.f32 0.0, %v4477
      %v4479 = vpop.f32.mrb[0].mxu0
      %v4480 = vpop.f32.mrb[0].mxu0
      %v4481 = vadd.f32 0.0, %v4480
      %v4482 = vpop.f32.mrb[0].mxu0
      %4483 = vmatprep.mubr.bf16.mxu0 0
      %4484 = vmatmul.mubr.bf16.gmra.mrb[0].mxu0 %v4381
      %v4485 = vpop.f32.mrb[0].mxu0
      %v4486 = vadd.f32 0.0, %v4485
      %v4487 = vpop.f32.mrb[0].mxu0
      %v4488 = vpop.f32.mrb[0].mxu0
      %v4489 = vadd.f32 0.0, %v4488
      %v4490 = vpop.f32.mrb[0].mxu0
      %4491 = vmatprep.mubr.bf16.mxu0 0
      %4492 = vmatmul.mubr.bf16.gmra.mrb[0].mxu0 %v4384
      %v4493 = vpop.f32.mrb[0].mxu0
      %v4494 = vadd.f32 0.0, %v4493
      %v4495 = vpop.f32.mrb[0].mxu0
      %v4496 = vpop.f32.mrb[0].mxu0
      %v4497 = vadd.f32 0.0, %v4496
      %v4498 = vpop.f32.mrb[0].mxu0
      %4499 = vmatprep.mubr.bf16.mxu0 0
      %4500 = vmatmul.mubr.bf16.gmra.mrb[0].mxu0 %v4387
      %v4501 = vpop.f32.mrb[0].mxu0
      %v4502 = vadd.f32 0.0, %v4501
      %v4503 = vpop.f32.mrb[0].mxu0
      %v4504 = vpop.f32.mrb[0].mxu0
      %v4505 = vadd.f32 0.0, %v4504
      %v4506 = vpop.f32.mrb[0].mxu0
      %4507 = vmatprep.mubr.bf16.mxu0 0
      %4508 = vmatmul.mubr.bf16.gmra.mrb[0].mxu0 %v4390
      %v4509 = vpop.f32.mrb[0].mxu0
      %v4510 = vadd.f32 0.0, %v4509
      %v4511 = vpop.f32.mrb[0].mxu0
      %v4512 = vpop.f32.mrb[0].mxu0
      %v4513 = vadd.f32 0.0, %v4512
      %v4514 = vpop.f32.mrb[0].mxu0
      %4515 = vmatprep.mubr.bf16.mxu0 0
      %4516 = vmatmul.mubr.bf16.gmra.mrb[0].mxu0 %v4393
      %v4517 = vpop.f32.mrb[0].mxu0
      %v4518 = vadd.f32 0.0, %v4517
      %v4519 = vpop.f32.mrb[0].mxu0
      %v4520 = vpop.f32.mrb[0].mxu0
      %v4521 = vadd.f32 0.0, %v4520
      %v4522 = vpop.f32.mrb[0].mxu0
      %4523 = vmatprep.mubr.bf16.mxu0 0
      %4524 = vmatmul.mubr.bf16.gmra.mrb[0].mxu0 %v4396
      %v4525 = vpop.f32.mrb[0].mxu0
      %v4526 = vadd.f32 0.0, %v4525
      %v4527 = vpop.f32.mrb[0].mxu0
      %v4528 = vpop.f32.mrb[0].mxu0
      %v4529 = vadd.f32 0.0, %v4528
      %v4530 = vpop.f32.mrb[0].mxu0
      %4531 = vmatprep.mubr.bf16.mxu0 0
      %4532 = vmatmul.mubr.bf16.gmra.mrb[0].mxu0 %v4399
      %v4533 = vpop.f32.mrb[0].mxu0
      %v4534 = vadd.f32 0.0, %v4533
      %v4535 = vpop.f32.mrb[0].mxu0
      %v4536 = vpop.f32.mrb[0].mxu0
      %v4537 = vadd.f32 0.0, %v4536
      %v4538 = vpop.f32.mrb[0].mxu0
      %4539 = vmatprep.mubr.bf16.mxu0 0
      %4540 = vmatmul.mubr.bf16.gmra.mrb[0].mxu0 %v4402
      %v4541 = vpop.f32.mrb[0].mxu0
      %v4542 = vadd.f32 0.0, %v4541
      %v4543 = vpop.f32.mrb[0].mxu0
      %v4544 = vpop.f32.mrb[0].mxu0
      %v4545 = vadd.f32 0.0, %v4544
      %v4546 = vpop.f32.mrb[0].mxu0
      %4547 = vmatprep.mubr.bf16.mxu0 0
      %4548 = vmatmul.mubr.bf16.gmra.mrb[0].mxu0 %v4405
      %v4549 = vpop.f32.mrb[0].mxu0
      %v4550 = vadd.f32 0.0, %v4549
      %v4551 = vpop.f32.mrb[0].mxu0
      %v4552 = vpop.f32.mrb[0].mxu0
      %v4553 = vadd.f32 0.0, %v4552
      %v4554 = vpop.f32.mrb[0].mxu0
      %4555 = vmatprep.mubr.bf16.mxu0 0
      %4556 = vmatmul.mubr.bf16.gmra.mrb[0].mxu0 %v4408
      %v4557 = vpop.f32.mrb[0].mxu0
      %v4558 = vadd.f32 0.0, %v4557
      %v4559 = vpop.f32.mrb[0].mxu0
      %v4560 = vpop.f32.mrb[0].mxu0
      %v4561 = vadd.f32 0.0, %v4560
      %v4562 = vpop.f32.mrb[0].mxu0
      %4563 = vmatprep.mubr.bf16.mxu0 0
      %4564 = vmatmul.mubr.bf16.gmra.mrb[0].mxu0 %v4411
      %v4565 = vpop.f32.mrb[0].mxu0
      %v4566 = vadd.f32 0.0, %v4565
      %v4567 = vpop.f32.mrb[0].mxu0
      %v4568 = vpop.f32.mrb[0].mxu0
      %v4569 = vadd.f32 0.0, %v4568
      %v4570 = vpop.f32.mrb[0].mxu0
      %4571 = vmatprep.mubr.bf16.mxu0 0
      %4572 = vmatmul.mubr.bf16.gmra.mrb[0].mxu0 %v4414
      %v4573 = vpop.f32.mrb[0].mxu0
      %v4574 = vadd.f32 0.0, %v4573
      %v4575 = vpop.f32.mrb[0].mxu0
      %v4576 = vpop.f32.mrb[0].mxu0
      %v4577 = vadd.f32 0.0, %v4576
      %v4578 = vpop.f32.mrb[0].mxu0
      %4579 = vdwg.mxu0
      %v4580 = vadd.f32 %v4183, %v4454
      %v4581 = vadd.f32 %v4184, %v4457
      %v4582 = vadd.f32 %v4185, %v4462
      %v4583 = vadd.f32 %v4186, %v4465
      %v4584 = vadd.f32 %v4187, %v4470
      %v4585 = vadd.f32 %v4188, %v4473
      %v4586 = vadd.f32 %v4189, %v4478
      %v4587 = vadd.f32 %v4190, %v4481
      %v4588 = vadd.f32 %v4191, %v4486
      %v4589 = vadd.f32 %v4192, %v4489
      %v4590 = vadd.f32 %v4193, %v4494
      %v4591 = vadd.f32 %v4194, %v4497
      %v4592 = vadd.f32 %v4195, %v4502
      %v4593 = vadd.f32 %v4196, %v4505
      %v4594 = vadd.f32 %v4197, %v4510
      %v4595 = vadd.f32 %v4198, %v4513
      %v4596 = vadd.f32 %v4199, %v4518
      %v4597 = vadd.f32 %v4200, %v4521
      %v4598 = vadd.f32 %v4201, %v4526
      %v4599 = vadd.f32 %v4202, %v4529
      %v4600 = vadd.f32 %v4203, %v4534
      %v4601 = vadd.f32 %v4204, %v4537
      %v4602 = vadd.f32 %v4205, %v4542
      %v4603 = vadd.f32 %v4206, %v4545
      %v4604 = vadd.f32 %v4207, %v4550
      %v4605 = vadd.f32 %v4208, %v4553
      %v4606 = vadd.f32 %v4209, %v4558
      %v4607 = vadd.f32 %v4210, %v4561
      %v4608 = vadd.f32 %v4211, %v4566
      %v4609 = vadd.f32 %v4212, %v4569
      %v4610 = vadd.f32 %v4213, %v4574
      %v4611 = vadd.f32 %v4214, %v4577
      %s4612 = scalar_lea.vmem %s5, 14
      %v4613 = vld [vmem:[%s4612] sm:$0x3]
      %v4615 = vsel %vm888, %v3804, 0
      %v4618 = vsel %vm888, %v3805, 0
      %v4621 = vsel %vm888, %v3806, 0
      %v4624 = vsel %vm888, %v3807, 0
      %v4627 = vsel %vm888, %v3808, 0
      %v4630 = vsel %vm888, %v3809, 0
      %v4633 = vsel %vm888, %v3810, 0
      %v4636 = vsel %vm888, %v3811, 0
      %v4639 = vsel %vm888, %v3812, 0
      %v4642 = vsel %vm888, %v3813, 0
      %v4645 = vsel %vm888, %v3814, 0
      %v4648 = vsel %vm888, %v3815, 0
      %v4651 = vsel %vm888, %v3816, 0
      %v4654 = vsel %vm888, %v3817, 0
      %v4657 = vsel %vm888, %v3818, 0
      %v4660 = vsel %vm888, %v4216, 0
      %v4663 = vsel %vm1918, %v4613, 0
      %4665 = vmatprep.subr.bf16.mxu0 0
      %4666 = vmatpush1.bf16.msra.mxu0 %v4663
      %4667 = vmatprep.subr.bf16.mxu0 0
      %4668 = vmatpush1.bf16.msra.mxu0 0
      %4669 = vmatprep.subr.bf16.mxu0 0
      %4670 = vmatpush1.bf16.msra.mxu0 0
      %4671 = vmatprep.subr.bf16.mxu0 0
      %4672 = vmatpush1.bf16.msra.mxu0 0
      %4673 = vmatprep.subr.bf16.mxu0 0
      %4674 = vmatpush1.bf16.msra.mxu0 0
      %4675 = vmatprep.subr.bf16.mxu0 0
      %4676 = vmatpush1.bf16.msra.mxu0 0
      %4677 = vmatprep.subr.bf16.mxu0 0
      %4678 = vmatpush1.bf16.msra.mxu0 0
      %4679 = vmatprep.subr.bf16.mxu0 0
      %4680 = vmatpush1.bf16.msra.mxu0 0
      %4681 = vmatprep.subr.bf16.mxu0 0
      %4682 = vmatpush1.bf16.msra.mxu0 0
      %4683 = vmatprep.subr.bf16.mxu0 0
      %4684 = vmatpush1.bf16.msra.mxu0 0
      %4685 = vmatprep.subr.bf16.mxu0 0
      %4686 = vmatpush1.bf16.msra.mxu0 0
      %4687 = vmatprep.subr.bf16.mxu0 0
      %4688 = vmatpush1.bf16.msra.mxu0 0
      %4689 = vmatprep.subr.bf16.mxu0 0
      %4690 = vmatpush1.bf16.msra.mxu0 0
      %4691 = vmatprep.subr.bf16.mxu0 0
      %4692 = vmatpush1.bf16.msra.mxu0 0
      %4693 = vmatprep.subr.bf16.mxu0 0
      %4694 = vmatpush1.bf16.msra.mxu0 0
      %4695 = vmatprep.subr.bf16.mxu0 0
      %4696 = vmatpush1.bf16.msra.mxu0 0
      %4697 = vmatprep.mubr.bf16.mxu0 0
      %4698 = vmatmul.mubr.bf16.gmra.mrb[0].mxu0 %v4615
      %v4699 = vpop.f32.mrb[0].mxu0
      %v4700 = vadd.f32 0.0, %v4699
      %v4701 = vpop.f32.mrb[0].mxu0
      %v4702 = vpop.f32.mrb[0].mxu0
      %v4703 = vadd.f32 0.0, %v4702
      %v4704 = vpop.f32.mrb[0].mxu0
      %4705 = vmatprep.mubr.bf16.mxu0 0
      %4706 = vmatmul.mubr.bf16.gmra.mrb[0].mxu0 %v4618
      %v4707 = vpop.f32.mrb[0].mxu0
      %v4708 = vadd.f32 0.0, %v4707
      %v4709 = vpop.f32.mrb[0].mxu0
      %v4710 = vpop.f32.mrb[0].mxu0
      %v4711 = vadd.f32 0.0, %v4710
      %v4712 = vpop.f32.mrb[0].mxu0
      %4713 = vmatprep.mubr.bf16.mxu0 0
      %4714 = vmatmul.mubr.bf16.gmra.mrb[0].mxu0 %v4621
      %v4715 = vpop.f32.mrb[0].mxu0
      %v4716 = vadd.f32 0.0, %v4715
      %v4717 = vpop.f32.mrb[0].mxu0
      %v4718 = vpop.f32.mrb[0].mxu0
      %v4719 = vadd.f32 0.0, %v4718
      %v4720 = vpop.f32.mrb[0].mxu0
      %4721 = vmatprep.mubr.bf16.mxu0 0
      %4722 = vmatmul.mubr.bf16.gmra.mrb[0].mxu0 %v4624
      %v4723 = vpop.f32.mrb[0].mxu0
      %v4724 = vadd.f32 0.0, %v4723
      %v4725 = vpop.f32.mrb[0].mxu0
      %v4726 = vpop.f32.mrb[0].mxu0
      %v4727 = vadd.f32 0.0, %v4726
      %v4728 = vpop.f32.mrb[0].mxu0
      %4729 = vmatprep.mubr.bf16.mxu0 0
      %4730 = vmatmul.mubr.bf16.gmra.mrb[0].mxu0 %v4627
      %v4731 = vpop.f32.mrb[0].mxu0
      %v4732 = vadd.f32 0.0, %v4731
      %v4733 = vpop.f32.mrb[0].mxu0
      %v4734 = vpop.f32.mrb[0].mxu0
      %v4735 = vadd.f32 0.0, %v4734
      %v4736 = vpop.f32.mrb[0].mxu0
      %4737 = vmatprep.mubr.bf16.mxu0 0
      %4738 = vmatmul.mubr.bf16.gmra.mrb[0].mxu0 %v4630
      %v4739 = vpop.f32.mrb[0].mxu0
      %v4740 = vadd.f32 0.0, %v4739
      %v4741 = vpop.f32.mrb[0].mxu0
      %v4742 = vpop.f32.mrb[0].mxu0
      %v4743 = vadd.f32 0.0, %v4742
      %v4744 = vpop.f32.mrb[0].mxu0
      %4745 = vmatprep.mubr.bf16.mxu0 0
      %4746 = vmatmul.mubr.bf16.gmra.mrb[0].mxu0 %v4633
      %v4747 = vpop.f32.mrb[0].mxu0
      %v4748 = vadd.f32 0.0, %v4747
      %v4749 = vpop.f32.mrb[0].mxu0
      %v4750 = vpop.f32.mrb[0].mxu0
      %v4751 = vadd.f32 0.0, %v4750
      %v4752 = vpop.f32.mrb[0].mxu0
      %4753 = vmatprep.mubr.bf16.mxu0 0
      %4754 = vmatmul.mubr.bf16.gmra.mrb[0].mxu0 %v4636
      %v4755 = vpop.f32.mrb[0].mxu0
      %v4756 = vadd.f32 0.0, %v4755
      %v4757 = vpop.f32.mrb[0].mxu0
      %v4758 = vpop.f32.mrb[0].mxu0
      %v4759 = vadd.f32 0.0, %v4758
      %v4760 = vpop.f32.mrb[0].mxu0
      %4761 = vmatprep.mubr.bf16.mxu0 0
      %4762 = vmatmul.mubr.bf16.gmra.mrb[0].mxu0 %v4639
      %v4763 = vpop.f32.mrb[0].mxu0
      %v4764 = vadd.f32 0.0, %v4763
      %v4765 = vpop.f32.mrb[0].mxu0
      %v4766 = vpop.f32.mrb[0].mxu0
      %v4767 = vadd.f32 0.0, %v4766
      %v4768 = vpop.f32.mrb[0].mxu0
      %4769 = vmatprep.mubr.bf16.mxu0 0
      %4770 = vmatmul.mubr.bf16.gmra.mrb[0].mxu0 %v4642
      %v4771 = vpop.f32.mrb[0].mxu0
      %v4772 = vadd.f32 0.0, %v4771
      %v4773 = vpop.f32.mrb[0].mxu0
      %v4774 = vpop.f32.mrb[0].mxu0
      %v4775 = vadd.f32 0.0, %v4774
      %v4776 = vpop.f32.mrb[0].mxu0
      %4777 = vmatprep.mubr.bf16.mxu0 0
      %4778 = vmatmul.mubr.bf16.gmra.mrb[0].mxu0 %v4645
      %v4779 = vpop.f32.mrb[0].mxu0
      %v4780 = vadd.f32 0.0, %v4779
      %v4781 = vpop.f32.mrb[0].mxu0
      %v4782 = vpop.f32.mrb[0].mxu0
      %v4783 = vadd.f32 0.0, %v4782
      %v4784 = vpop.f32.mrb[0].mxu0
      %4785 = vmatprep.mubr.bf16.mxu0 0
      %4786 = vmatmul.mubr.bf16.gmra.mrb[0].mxu0 %v4648
      %v4787 = vpop.f32.mrb[0].mxu0
      %v4788 = vadd.f32 0.0, %v4787
      %v4789 = vpop.f32.mrb[0].mxu0
      %v4790 = vpop.f32.mrb[0].mxu0
      %v4791 = vadd.f32 0.0, %v4790
      %v4792 = vpop.f32.mrb[0].mxu0
      %4793 = vmatprep.mubr.bf16.mxu0 0
      %4794 = vmatmul.mubr.bf16.gmra.mrb[0].mxu0 %v4651
      %v4795 = vpop.f32.mrb[0].mxu0
      %v4796 = vadd.f32 0.0, %v4795
      %v4797 = vpop.f32.mrb[0].mxu0
      %v4798 = vpop.f32.mrb[0].mxu0
      %v4799 = vadd.f32 0.0, %v4798
      %v4800 = vpop.f32.mrb[0].mxu0
      %4801 = vmatprep.mubr.bf16.mxu0 0
      %4802 = vmatmul.mubr.bf16.gmra.mrb[0].mxu0 %v4654
      %v4803 = vpop.f32.mrb[0].mxu0
      %v4804 = vadd.f32 0.0, %v4803
      %v4805 = vpop.f32.mrb[0].mxu0
      %v4806 = vpop.f32.mrb[0].mxu0
      %v4807 = vadd.f32 0.0, %v4806
      %v4808 = vpop.f32.mrb[0].mxu0
      %4809 = vmatprep.mubr.bf16.mxu0 0
      %4810 = vmatmul.mubr.bf16.gmra.mrb[0].mxu0 %v4657
      %v4811 = vpop.f32.mrb[0].mxu0
      %v4812 = vadd.f32 0.0, %v4811
      %v4813 = vpop.f32.mrb[0].mxu0
      %v4814 = vpop.f32.mrb[0].mxu0
      %v4815 = vadd.f32 0.0, %v4814
      %v4816 = vpop.f32.mrb[0].mxu0
      %4817 = vmatprep.mubr.bf16.mxu0 0
      %4818 = vmatmul.mubr.bf16.gmra.mrb[0].mxu0 %v4660
      %v4819 = vpop.f32.mrb[0].mxu0
      %v4820 = vadd.f32 0.0, %v4819
      %v4821 = vpop.f32.mrb[0].mxu0
      %v4822 = vpop.f32.mrb[0].mxu0
      %v4823 = vadd.f32 0.0, %v4822
      %v4824 = vpop.f32.mrb[0].mxu0
      %4825 = vdwg.mxu0
      %v4826 = vadd.f32 %v4580, %v4700
      %v4827 = vadd.f32 %v4581, %v4703
      %v4828 = vadd.f32 %v4582, %v4708
      %v4829 = vadd.f32 %v4583, %v4711
      %v4830 = vadd.f32 %v4584, %v4716
      %v4831 = vadd.f32 %v4585, %v4719
      %v4832 = vadd.f32 %v4586, %v4724
      %v4833 = vadd.f32 %v4587, %v4727
      %v4834 = vadd.f32 %v4588, %v4732
      %v4835 = vadd.f32 %v4589, %v4735
      %v4836 = vadd.f32 %v4590, %v4740
      %v4837 = vadd.f32 %v4591, %v4743
      %v4838 = vadd.f32 %v4592, %v4748
      %v4839 = vadd.f32 %v4593, %v4751
      %v4840 = vadd.f32 %v4594, %v4756
      %v4841 = vadd.f32 %v4595, %v4759
      %v4842 = vadd.f32 %v4596, %v4764
      %v4843 = vadd.f32 %v4597, %v4767
      %v4844 = vadd.f32 %v4598, %v4772
      %v4845 = vadd.f32 %v4599, %v4775
      %v4846 = vadd.f32 %v4600, %v4780
      %v4847 = vadd.f32 %v4601, %v4783
      %v4848 = vadd.f32 %v4602, %v4788
      %v4849 = vadd.f32 %v4603, %v4791
      %v4850 = vadd.f32 %v4604, %v4796
      %v4851 = vadd.f32 %v4605, %v4799
      %v4852 = vadd.f32 %v4606, %v4804
      %v4853 = vadd.f32 %v4607, %v4807
      %v4854 = vadd.f32 %v4608, %v4812
      %v4855 = vadd.f32 %v4609, %v4815
      %v4856 = vadd.f32 %v4610, %v4820
      %v4857 = vadd.f32 %v4611, %v4823
      %v4858 = vld [vmem:[#allocation2 + $0x18] sm:$0xff]
      %v4859 = vld [vmem:[#allocation2 + $0x20] sm:$0xff]
      %v4860 = vld [vmem:[#allocation2 + $0x28] sm:$0xff]
      %v4861 = vld [vmem:[#allocation2 + $0x30] sm:$0xff]
      %v4862 = vld [vmem:[#allocation2 + $0x38] sm:$0xff]
      %v4863 = vld [vmem:[#allocation2 + $0x40] sm:$0xff]
      %v4864 = vld [vmem:[#allocation2 + $0x48] sm:$0xff]
      %v4865 = vld [vmem:[#allocation2 + $0x50] sm:$0xff]
      %v4866 = vld [vmem:[#allocation2 + $0x58] sm:$0xff]
      %v4867 = vld [vmem:[#allocation2 + $0x60] sm:$0xff]
      %v4868 = vld [vmem:[#allocation2 + $0x68] sm:$0xff]
      %v4869 = vld [vmem:[#allocation2 + $0x70] sm:$0xff]
      %v4870 = vld [vmem:[#allocation2 + $0x78] sm:$0xff]
      %v4871 = vld [vmem:[#allocation2 + $0x80] sm:$0xff]
      %v4872 = vld [vmem:[#allocation2 + $0x88] sm:$0xff]
      %v4873 = vld [vmem:[#allocation2 + $0x90] sm:$0xff]
      %v4874 = vld [vmem:[#allocation2 + $0x98] sm:$0x1]
      %v4875 = vsel %vm2748, 0, %v4858
      %v4876 = vsel %vm2749, 0, %v4859
      %v4877 = vsel %vm2750, 0, %v4860
      %v4878 = vsel %vm2751, 0, %v4861
      %v4879 = vsel %vm2752, 0, %v4862
      %v4880 = vsel %vm2753, 0, %v4863
      %v4881 = vsel %vm2754, 0, %v4864
      %v4882 = vsel %vm2755, 0, %v4865
      %v4883 = vsel %vm2756, 0, %v4866
      %v4884 = vsel %vm2757, 0, %v4867
      %v4885 = vsel %vm2758, 0, %v4868
      %v4886 = vsel %vm2759, 0, %v4869
      %v4887 = vsel %vm2760, 0, %v4870
      %v4888 = vsel %vm2761, 0, %v4871
      %v4889 = vsel %vm2762, 0, %v4872
      %v4890 = vsel %vm2763, 0, %v4873
      %v4891 = vsel %vm2764, 0, %v4874
      %s4892 = scalar_lea.vmem %s5, 16
      %v4893 = vld [vmem:[%s4892] sm:$0x3]
      %v4895 = vshrl.u32 %v4875, 16
      %v4897 = vshll.u32 %v4875, 16
      %v4899 = vrot.slane %v4897, 1
      %v4900 = vor.u32 %v4895, %v4899
      %v4902 = vshll.u32 %v4876, 16
      %v4904 = vrot.slane %v4902, 1
      %v4905 = vsel %vm1705, %v4900, %v4904
      %v4906 = vshrl.u32 %v4876, 16
      %v4908 = vor.u32 %v4906, %v4904
      %v4910 = vshll.u32 %v4877, 16
      %v4912 = vrot.slane %v4910, 1
      %v4913 = vsel %vm1705, %v4908, %v4912
      %v4914 = vshrl.u32 %v4877, 16
      %v4916 = vor.u32 %v4914, %v4912
      %v4918 = vshll.u32 %v4878, 16
      %v4920 = vrot.slane %v4918, 1
      %v4921 = vsel %vm1705, %v4916, %v4920
      %v4922 = vshrl.u32 %v4878, 16
      %v4924 = vor.u32 %v4922, %v4920
      %v4926 = vshll.u32 %v4879, 16
      %v4928 = vrot.slane %v4926, 1
      %v4929 = vsel %vm1705, %v4924, %v4928
      %v4930 = vshrl.u32 %v4879, 16
      %v4932 = vor.u32 %v4930, %v4928
      %v4934 = vshll.u32 %v4880, 16
      %v4936 = vrot.slane %v4934, 1
      %v4937 = vsel %vm1705, %v4932, %v4936
      %v4938 = vshrl.u32 %v4880, 16
      %v4940 = vor.u32 %v4938, %v4936
      %v4942 = vshll.u32 %v4881, 16
      %v4944 = vrot.slane %v4942, 1
      %v4945 = vsel %vm1705, %v4940, %v4944
      %v4946 = vshrl.u32 %v4881, 16
      %v4948 = vor.u32 %v4946, %v4944
      %v4950 = vshll.u32 %v4882, 16
      %v4952 = vrot.slane %v4950, 1
      %v4953 = vsel %vm1705, %v4948, %v4952
      %v4954 = vshrl.u32 %v4882, 16
      %v4956 = vor.u32 %v4954, %v4952
      %v4958 = vshll.u32 %v4883, 16
      %v4960 = vrot.slane %v4958, 1
      %v4961 = vsel %vm1705, %v4956, %v4960
      %v4962 = vshrl.u32 %v4883, 16
      %v4964 = vor.u32 %v4962, %v4960
      %v4966 = vshll.u32 %v4884, 16
      %v4968 = vrot.slane %v4966, 1
      %v4969 = vsel %vm1705, %v4964, %v4968
      %v4970 = vshrl.u32 %v4884, 16
      %v4972 = vor.u32 %v4970, %v4968
      %v4974 = vshll.u32 %v4885, 16
      %v4976 = vrot.slane %v4974, 1
      %v4977 = vsel %vm1705, %v4972, %v4976
      %v4978 = vshrl.u32 %v4885, 16
      %v4980 = vor.u32 %v4978, %v4976
      %v4982 = vshll.u32 %v4886, 16
      %v4984 = vrot.slane %v4982, 1
      %v4985 = vsel %vm1705, %v4980, %v4984
      %v4986 = vshrl.u32 %v4886, 16
      %v4988 = vor.u32 %v4986, %v4984
      %v4990 = vshll.u32 %v4887, 16
      %v4992 = vrot.slane %v4990, 1
      %v4993 = vsel %vm1705, %v4988, %v4992
      %v4994 = vshrl.u32 %v4887, 16
      %v4996 = vor.u32 %v4994, %v4992
      %v4998 = vshll.u32 %v4888, 16
      %v5000 = vrot.slane %v4998, 1
      %v5001 = vsel %vm1705, %v4996, %v5000
      %v5002 = vshrl.u32 %v4888, 16
      %v5004 = vor.u32 %v5002, %v5000
      %v5006 = vshll.u32 %v4889, 16
      %v5008 = vrot.slane %v5006, 1
      %v5009 = vsel %vm1705, %v5004, %v5008
      %v5010 = vshrl.u32 %v4889, 16
      %v5012 = vor.u32 %v5010, %v5008
      %v5014 = vshll.u32 %v4890, 16
      %v5016 = vrot.slane %v5014, 1
      %v5017 = vsel %vm1705, %v5012, %v5016
      %v5018 = vshrl.u32 %v4890, 16
      %v5020 = vor.u32 %v5018, %v5016
      %v5022 = vshll.u32 %v4891, 16
      %v5024 = vrot.slane %v5022, 1
      %v5025 = vsel %vm1705, %v5020, %v5024
      %v5027 = vsel %vm888, %v4905, 0
      %v5030 = vsel %vm888, %v4913, 0
      %v5033 = vsel %vm888, %v4921, 0
      %v5036 = vsel %vm888, %v4929, 0
      %v5039 = vsel %vm888, %v4937, 0
      %v5042 = vsel %vm888, %v4945, 0
      %v5045 = vsel %vm888, %v4953, 0
      %v5048 = vsel %vm888, %v4961, 0
      %v5051 = vsel %vm888, %v4969, 0
      %v5054 = vsel %vm888, %v4977, 0
      %v5057 = vsel %vm888, %v4985, 0
      %v5060 = vsel %vm888, %v4993, 0
      %v5063 = vsel %vm888, %v5001, 0
      %v5066 = vsel %vm888, %v5009, 0
      %v5069 = vsel %vm888, %v5017, 0
      %v5072 = vsel %vm888, %v5025, 0
      %v5075 = vsel %vm1918, %v4893, 0
      %5077 = vmatprep.subr.bf16.mxu0 0
      %5078 = vmatpush1.bf16.msra.mxu0 %v5075
      %5079 = vmatprep.subr.bf16.mxu0 0
      %5080 = vmatpush1.bf16.msra.mxu0 0
      %5081 = vmatprep.subr.bf16.mxu0 0
      %5082 = vmatpush1.bf16.msra.mxu0 0
      %5083 = vmatprep.subr.bf16.mxu0 0
      %5084 = vmatpush1.bf16.msra.mxu0 0
      %5085 = vmatprep.subr.bf16.mxu0 0
      %5086 = vmatpush1.bf16.msra.mxu0 0
      %5087 = vmatprep.subr.bf16.mxu0 0
      %5088 = vmatpush1.bf16.msra.mxu0 0
      %5089 = vmatprep.subr.bf16.mxu0 0
      %5090 = vmatpush1.bf16.msra.mxu0 0
      %5091 = vmatprep.subr.bf16.mxu0 0
      %5092 = vmatpush1.bf16.msra.mxu0 0
      %5093 = vmatprep.subr.bf16.mxu0 0
      %5094 = vmatpush1.bf16.msra.mxu0 0
      %5095 = vmatprep.subr.bf16.mxu0 0
      %5096 = vmatpush1.bf16.msra.mxu0 0
      %5097 = vmatprep.subr.bf16.mxu0 0
      %5098 = vmatpush1.bf16.msra.mxu0 0
      %5099 = vmatprep.subr.bf16.mxu0 0
      %5100 = vmatpush1.bf16.msra.mxu0 0
      %5101 = vmatprep.subr.bf16.mxu0 0
      %5102 = vmatpush1.bf16.msra.mxu0 0
      %5103 = vmatprep.subr.bf16.mxu0 0
      %5104 = vmatpush1.bf16.msra.mxu0 0
      %5105 = vmatprep.subr.bf16.mxu0 0
      %5106 = vmatpush1.bf16.msra.mxu0 0
      %5107 = vmatprep.subr.bf16.mxu0 0
      %5108 = vmatpush1.bf16.msra.mxu0 0
      %5109 = vmatprep.mubr.bf16.mxu0 0
      %5110 = vmatmul.mubr.bf16.gmra.mrb[0].mxu0 %v5027
      %v5111 = vpop.f32.mrb[0].mxu0
      %v5112 = vadd.f32 0.0, %v5111
      %v5113 = vpop.f32.mrb[0].mxu0
      %v5114 = vpop.f32.mrb[0].mxu0
      %v5115 = vadd.f32 0.0, %v5114
      %v5116 = vpop.f32.mrb[0].mxu0
      %5117 = vmatprep.mubr.bf16.mxu0 0
      %5118 = vmatmul.mubr.bf16.gmra.mrb[0].mxu0 %v5030
      %v5119 = vpop.f32.mrb[0].mxu0
      %v5120 = vadd.f32 0.0, %v5119
      %v5121 = vpop.f32.mrb[0].mxu0
      %v5122 = vpop.f32.mrb[0].mxu0
      %v5123 = vadd.f32 0.0, %v5122
      %v5124 = vpop.f32.mrb[0].mxu0
      %5125 = vmatprep.mubr.bf16.mxu0 0
      %5126 = vmatmul.mubr.bf16.gmra.mrb[0].mxu0 %v5033
      %v5127 = vpop.f32.mrb[0].mxu0
      %v5128 = vadd.f32 0.0, %v5127
      %v5129 = vpop.f32.mrb[0].mxu0
      %v5130 = vpop.f32.mrb[0].mxu0
      %v5131 = vadd.f32 0.0, %v5130
      %v5132 = vpop.f32.mrb[0].mxu0
      %5133 = vmatprep.mubr.bf16.mxu0 0
      %5134 = vmatmul.mubr.bf16.gmra.mrb[0].mxu0 %v5036
      %v5135 = vpop.f32.mrb[0].mxu0
      %v5136 = vadd.f32 0.0, %v5135
      %v5137 = vpop.f32.mrb[0].mxu0
      %v5138 = vpop.f32.mrb[0].mxu0
      %v5139 = vadd.f32 0.0, %v5138
      %v5140 = vpop.f32.mrb[0].mxu0
      %5141 = vmatprep.mubr.bf16.mxu0 0
      %5142 = vmatmul.mubr.bf16.gmra.mrb[0].mxu0 %v5039
      %v5143 = vpop.f32.mrb[0].mxu0
      %v5144 = vadd.f32 0.0, %v5143
      %v5145 = vpop.f32.mrb[0].mxu0
      %v5146 = vpop.f32.mrb[0].mxu0
      %v5147 = vadd.f32 0.0, %v5146
      %v5148 = vpop.f32.mrb[0].mxu0
      %5149 = vmatprep.mubr.bf16.mxu0 0
      %5150 = vmatmul.mubr.bf16.gmra.mrb[0].mxu0 %v5042
      %v5151 = vpop.f32.mrb[0].mxu0
      %v5152 = vadd.f32 0.0, %v5151
      %v5153 = vpop.f32.mrb[0].mxu0
      %v5154 = vpop.f32.mrb[0].mxu0
      %v5155 = vadd.f32 0.0, %v5154
      %v5156 = vpop.f32.mrb[0].mxu0
      %5157 = vmatprep.mubr.bf16.mxu0 0
      %5158 = vmatmul.mubr.bf16.gmra.mrb[0].mxu0 %v5045
      %v5159 = vpop.f32.mrb[0].mxu0
      %v5160 = vadd.f32 0.0, %v5159
      %v5161 = vpop.f32.mrb[0].mxu0
      %v5162 = vpop.f32.mrb[0].mxu0
      %v5163 = vadd.f32 0.0, %v5162
      %v5164 = vpop.f32.mrb[0].mxu0
      %5165 = vmatprep.mubr.bf16.mxu0 0
      %5166 = vmatmul.mubr.bf16.gmra.mrb[0].mxu0 %v5048
      %v5167 = vpop.f32.mrb[0].mxu0
      %v5168 = vadd.f32 0.0, %v5167
      %v5169 = vpop.f32.mrb[0].mxu0
      %v5170 = vpop.f32.mrb[0].mxu0
      %v5171 = vadd.f32 0.0, %v5170
      %v5172 = vpop.f32.mrb[0].mxu0
      %5173 = vmatprep.mubr.bf16.mxu0 0
      %5174 = vmatmul.mubr.bf16.gmra.mrb[0].mxu0 %v5051
      %v5175 = vpop.f32.mrb[0].mxu0
      %v5176 = vadd.f32 0.0, %v5175
      %v5177 = vpop.f32.mrb[0].mxu0
      %v5178 = vpop.f32.mrb[0].mxu0
      %v5179 = vadd.f32 0.0, %v5178
      %v5180 = vpop.f32.mrb[0].mxu0
      %5181 = vmatprep.mubr.bf16.mxu0 0
      %5182 = vmatmul.mubr.bf16.gmra.mrb[0].mxu0 %v5054
      %v5183 = vpop.f32.mrb[0].mxu0
      %v5184 = vadd.f32 0.0, %v5183
      %v5185 = vpop.f32.mrb[0].mxu0
      %v5186 = vpop.f32.mrb[0].mxu0
      %v5187 = vadd.f32 0.0, %v5186
      %v5188 = vpop.f32.mrb[0].mxu0
      %5189 = vmatprep.mubr.bf16.mxu0 0
      %5190 = vmatmul.mubr.bf16.gmra.mrb[0].mxu0 %v5057
      %v5191 = vpop.f32.mrb[0].mxu0
      %v5192 = vadd.f32 0.0, %v5191
      %v5193 = vpop.f32.mrb[0].mxu0
      %v5194 = vpop.f32.mrb[0].mxu0
      %v5195 = vadd.f32 0.0, %v5194
      %v5196 = vpop.f32.mrb[0].mxu0
      %5197 = vmatprep.mubr.bf16.mxu0 0
      %5198 = vmatmul.mubr.bf16.gmra.mrb[0].mxu0 %v5060
      %v5199 = vpop.f32.mrb[0].mxu0
      %v5200 = vadd.f32 0.0, %v5199
      %v5201 = vpop.f32.mrb[0].mxu0
      %v5202 = vpop.f32.mrb[0].mxu0
      %v5203 = vadd.f32 0.0, %v5202
      %v5204 = vpop.f32.mrb[0].mxu0
      %5205 = vmatprep.mubr.bf16.mxu0 0
      %5206 = vmatmul.mubr.bf16.gmra.mrb[0].mxu0 %v5063
      %v5207 = vpop.f32.mrb[0].mxu0
      %v5208 = vadd.f32 0.0, %v5207
      %v5209 = vpop.f32.mrb[0].mxu0
      %v5210 = vpop.f32.mrb[0].mxu0
      %v5211 = vadd.f32 0.0, %v5210
      %v5212 = vpop.f32.mrb[0].mxu0
      %5213 = vmatprep.mubr.bf16.mxu0 0
      %5214 = vmatmul.mubr.bf16.gmra.mrb[0].mxu0 %v5066
      %v5215 = vpop.f32.mrb[0].mxu0
      %v5216 = vadd.f32 0.0, %v5215
      %v5217 = vpop.f32.mrb[0].mxu0
      %v5218 = vpop.f32.mrb[0].mxu0
      %v5219 = vadd.f32 0.0, %v5218
      %v5220 = vpop.f32.mrb[0].mxu0
      %5221 = vmatprep.mubr.bf16.mxu0 0
      %5222 = vmatmul.mubr.bf16.gmra.mrb[0].mxu0 %v5069
      %v5223 = vpop.f32.mrb[0].mxu0
      %v5224 = vadd.f32 0.0, %v5223
      %v5225 = vpop.f32.mrb[0].mxu0
      %v5226 = vpop.f32.mrb[0].mxu0
      %v5227 = vadd.f32 0.0, %v5226
      %v5228 = vpop.f32.mrb[0].mxu0
      %5229 = vmatprep.mubr.bf16.mxu0 0
      %5230 = vmatmul.mubr.bf16.gmra.mrb[0].mxu0 %v5072
      %v5231 = vpop.f32.mrb[0].mxu0
      %v5232 = vadd.f32 0.0, %v5231
      %v5233 = vpop.f32.mrb[0].mxu0
      %v5234 = vpop.f32.mrb[0].mxu0
      %v5235 = vadd.f32 0.0, %v5234
      %v5236 = vpop.f32.mrb[0].mxu0
      %5237 = vdwg.mxu0
      %v5238 = vadd.f32 %v4826, %v5112
      %v5239 = vadd.f32 %v4827, %v5115
      %v5240 = vadd.f32 %v4828, %v5120
      %v5241 = vadd.f32 %v4829, %v5123
      %v5242 = vadd.f32 %v4830, %v5128
      %v5243 = vadd.f32 %v4831, %v5131
      %v5244 = vadd.f32 %v4832, %v5136
      %v5245 = vadd.f32 %v4833, %v5139
      %v5246 = vadd.f32 %v4834, %v5144
      %v5247 = vadd.f32 %v4835, %v5147
      %v5248 = vadd.f32 %v4836, %v5152
      %v5249 = vadd.f32 %v4837, %v5155
      %v5250 = vadd.f32 %v4838, %v5160
      %v5251 = vadd.f32 %v4839, %v5163
      %v5252 = vadd.f32 %v4840, %v5168
      %v5253 = vadd.f32 %v4841, %v5171
      %v5254 = vadd.f32 %v4842, %v5176
      %v5255 = vadd.f32 %v4843, %v5179
      %v5256 = vadd.f32 %v4844, %v5184
      %v5257 = vadd.f32 %v4845, %v5187
      %v5258 = vadd.f32 %v4846, %v5192
      %v5259 = vadd.f32 %v4847, %v5195
      %v5260 = vadd.f32 %v4848, %v5200
      %v5261 = vadd.f32 %v4849, %v5203
      %v5262 = vadd.f32 %v4850, %v5208
      %v5263 = vadd.f32 %v4851, %v5211
      %v5264 = vadd.f32 %v4852, %v5216
      %v5265 = vadd.f32 %v4853, %v5219
      %v5266 = vadd.f32 %v4854, %v5224
      %v5267 = vadd.f32 %v4855, %v5227
      %v5268 = vadd.f32 %v4856, %v5232
      %v5269 = vadd.f32 %v4857, %v5235
      %v5270 = vld [vmem:[%s6] sm:$0x1]
      %v5272 = vlaneseq
      %v5273 = vshrl.u32 %v5272, 7
      %v5274 = vsub.s32 0, %v5273
      %v5275 = vrot.slane %v5270, %v5274
      %v5277 = vadd.f32 %v5238, %v5275
      %v5278 = vadd.f32 %v5239, %v5275
      %v5279 = vadd.f32 %v5240, %v5275
      %v5280 = vadd.f32 %v5241, %v5275
      %v5281 = vadd.f32 %v5242, %v5275
      %v5282 = vadd.f32 %v5243, %v5275
      %v5283 = vadd.f32 %v5244, %v5275
      %v5284 = vadd.f32 %v5245, %v5275
      %v5285 = vadd.f32 %v5246, %v5275
      %v5286 = vadd.f32 %v5247, %v5275
      %v5287 = vadd.f32 %v5248, %v5275
      %v5288 = vadd.f32 %v5249, %v5275
      %v5289 = vadd.f32 %v5250, %v5275
      %v5290 = vadd.f32 %v5251, %v5275
      %v5291 = vadd.f32 %v5252, %v5275
      %v5292 = vadd.f32 %v5253, %v5275
      %v5293 = vadd.f32 %v5254, %v5275
      %v5294 = vadd.f32 %v5255, %v5275
      %v5295 = vadd.f32 %v5256, %v5275
      %v5296 = vadd.f32 %v5257, %v5275
      %v5297 = vadd.f32 %v5258, %v5275
      %v5298 = vadd.f32 %v5259, %v5275
      %v5299 = vadd.f32 %v5260, %v5275
      %v5300 = vadd.f32 %v5261, %v5275
      %v5301 = vadd.f32 %v5262, %v5275
      %v5302 = vadd.f32 %v5263, %v5275
      %v5303 = vadd.f32 %v5264, %v5275
      %v5304 = vadd.f32 %v5265, %v5275
      %v5305 = vadd.f32 %v5266, %v5275
      %v5306 = vadd.f32 %v5267, %v5275
      %v5307 = vadd.f32 %v5268, %v5275
      %v5308 = vadd.f32 %v5269, %v5275
      %v5309 = vmax.f32 %v5277, 0.0
      %v5310 = vmax.f32 %v5278, 0.0
      %v5311 = vmax.f32 %v5279, 0.0
      %v5312 = vmax.f32 %v5280, 0.0
      %v5313 = vmax.f32 %v5281, 0.0
      %v5314 = vmax.f32 %v5282, 0.0
      %v5315 = vmax.f32 %v5283, 0.0
      %v5316 = vmax.f32 %v5284, 0.0
      %v5317 = vmax.f32 %v5285, 0.0
      %v5318 = vmax.f32 %v5286, 0.0
      %v5319 = vmax.f32 %v5287, 0.0
      %v5320 = vmax.f32 %v5288, 0.0
      %v5321 = vmax.f32 %v5289, 0.0
      %v5322 = vmax.f32 %v5290, 0.0
      %v5323 = vmax.f32 %v5291, 0.0
      %v5324 = vmax.f32 %v5292, 0.0
      %v5325 = vmax.f32 %v5293, 0.0
      %v5326 = vmax.f32 %v5294, 0.0
      %v5327 = vmax.f32 %v5295, 0.0
      %v5328 = vmax.f32 %v5296, 0.0
      %v5329 = vmax.f32 %v5297, 0.0
      %v5330 = vmax.f32 %v5298, 0.0
      %v5331 = vmax.f32 %v5299, 0.0
      %v5332 = vmax.f32 %v5300, 0.0
      %v5333 = vmax.f32 %v5301, 0.0
      %v5334 = vmax.f32 %v5302, 0.0
      %v5335 = vmax.f32 %v5303, 0.0
      %v5336 = vmax.f32 %v5304, 0.0
      %v5337 = vmax.f32 %v5305, 0.0
      %v5338 = vmax.f32 %v5306, 0.0
      %v5339 = vmax.f32 %v5307, 0.0
      %v5340 = vmax.f32 %v5308, 0.0
      %v5341 = vpack.c.bf16 %v5310, %v5309
      %v5342 = vpack.c.bf16 %v5312, %v5311
      %v5343 = vpack.c.bf16 %v5314, %v5313
      %v5344 = vpack.c.bf16 %v5316, %v5315
      %v5345 = vpack.c.bf16 %v5318, %v5317
      %v5346 = vpack.c.bf16 %v5320, %v5319
      %v5347 = vpack.c.bf16 %v5322, %v5321
      %v5348 = vpack.c.bf16 %v5324, %v5323
      %v5349 = vpack.c.bf16 %v5326, %v5325
      %v5350 = vpack.c.bf16 %v5328, %v5327
      %v5351 = vpack.c.bf16 %v5330, %v5329
      %v5352 = vpack.c.bf16 %v5332, %v5331
      %v5353 = vpack.c.bf16 %v5334, %v5333
      %v5354 = vpack.c.bf16 %v5336, %v5335
      %v5355 = vpack.c.bf16 %v5338, %v5337
      %v5356 = vpack.c.bf16 %v5340, %v5339
      %v5357 = vld [vmem:[%s7] sm:$0x3]
      %v5358 = vld [vmem:[%s8] sm:$0x1]
      %v5360 = vlaneseq
      %v5361 = vshrl.u32 %v5360, 7
      %v5362 = vsub.s32 0, %v5361
      %v5363 = vrot.slane %v5358, %v5362
      %v5366 = vsel %vm888, %v5341, 0
      %v5369 = vsel %vm888, %v5342, 0
      %v5372 = vsel %vm888, %v5343, 0
      %v5375 = vsel %vm888, %v5344, 0
      %v5378 = vsel %vm888, %v5345, 0
      %v5381 = vsel %vm888, %v5346, 0
      %v5384 = vsel %vm888, %v5347, 0
      %v5387 = vsel %vm888, %v5348, 0
      %v5390 = vsel %vm888, %v5349, 0
      %v5393 = vsel %vm888, %v5350, 0
      %v5396 = vsel %vm888, %v5351, 0
      %v5399 = vsel %vm888, %v5352, 0
      %v5402 = vsel %vm888, %v5353, 0
      %v5405 = vsel %vm888, %v5354, 0
      %v5408 = vsel %vm888, %v5355, 0
      %v5411 = vsel %vm888, %v5356, 0
      %v5414 = vsel %vm1918, %v5357, 0
      %5416 = vmatprep.subr.bf16.mxu0 0
      %5417 = vmatpush1.bf16.msra.mxu0 %v5414
      %5418 = vmatprep.subr.bf16.mxu0 0
      %5419 = vmatpush1.bf16.msra.mxu0 0
      %5420 = vmatprep.subr.bf16.mxu0 0
      %5421 = vmatpush1.bf16.msra.mxu0 0
      %5422 = vmatprep.subr.bf16.mxu0 0
      %5423 = vmatpush1.bf16.msra.mxu0 0
      %5424 = vmatprep.subr.bf16.mxu0 0
      %5425 = vmatpush1.bf16.msra.mxu0 0
      %5426 = vmatprep.subr.bf16.mxu0 0
      %5427 = vmatpush1.bf16.msra.mxu0 0
      %5428 = vmatprep.subr.bf16.mxu0 0
      %5429 = vmatpush1.bf16.msra.mxu0 0
      %5430 = vmatprep.subr.bf16.mxu0 0
      %5431 = vmatpush1.bf16.msra.mxu0 0
      %5432 = vmatprep.subr.bf16.mxu0 0
      %5433 = vmatpush1.bf16.msra.mxu0 0
      %5434 = vmatprep.subr.bf16.mxu0 0
      %5435 = vmatpush1.bf16.msra.mxu0 0
      %5436 = vmatprep.subr.bf16.mxu0 0
      %5437 = vmatpush1.bf16.msra.mxu0 0
      %5438 = vmatprep.subr.bf16.mxu0 0
      %5439 = vmatpush1.bf16.msra.mxu0 0
      %5440 = vmatprep.subr.bf16.mxu0 0
      %5441 = vmatpush1.bf16.msra.mxu0 0
      %5442 = vmatprep.subr.bf16.mxu0 0
      %5443 = vmatpush1.bf16.msra.mxu0 0
      %5444 = vmatprep.subr.bf16.mxu0 0
      %5445 = vmatpush1.bf16.msra.mxu0 0
      %5446 = vmatprep.subr.bf16.mxu0 0
      %5447 = vmatpush1.bf16.msra.mxu0 0
      %5448 = vmatprep.mubr.bf16.mxu0 0
      %5449 = vmatmul.mubr.bf16.gmra.mrb[0].mxu0 %v5366
      %v5450 = vpop.f32.mrb[0].mxu0
      %v5451 = vadd.f32 %v5363, %v5450
      %v5452 = vpop.f32.mrb[0].mxu0
      %v5453 = vpop.f32.mrb[0].mxu0
      %v5454 = vadd.f32 %v5363, %v5453
      %v5455 = vpop.f32.mrb[0].mxu0
      %5456 = vmatprep.mubr.bf16.mxu0 0
      %5457 = vmatmul.mubr.bf16.gmra.mrb[0].mxu0 %v5369
      %v5458 = vpop.f32.mrb[0].mxu0
      %v5459 = vadd.f32 %v5363, %v5458
      %v5460 = vpop.f32.mrb[0].mxu0
      %v5461 = vpop.f32.mrb[0].mxu0
      %v5462 = vadd.f32 %v5363, %v5461
      %v5463 = vpop.f32.mrb[0].mxu0
      %5464 = vmatprep.mubr.bf16.mxu0 0
      %5465 = vmatmul.mubr.bf16.gmra.mrb[0].mxu0 %v5372
      %v5466 = vpop.f32.mrb[0].mxu0
      %v5467 = vadd.f32 %v5363, %v5466
      %v5468 = vpop.f32.mrb[0].mxu0
      %v5469 = vpop.f32.mrb[0].mxu0
      %v5470 = vadd.f32 %v5363, %v5469
      %v5471 = vpop.f32.mrb[0].mxu0
      %5472 = vmatprep.mubr.bf16.mxu0 0
      %5473 = vmatmul.mubr.bf16.gmra.mrb[0].mxu0 %v5375
      %v5474 = vpop.f32.mrb[0].mxu0
      %v5475 = vadd.f32 %v5363, %v5474
      %v5476 = vpop.f32.mrb[0].mxu0
      %v5477 = vpop.f32.mrb[0].mxu0
      %v5478 = vadd.f32 %v5363, %v5477
      %v5479 = vpop.f32.mrb[0].mxu0
      %5480 = vmatprep.mubr.bf16.mxu0 0
      %5481 = vmatmul.mubr.bf16.gmra.mrb[0].mxu0 %v5378
      %v5482 = vpop.f32.mrb[0].mxu0
      %v5483 = vadd.f32 %v5363, %v5482
      %v5484 = vpop.f32.mrb[0].mxu0
      %v5485 = vpop.f32.mrb[0].mxu0
      %v5486 = vadd.f32 %v5363, %v5485
      %v5487 = vpop.f32.mrb[0].mxu0
      %5488 = vmatprep.mubr.bf16.mxu0 0
      %5489 = vmatmul.mubr.bf16.gmra.mrb[0].mxu0 %v5381
      %v5490 = vpop.f32.mrb[0].mxu0
      %v5491 = vadd.f32 %v5363, %v5490
      %v5492 = vpop.f32.mrb[0].mxu0
      %v5493 = vpop.f32.mrb[0].mxu0
      %v5494 = vadd.f32 %v5363, %v5493
      %v5495 = vpop.f32.mrb[0].mxu0
      %5496 = vmatprep.mubr.bf16.mxu0 0
      %5497 = vmatmul.mubr.bf16.gmra.mrb[0].mxu0 %v5384
      %v5498 = vpop.f32.mrb[0].mxu0
      %v5499 = vadd.f32 %v5363, %v5498
      %v5500 = vpop.f32.mrb[0].mxu0
      %v5501 = vpop.f32.mrb[0].mxu0
      %v5502 = vadd.f32 %v5363, %v5501
      %v5503 = vpop.f32.mrb[0].mxu0
      %5504 = vmatprep.mubr.bf16.mxu0 0
      %5505 = vmatmul.mubr.bf16.gmra.mrb[0].mxu0 %v5387
      %v5506 = vpop.f32.mrb[0].mxu0
      %v5507 = vadd.f32 %v5363, %v5506
      %v5508 = vpop.f32.mrb[0].mxu0
      %v5509 = vpop.f32.mrb[0].mxu0
      %v5510 = vadd.f32 %v5363, %v5509
      %v5511 = vpop.f32.mrb[0].mxu0
      %5512 = vmatprep.mubr.bf16.mxu0 0
      %5513 = vmatmul.mubr.bf16.gmra.mrb[0].mxu0 %v5390
      %v5514 = vpop.f32.mrb[0].mxu0
      %v5515 = vadd.f32 %v5363, %v5514
      %v5516 = vpop.f32.mrb[0].mxu0
      %v5517 = vpop.f32.mrb[0].mxu0
      %v5518 = vadd.f32 %v5363, %v5517
      %v5519 = vpop.f32.mrb[0].mxu0
      %5520 = vmatprep.mubr.bf16.mxu0 0
      %5521 = vmatmul.mubr.bf16.gmra.mrb[0].mxu0 %v5393
      %v5522 = vpop.f32.mrb[0].mxu0
      %v5523 = vadd.f32 %v5363, %v5522
      %v5524 = vpop.f32.mrb[0].mxu0
      %v5525 = vpop.f32.mrb[0].mxu0
      %v5526 = vadd.f32 %v5363, %v5525
      %v5527 = vpop.f32.mrb[0].mxu0
      %5528 = vmatprep.mubr.bf16.mxu0 0
      %5529 = vmatmul.mubr.bf16.gmra.mrb[0].mxu0 %v5396
      %v5530 = vpop.f32.mrb[0].mxu0
      %v5531 = vadd.f32 %v5363, %v5530
      %v5532 = vpop.f32.mrb[0].mxu0
      %v5533 = vpop.f32.mrb[0].mxu0
      %v5534 = vadd.f32 %v5363, %v5533
      %v5535 = vpop.f32.mrb[0].mxu0
      %5536 = vmatprep.mubr.bf16.mxu0 0
      %5537 = vmatmul.mubr.bf16.gmra.mrb[0].mxu0 %v5399
      %v5538 = vpop.f32.mrb[0].mxu0
      %v5539 = vadd.f32 %v5363, %v5538
      %v5540 = vpop.f32.mrb[0].mxu0
      %v5541 = vpop.f32.mrb[0].mxu0
      %v5542 = vadd.f32 %v5363, %v5541
      %v5543 = vpop.f32.mrb[0].mxu0
      %5544 = vmatprep.mubr.bf16.mxu0 0
      %5545 = vmatmul.mubr.bf16.gmra.mrb[0].mxu0 %v5402
      %v5546 = vpop.f32.mrb[0].mxu0
      %v5547 = vadd.f32 %v5363, %v5546
      %v5548 = vpop.f32.mrb[0].mxu0
      %v5549 = vpop.f32.mrb[0].mxu0
      %v5550 = vadd.f32 %v5363, %v5549
      %v5551 = vpop.f32.mrb[0].mxu0
      %5552 = vmatprep.mubr.bf16.mxu0 0
      %5553 = vmatmul.mubr.bf16.gmra.mrb[0].mxu0 %v5405
      %v5554 = vpop.f32.mrb[0].mxu0
      %v5555 = vadd.f32 %v5363, %v5554
      %v5556 = vpop.f32.mrb[0].mxu0
      %v5557 = vpop.f32.mrb[0].mxu0
      %v5558 = vadd.f32 %v5363, %v5557
      %v5559 = vpop.f32.mrb[0].mxu0
      %5560 = vmatprep.mubr.bf16.mxu0 0
      %5561 = vmatmul.mubr.bf16.gmra.mrb[0].mxu0 %v5408
      %v5562 = vpop.f32.mrb[0].mxu0
      %v5563 = vadd.f32 %v5363, %v5562
      %v5564 = vpop.f32.mrb[0].mxu0
      %v5565 = vpop.f32.mrb[0].mxu0
      %v5566 = vadd.f32 %v5363, %v5565
      %v5567 = vpop.f32.mrb[0].mxu0
      %5568 = vmatprep.mubr.bf16.mxu0 0
      %5569 = vmatmul.mubr.bf16.gmra.mrb[0].mxu0 %v5411
      %v5570 = vpop.f32.mrb[0].mxu0
      %v5571 = vadd.f32 %v5363, %v5570
      %v5572 = vpop.f32.mrb[0].mxu0
      %v5573 = vpop.f32.mrb[0].mxu0
      %v5574 = vadd.f32 %v5363, %v5573
      %v5575 = vpop.f32.mrb[0].mxu0
      %5576 = vdwg.mxu0
      %v5577 = vld [vmem:[%s452] sm:$0xf]
      %v5578 = vld [vmem:[%s452 + $0x4] sm:$0xf]
      %v5579 = vld [vmem:[%s452 + $0x8] sm:$0xf]
      %v5580 = vld [vmem:[%s452 + $0xc] sm:$0xf]
      %v5581 = vld [vmem:[%s452 + $0x10] sm:$0xf]
      %v5582 = vld [vmem:[%s452 + $0x14] sm:$0xf]
      %v5583 = vld [vmem:[%s452 + $0x18] sm:$0xf]
      %v5584 = vld [vmem:[%s452 + $0x1c] sm:$0xf]
      %v5585 = vld [vmem:[%s452 + $0x20] sm:$0xf]
      %v5586 = vld [vmem:[%s452 + $0x24] sm:$0xf]
      %v5587 = vld [vmem:[%s452 + $0x28] sm:$0xf]
      %v5588 = vld [vmem:[%s452 + $0x2c] sm:$0xf]
      %v5589 = vld [vmem:[%s452 + $0x30] sm:$0xf]
      %v5590 = vld [vmem:[%s452 + $0x34] sm:$0xf]
      %v5591 = vld [vmem:[%s452 + $0x38] sm:$0xf]
      %v5592 = vld [vmem:[%s452 + $0x3c] sm:$0xf]
      %v5593 = vld [vmem:[%s452 + $0x40] sm:$0xf]
      %v5594 = vld [vmem:[%s452 + $0x44] sm:$0xf]
      %v5595 = vld [vmem:[%s452 + $0x48] sm:$0xf]
      %v5596 = vld [vmem:[%s452 + $0x4c] sm:$0xf]
      %v5597 = vld [vmem:[%s452 + $0x50] sm:$0xf]
      %v5598 = vld [vmem:[%s452 + $0x54] sm:$0xf]
      %v5599 = vld [vmem:[%s452 + $0x58] sm:$0xf]
      %v5600 = vld [vmem:[%s452 + $0x5c] sm:$0xf]
      %v5601 = vld [vmem:[%s452 + $0x60] sm:$0xf]
      %v5602 = vld [vmem:[%s452 + $0x64] sm:$0xf]
      %v5603 = vld [vmem:[%s452 + $0x68] sm:$0xf]
      %v5604 = vld [vmem:[%s452 + $0x6c] sm:$0xf]
      %v5605 = vld [vmem:[%s452 + $0x70] sm:$0xf]
      %v5606 = vld [vmem:[%s452 + $0x74] sm:$0xf]
      %v5607 = vld [vmem:[%s452 + $0x78] sm:$0xf]
      %v5608 = vld [vmem:[%s452 + $0x7c] sm:$0xf]
      %v5609 = vunpack.c.l.bf16 %v5577
      %v5610 = vunpack.c.l.bf16 %v5578
      %v5611 = vunpack.c.l.bf16 %v5579
      %v5612 = vunpack.c.l.bf16 %v5580
      %v5613 = vunpack.c.l.bf16 %v5581
      %v5614 = vunpack.c.l.bf16 %v5582
      %v5615 = vunpack.c.l.bf16 %v5583
      %v5616 = vunpack.c.l.bf16 %v5584
      %v5617 = vunpack.c.l.bf16 %v5585
      %v5618 = vunpack.c.l.bf16 %v5586
      %v5619 = vunpack.c.l.bf16 %v5587
      %v5620 = vunpack.c.l.bf16 %v5588
      %v5621 = vunpack.c.l.bf16 %v5589
      %v5622 = vunpack.c.l.bf16 %v5590
      %v5623 = vunpack.c.l.bf16 %v5591
      %v5624 = vunpack.c.l.bf16 %v5592
      %v5625 = vunpack.c.l.bf16 %v5593
      %v5626 = vunpack.c.l.bf16 %v5594
      %v5627 = vunpack.c.l.bf16 %v5595
      %v5628 = vunpack.c.l.bf16 %v5596
      %v5629 = vunpack.c.l.bf16 %v5597
      %v5630 = vunpack.c.l.bf16 %v5598
      %v5631 = vunpack.c.l.bf16 %v5599
      %v5632 = vunpack.c.l.bf16 %v5600
      %v5633 = vunpack.c.l.bf16 %v5601
      %v5634 = vunpack.c.l.bf16 %v5602
      %v5635 = vunpack.c.l.bf16 %v5603
      %v5636 = vunpack.c.l.bf16 %v5604
      %v5637 = vunpack.c.l.bf16 %v5605
      %v5638 = vunpack.c.l.bf16 %v5606
      %v5639 = vunpack.c.l.bf16 %v5607
      %v5640 = vunpack.c.l.bf16 %v5608
      %v5641 = vadd.f32 %v5451, %v5609
      %v5642 = vadd.f32 %v5454, %v5610
      %v5643 = vadd.f32 %v5459, %v5611
      %v5644 = vadd.f32 %v5462, %v5612
      %v5645 = vadd.f32 %v5467, %v5613
      %v5646 = vadd.f32 %v5470, %v5614
      %v5647 = vadd.f32 %v5475, %v5615
      %v5648 = vadd.f32 %v5478, %v5616
      %v5649 = vadd.f32 %v5483, %v5617
      %v5650 = vadd.f32 %v5486, %v5618
      %v5651 = vadd.f32 %v5491, %v5619
      %v5652 = vadd.f32 %v5494, %v5620
      %v5653 = vadd.f32 %v5499, %v5621
      %v5654 = vadd.f32 %v5502, %v5622
      %v5655 = vadd.f32 %v5507, %v5623
      %v5656 = vadd.f32 %v5510, %v5624
      %v5657 = vadd.f32 %v5515, %v5625
      %v5658 = vadd.f32 %v5518, %v5626
      %v5659 = vadd.f32 %v5523, %v5627
      %v5660 = vadd.f32 %v5526, %v5628
      %v5661 = vadd.f32 %v5531, %v5629
      %v5662 = vadd.f32 %v5534, %v5630
      %v5663 = vadd.f32 %v5539, %v5631
      %v5664 = vadd.f32 %v5542, %v5632
      %v5665 = vadd.f32 %v5547, %v5633
      %v5666 = vadd.f32 %v5550, %v5634
      %v5667 = vadd.f32 %v5555, %v5635
      %v5668 = vadd.f32 %v5558, %v5636
      %v5669 = vadd.f32 %v5563, %v5637
      %v5670 = vadd.f32 %v5566, %v5638
      %v5671 = vadd.f32 %v5571, %v5639
      %v5672 = vadd.f32 %v5574, %v5640
      %v5673 = vmax.f32 %v5641, 0.0
      %v5674 = vmax.f32 %v5642, 0.0
      %v5675 = vmax.f32 %v5643, 0.0
      %v5676 = vmax.f32 %v5644, 0.0
      %v5677 = vmax.f32 %v5645, 0.0
      %v5678 = vmax.f32 %v5646, 0.0
      %v5679 = vmax.f32 %v5647, 0.0
      %v5680 = vmax.f32 %v5648, 0.0
      %v5681 = vmax.f32 %v5649, 0.0
      %v5682 = vmax.f32 %v5650, 0.0
      %v5683 = vmax.f32 %v5651, 0.0
      %v5684 = vmax.f32 %v5652, 0.0
      %v5685 = vmax.f32 %v5653, 0.0
      %v5686 = vmax.f32 %v5654, 0.0
      %v5687 = vmax.f32 %v5655, 0.0
      %v5688 = vmax.f32 %v5656, 0.0
      %v5689 = vmax.f32 %v5657, 0.0
      %v5690 = vmax.f32 %v5658, 0.0
      %v5691 = vmax.f32 %v5659, 0.0
      %v5692 = vmax.f32 %v5660, 0.0
      %v5693 = vmax.f32 %v5661, 0.0
      %v5694 = vmax.f32 %v5662, 0.0
      %v5695 = vmax.f32 %v5663, 0.0
      %v5696 = vmax.f32 %v5664, 0.0
      %v5697 = vmax.f32 %v5665, 0.0
      %v5698 = vmax.f32 %v5666, 0.0
      %v5699 = vmax.f32 %v5667, 0.0
      %v5700 = vmax.f32 %v5668, 0.0
      %v5701 = vmax.f32 %v5669, 0.0
      %v5702 = vmax.f32 %v5670, 0.0
      %v5703 = vmax.f32 %v5671, 0.0
      %v5704 = vmax.f32 %v5672, 0.0
      %5705 = vst.msk [vmem:[%s498] sm:$0xff] %vm630, %v5673
      %5706 = vst.msk [vmem:[%s498 + $0x8] sm:$0xff] %vm630, %v5674
      %5707 = vst.msk [vmem:[%s498 + $0x10] sm:$0xff] %vm630, %v5675
      %5708 = vst.msk [vmem:[%s498 + $0x18] sm:$0xff] %vm630, %v5676
      %5709 = vst.msk [vmem:[%s498 + $0x20] sm:$0xff] %vm630, %v5677
      %5710 = vst.msk [vmem:[%s498 + $0x28] sm:$0xff] %vm630, %v5678
      %5711 = vst.msk [vmem:[%s498 + $0x30] sm:$0xff] %vm630, %v5679
      %5712 = vst.msk [vmem:[%s498 + $0x38] sm:$0xff] %vm630, %v5680
      %5713 = vst.msk [vmem:[%s498 + $0x40] sm:$0xff] %vm630, %v5681
      %5714 = vst.msk [vmem:[%s498 + $0x48] sm:$0xff] %vm630, %v5682
      %5715 = vst.msk [vmem:[%s498 + $0x50] sm:$0xff] %vm630, %v5683
      %5716 = vst.msk [vmem:[%s498 + $0x58] sm:$0xff] %vm630, %v5684
      %5717 = vst.msk [vmem:[%s498 + $0x60] sm:$0xff] %vm630, %v5685
      %5718 = vst.msk [vmem:[%s498 + $0x68] sm:$0xff] %vm630, %v5686
      %5719 = vst.msk [vmem:[%s498 + $0x70] sm:$0xff] %vm630, %v5687
      %5720 = vst.msk [vmem:[%s498 + $0x78] sm:$0xff] %vm630, %v5688
      %5721 = vst.msk [vmem:[%s498 + $0x80] sm:$0xff] %vm630, %v5689
      %5722 = vst.msk [vmem:[%s498 + $0x88] sm:$0xff] %vm630, %v5690
      %5723 = vst.msk [vmem:[%s498 + $0x90] sm:$0xff] %vm630, %v5691
      %5724 = vst.msk [vmem:[%s498 + $0x98] sm:$0xff] %vm630, %v5692
      %5725 = vst.msk [vmem:[%s498 + $0xa0] sm:$0xff] %vm630, %v5693
      %5726 = vst.msk [vmem:[%s498 + $0xa8] sm:$0xff] %vm630, %v5694
      %5727 = vst.msk [vmem:[%s498 + $0xb0] sm:$0xff] %vm630, %v5695
      %5728 = vst.msk [vmem:[%s498 + $0xb8] sm:$0xff] %vm630, %v5696
      %5729 = vst.msk [vmem:[%s498 + $0xc0] sm:$0xff] %vm630, %v5697
      %5730 = vst.msk [vmem:[%s498 + $0xc8] sm:$0xff] %vm630, %v5698
      %5731 = vst.msk [vmem:[%s498 + $0xd0] sm:$0xff] %vm630, %v5699
      %5732 = vst.msk [vmem:[%s498 + $0xd8] sm:$0xff] %vm630, %v5700
      %5733 = vst.msk [vmem:[%s498 + $0xe0] sm:$0xff] %vm630, %v5701
      %5734 = vst.msk [vmem:[%s498 + $0xe8] sm:$0xff] %vm630, %v5702
      %5735 = vst.msk [vmem:[%s498 + $0xf0] sm:$0xff] %vm630, %v5703
      %5736 = vst.msk [vmem:[%s498 + $0xf8] sm:$0xff] %vm630, %v5704
      %s5737 = smul.u32 32, %s25
      %p5738 = scmp.lt.s32.totalorder %s24, 1
      %s5739 = scalar_select %p5738, %s24, 1
      %p5740 = scmp.lt.s32.totalorder %s5737, 31
      %s5741 = scalar_select %p5740, %s5737, 31
      %s5742 = smul.addr %s5739, 32
      %s5743 = sadd.s32 %s5741, %s5742
      %s5744 = smul.addr %s5743, 8
      %s5745 = scalar_lea.vmem %s9, %s5744
      // Predicated region
      $region73: #{bottleneck_pallas.1} parent=55 // pred_check
        %p5746 = pneg %p278
      $region74: #{bottleneck_pallas.1} parent=55 // pred_check_branch
        %5748 = sbr.rel (%p5746) target = $region76
      $region75: #{bottleneck_pallas.1} parent=55 // pred_region
        %s5749 = smul.u32 32, %s25
      $region76: #{bottleneck_pallas.1} parent=55 // pred_fallthru
        _
    $region56: #{bottleneck_pallas.1} parent=5 // pred_fallthru
      _
    %p5750 = scmp.le.s32.totalorder 2, %s15
    // Predicated region
    $region77: #{bottleneck_pallas.1} parent=5 // pred_check
      %p5751 = pneg %p5750
    $region78: #{bottleneck_pallas.1} parent=5 // pred_check_branch
      %5753 = sbr.rel (%p5751) target = $region80
    $region79: #{bottleneck_pallas.1} parent=5 // pred_region
      %s5754 = ssub.s32 %s15, 2
      // Predicated region
      $region81: #{bottleneck_pallas.1} parent=79 // pred_check
        %p5755 = pneg %p284
      $region82: #{bottleneck_pallas.1} parent=79 // pred_check_branch
        %5757 = sbr.rel (%p5755) target = $region84
      $region83: #{bottleneck_pallas.1} parent=79 // pred_region
        %s5758 = smul.u32 32, %s27
        %p5759 = scmp.lt.s32.totalorder %s26, 1
        %s5760 = scalar_select %p5759, %s26, 1
        %p5761 = scmp.lt.s32.totalorder %s5758, 31
        %s5762 = scalar_select %p5761, %s5758, 31
        %s5763 = smul.addr %s5760, 32
        %s5764 = sadd.s32 %s5762, %s5763
        %s5765 = smul.addr %s5764, 8
        %s5766 = scalar_lea.vmem %s9, %s5765
      $region84: #{bottleneck_pallas.1} parent=79 // pred_fallthru
        _
    $region80: #{bottleneck_pallas.1} parent=5 // pred_fallthru
      _
  $region6: #{bottleneck_pallas.1} parent=0 // loop_footer
    %s19 = sadd.s32 1, %s15
  $region7: #{bottleneck_pallas.1} parent=0 // loop_footer_branch
    %14 = sbr.rel target = $region3
  $region8: #{bottleneck_pallas.1} parent=0 // loop_exit
    _

</llo_original>
